<compile_context>
chip_gen: v7x
topology: tpu7x:2x2x1
jax: 0.10.0
libtpu: 0.0.40
codegen_flags: <defaults>
</compile_context>

<pallas_src>
import math

import numpy as np

import jax
import jax.numpy as jnp
from jax import lax
from jax.experimental import pallas as pl
from jax.experimental.pallas import tpu as pltpu

# ----------------------------- configuration -------------------------------
D_MODEL = 32          # dmodel (original default 1024, scaled down)
D_EMB = 32            # demb
N_LAYERS = 2          # nlayers (original default 12, scaled down)
NUM_HEADS = 1         # num_heads=1 -> head reshape is a no-op, d_k == dmodel
S = 8                 # number of tokens == number of graph nodes
NUM_REL = 4           # relation-embedding vocabulary
EPS = 1e-12           # LayerNorm eps
PAIR = (0, 5)         # (src, tar) pair; rev=True => src=PAIR[1], tar=PAIR[0]
NEG_INF = -1e9        # additive mask bias (every row has >=1 valid entry)

# Deterministic directed graph (u, v, dep) replacing the networkx digraph.
DIRECTED_EDGES = [
    (0, 1, 0), (1, 2, 1), (2, 3, 2), (3, 4, 3),
    (4, 5, 0), (5, 6, 1), (6, 7, 2), (7, 0, 3),
    (0, 4, 1), (2, 6, 2),
]

# create_links(): per sorted node, out-edges then in-edges of the digraph.
# TODO(synk): networkx out_edges/in_edges enumeration is host-side glue here.
NODE_EDGES, NODE_LEN = [], []
for _n in range(S):
    _es = [(u, v, r) for (u, v, r) in DIRECTED_EDGES if u == _n]   # out edges
    _es += [(u, v, r) for (u, v, r) in DIRECTED_EDGES if v == _n]  # in edges
    NODE_EDGES += _es
    NODE_LEN.append(len(_es))
E_TOTAL = len(NODE_EDGES)                      # 20
SEG_START = [0]
for _l in NODE_LEN[:-1]:
    SEG_START.append(SEG_START[-1] + _l)

# create_path(): shortest undirected path 0-4-5 for PAIR=(0,5); all graph
# edges incident to its nodes, oriented to the digraph direction.
# TODO(synk): networkx shortest_path + python-set ordering is host-side glue.
PATH_EDGES = [(0, 1, 0), (0, 4, 1), (7, 0, 3), (3, 4, 3), (4, 5, 0), (5, 6, 1)]
P_TOTAL = len(PATH_EDGES)

SRC, TAR = PAIR[1], PAIR[0]                    # rev=True in the original forward

# Padded (edges | path) row count: keeps every sublane slice 8-aligned and
# makes the edge/path gather a single [EP_PAD, 2S] x [2S, d] MXU op. Padding
# rows are all-zero and masked with NEG_INF in both attention softmaxes.
EP_PAD = 32
assert E_TOTAL + P_TOTAL <= EP_PAD

# Consolidated graph-constant blob (ONE operand instead of 9 tiny ones):
#   rows [0, EP_PAD)            : source/target one-hot selection, cols [0, 2S)
#   rows [EP_PAD, 2*EP_PAD)     : relation one-hot selection,      cols [0, R)
#   rows [2*EP_PAD, 2*EP_PAD+S) : per-token segment mask bias      [S, EP_PAD]
#   row   2*EP_PAD + S          : path mask bias                   [1, EP_PAD]
GC_SEL_UV = 0
GC_SEL_R = EP_PAD
GC_MASK_TOK = 2 * EP_PAD
GC_MASK_PATH = 2 * EP_PAD + S
GC_ROWS = GC_MASK_PATH + 1


def _build_graph_const():
    gc = np.zeros((GC_ROWS, EP_PAD), np.float32)
    for j, (u, v, r) in enumerate(NODE_EDGES + PATH_EDGES):
        gc[GC_SEL_UV + j, u] = 1.0           # picks hid[u] @ w_s
        gc[GC_SEL_UV + j, S + v] = 1.0       # picks hid[v] @ w_t
        gc[GC_SEL_R + j, r] = 1.0            # picks rel[r] @ w_r
    gc[GC_MASK_TOK:GC_MASK_TOK + S, :] = NEG_INF
    for t in range(S):
        gc[GC_MASK_TOK + t, SEG_START[t]:SEG_START[t] + NODE_LEN[t]] = 0.0
    gc[GC_MASK_PATH, :] = NEG_INF
    gc[GC_MASK_PATH, E_TOTAL:E_TOTAL + P_TOTAL] = 0.0
    return jnp.asarray(gc)


GRAPH_CONST = _build_graph_const()

# Per-layer [d, d] weight blocks packed into one [N_LAYERS, 13*d, d] slab.
(W_S, W_R, W_T, W_Q, W_K, W_V, W_PK, W_PV,
 W_QPA, W_QPB, W_O, W_AGA, W_AGB) = range(13)
N_WBLK = 13
N_BROWS = 3 + 5 * N_LAYERS   # init_b, ln_g, ln_b, then per layer: link,q,k,v,out


# ----------------------------- fused Pallas kernel --------------------------
def _fused_transformer_kernel(embs_ref, rel_ref, gc_ref, init_wt_ref,
                              w_ref, b_ref, o_ref):
    f32 = jnp.float32
    d = D_MODEL

    def mm(a, b):                        # a @ b           (MXU, f32 accumulate)
        return jnp.dot(a, b, preferred_element_type=f32)

    def mm_t(a, b):                      # a @ b.T without materializing b.T
        return lax.dot_general(a, b, (((1,), (1,)), ((), ())),
                               preferred_element_type=f32)

    # -- consolidated constants (static, 8-aligned sublane slices of one ref) --
    sel_uv = gc_ref[GC_SEL_UV:GC_SEL_UV + EP_PAD, 0:2 * S]       # [EP, 2S]
    sel_r = gc_ref[GC_SEL_R:GC_SEL_R + EP_PAD, 0:NUM_REL]        # [EP, R]
    mask_tok = gc_ref[GC_MASK_TOK:GC_MASK_TOK + S, :]            # [S, EP]
    mask_path = gc_ref[GC_MASK_PATH:GC_MASK_PATH + 1, :]         # [1, EP]

    init_b = b_ref[0:1, :]
    ln_g = b_ref[1:2, :]
    ln_b = b_ref[2:3, :]

    # hid_init_linear: [S, demb] -> [S, d]
    hid = mm(embs_ref[...], init_wt_ref[...]) + init_b
    hid_res = hid

    # layer-invariant: per (edge|path) relation embedding gather (one-hot MXU)
    g_rel = mm(sel_r, rel_ref[...])                              # [EP, d]

    # static-row blend masks for the pair endpoints (SRC/TAR are constants)
    row_ids = lax.broadcasted_iota(jnp.int32, (S, 1), 0)
    is_src = (row_ids == SRC).astype(f32)                        # [S, 1]
    is_tar = (row_ids == TAR).astype(f32)                        # [S, 1]

    # TODO(synk): at production dims (d=1024, 12 layers) convert this unrolled
    # loop into a grid axis (index_map lambda l: (l, 0, 0), 'arbitrary') so the
    # per-layer weight slab is streamed/double-buffered instead of VMEM-resident,
    # and cast MXU inputs to bf16; irrelevant at d=32.
    for l in range(N_LAYERS):
        wl = w_ref[l]                                            # [13*d, d]

        def W(i, wl=wl):                 # static 8-aligned block slice
            return wl[i * d:(i + 1) * d, :]

        bb = 3 + 5 * l
        link_b = b_ref[bb:bb + 1, :]
        q_b = b_ref[bb + 1:bb + 2, :]     # pre-scaled by 1/sqrt(d)
        k_b = b_ref[bb + 2:bb + 3, :]
        v_b = b_ref[bb + 3:bb + 4, :]
        out_b = b_ref[bb + 4:bb + 5, :]

        # ---- create_links / create_path + link_rel_layer, merged -----------
        # cat(hid[u], rel[r], hid[v]) @ link_W^T + b for ALL edge & path rows
        # at once: project hid with the src/tgt blocks, then one one-hot
        # selection matmul gathers & sums the triplet contributions.
        hs = mm(hid, W(W_S))                                     # [S, d]
        ht = mm(hid, W(W_T))                                     # [S, d]
        base = jnp.concatenate([hs, ht], axis=0)                 # [2S, d]
        combined = mm(sel_uv, base) + mm(g_rel, W(W_R)) + link_b  # [EP, d]
        # TODO(synk): original create_links returns only the LAST node's edges
        # as k/v (inconsistent with its own start:start+len slicing); the full
        # concatenated edge set is used so segmented attention is well-defined.

        # ---- q/k/v projections (separate lane-aligned outputs) -------------
        k_all = mm(combined, W(W_K)) + k_b                       # [EP, d]
        v_all = mm(combined, W(W_V)) + v_b                       # [EP, d]
        pk_all = mm(combined, W(W_PK))                           # [EP, d]
        pv_all = mm(combined, W(W_PV))                           # [EP, d]
        q = mm(hid, W(W_Q)) + q_b          # 1/sqrt(d) folded into W_Q / q_b

        pair_q = (mm(hid[SRC:SRC + 1, :], W(W_QPA))
                  + mm(hid[TAR:TAR + 1, :], W(W_QPB)))           # [1, d]

        # ---- per-token attention over each node's own edge segment ---------
        logits = mm_t(q, k_all) + mask_tok                       # [S, EP]
        m = jnp.max(logits, axis=-1, keepdims=True)
        e = jnp.exp(logits - m)
        att = e / jnp.sum(e, axis=-1, keepdims=True)
        new_hid = mm(mm(att, v_all), W(W_O)) + out_b             # [S, d]
        # TODO(synk): nn.Dropout treated as identity (eval-mode semantics).

        # ---- pair/path attention (mask selects the path rows) --------------
        p_logits = mm_t(pair_q, pk_all) + mask_path              # [1, EP]
        pm = jnp.max(p_logits, axis=-1, keepdims=True)
        pe = jnp.exp(p_logits - pm)
        p_att = pe / jnp.sum(pe, axis=-1, keepdims=True)
        path_feature = mm(mm(p_att, pv_all), W(W_O)) + out_b     # [1, d]

        # ---- path_agg for the pair endpoints (rev=True) --------------------
        src_row = (mm(new_hid[SRC:SRC + 1, :], W(W_AGA))
                   + mm(path_feature, W(W_AGB)))                 # [1, d]
        tar_row = (mm(path_feature, W(W_AGA))
                   + mm(new_hid[TAR:TAR + 1, :], W(W_AGB)))      # [1, d]
        returned = (new_hid * (1.0 - is_src - is_tar)
                    + is_src * src_row + is_tar * tar_row)       # [S, d]

        # ---- residual + LayerNorm(eps=1e-12), params shared across layers --
        y = returned + hid_res
        mu = jnp.mean(y, axis=-1, keepdims=True)
        yc = y - mu
        var = jnp.mean(yc * yc, axis=-1, keepdims=True)
        hid = yc * lax.rsqrt(var + EPS) * ln_g + ln_b
        hid_res = hid
        # TODO(synk): attention_holder side-effect of the original omitted.

    o_ref[...] = hid


_VMEM = pl.BlockSpec(memory_space=pltpu.MemorySpace.VMEM)


def transformer_module_forward(params, embs, rel_table):
    """TransformerModule.forward as a single fused pallas_call (6 operands)."""
    # TODO(synk): to batch over multiple graph instances, add a leading batch
    # grid axis with dimension_semantics=('parallel',) and per-instance masks.
    return pl.pallas_call(
        _fused_transformer_kernel,
        out_shape=jax.ShapeDtypeStruct((S, D_MODEL), jnp.float32),
        in_specs=[_VMEM] * 6,
        out_specs=_VMEM,
    )(embs, rel_table, GRAPH_CONST,
      params["init_Wt"], params["W"], params["B"])


# ----------------------------- parameter init -------------------------------
def _xavier_t(key, fan_in, fan_out):
    # nn.Linear weight W is [out, in]; store W^T = [in, out] (pre-transposed).
    bound = math.sqrt(6.0 / (fan_in + fan_out))
    return jax.random.uniform(key, (fan_in, fan_out), jnp.float32, -bound, bound)


def _bias(key, dout, fan_in):
    b = 1.0 / math.sqrt(fan_in)
    return jax.random.uniform(key, (1, dout), jnp.float32, -b, b)


def init_params(key):
    """Weights pre-transposed ([in, out]); per-layer [d, d] blocks packed into
    one [N_LAYERS, 13*d, d] slab; all [1, d] biases / LN params packed into one
    [3 + 5*N_LAYERS, d] slab; 1/sqrt(d) attention scale folded into q / pair-q
    weights and bias."""
    d, de = D_MODEL, D_EMB
    scale = 1.0 / math.sqrt(float(d))
    keys = jax.random.split(key, 3 + N_LAYERS)

    init_Wt = _xavier_t(keys[0], de, d)
    bias_rows = [_bias(keys[1], d, de),              # init_b
                 jnp.ones((1, d), jnp.float32),      # ln_g (shared LayerNorm)
                 jnp.zeros((1, d), jnp.float32)]     # ln_b

    w_layers = []
    for i in range(N_LAYERS):
        lk = jax.random.split(keys[3 + i], 14)
        link_Wt = _xavier_t(lk[0], 3 * d, d)                   # [3d, d]
        qpair_Wt = _xavier_t(lk[1], 2 * d, d) * scale          # [2d, d] scaled
        agg_Wt = _xavier_t(lk[2], 2 * d, d)                    # [2d, d]
        blocks = [
            link_Wt[0:d], link_Wt[d:2 * d], link_Wt[2 * d:3 * d],  # w_s w_r w_t
            _xavier_t(lk[3], d, d) * scale,                        # q (scaled)
            _xavier_t(lk[4], d, d),                                # k
            _xavier_t(lk[5], d, d),                                # v
            _xavier_t(lk[6], d, d),                                # path_k
            _xavier_t(lk[7], d, d),                                # path_v
            qpair_Wt[0:d], qpair_Wt[d:2 * d],                      # qp_a  qp_b
            _xavier_t(lk[8], d, d),                                # out
            agg_Wt[0:d], agg_Wt[d:2 * d],                          # agg_a agg_b
        ]
        w_layers.append(jnp.concatenate(blocks, axis=0))           # [13*d, d]
        bias_rows += [
            _bias(lk[9], d, 3 * d),                # link_b
            _bias(lk[10], d, d) * scale,           # q_b (scaled)
            _bias(lk[11], d, d),                   # k_b
            _bias(lk[12], d, d),                   # v_b
            _bias(lk[13], d, d),                   # out_b
        ]

    return {
        "init_Wt": init_Wt,
        "W": jnp.stack(w_layers),                  # [N_LAYERS, 13*d, d]
        "B": jnp.concatenate(bias_rows, axis=0),   # [3 + 5*N_LAYERS, d]
    }


# --------------------------------- main -------------------------------------
if __name__ == "__main__":
    root = jax.random.PRNGKey(0)
    k_param, k_emb, k_rel = jax.random.split(root, 3)

    params = init_params(k_param)
    embs = jax.random.normal(k_emb, (S, D_EMB), jnp.float32)          # input
    rel_table = jax.random.normal(k_rel, (NUM_REL, D_MODEL), jnp.float32)

    fwd = jax.jit(transformer_module_forward)
    out = jax.block_until_ready(fwd(params, embs, rel_table))

    assert out.shape == (S, D_MODEL) and out.dtype == jnp.float32
    assert bool(jnp.all(jnp.isfinite(out)))
    print("KERNEL_OK")
</pallas_src>

<mosaic_0001>
module attributes {stable_mosaic.version = 11 : i64} {
  func.func @_fused_transformer_kernel(%arg0: memref<8x32xf32, #tpu.memory_space<vmem>>, %arg1: memref<4x32xf32, #tpu.memory_space<vmem>>, %arg2: memref<73x32xf32, #tpu.memory_space<vmem>>, %arg3: memref<32x32xf32, #tpu.memory_space<vmem>>, %arg4: memref<2x416x32xf32, #tpu.memory_space<vmem>>, %arg5: memref<13x32xf32, #tpu.memory_space<vmem>>, %arg6: memref<8x32xf32, #tpu.memory_space<vmem>>) attributes {dimension_semantics = [], scalar_prefetch = 0 : i64, scratch_operands = 0 : i64, tpu.core_type = #tpu.core_type<tc>} {
    %c0 = arith.constant 0 : index
    %c0_0 = arith.constant 0 : index
    %0 = vector.load %arg2[%c0, %c0_0] : memref<73x32xf32, #tpu.memory_space<vmem>>, vector<32x16xf32>
    %c32 = arith.constant 32 : index
    %c0_1 = arith.constant 0 : index
    %1 = vector.load %arg2[%c32, %c0_1] : memref<73x32xf32, #tpu.memory_space<vmem>>, vector<32x4xf32>
    %c64 = arith.constant 64 : index
    %c0_2 = arith.constant 0 : index
    %2 = vector.load %arg2[%c64, %c0_2] : memref<73x32xf32, #tpu.memory_space<vmem>>, vector<8x32xf32>
    %c72 = arith.constant 72 : index
    %c0_3 = arith.constant 0 : index
    %3 = vector.load %arg2[%c72, %c0_3] : memref<73x32xf32, #tpu.memory_space<vmem>>, vector<1x32xf32>
    %c0_4 = arith.constant 0 : index
    %c0_5 = arith.constant 0 : index
    %4 = vector.load %arg5[%c0_4, %c0_5] : memref<13x32xf32, #tpu.memory_space<vmem>>, vector<1x32xf32>
    %c1 = arith.constant 1 : index
    %c0_6 = arith.constant 0 : index
    %5 = vector.load %arg5[%c1, %c0_6] : memref<13x32xf32, #tpu.memory_space<vmem>>, vector<1x32xf32>
    %c2 = arith.constant 2 : index
    %c0_7 = arith.constant 0 : index
    %6 = vector.load %arg5[%c2, %c0_7] : memref<13x32xf32, #tpu.memory_space<vmem>>, vector<1x32xf32>
    %c0_8 = arith.constant 0 : index
    %c0_9 = arith.constant 0 : index
    %7 = vector.load %arg0[%c0_8, %c0_9] : memref<8x32xf32, #tpu.memory_space<vmem>>, vector<8x32xf32>
    %c0_10 = arith.constant 0 : index
    %c0_11 = arith.constant 0 : index
    %8 = vector.load %arg3[%c0_10, %c0_11] : memref<32x32xf32, #tpu.memory_space<vmem>>, vector<32x32xf32>
    %cst = arith.constant dense<0.000000e+00> : vector<8x32xf32>
    %9 = tpu.matmul %7, %8, %cst {dimension_numbers = #tpu.dot_dimension_numbers<[1], [0], [0], [1], [0, 0, 1, 1], [], []>} : vector<8x32xf32>, vector<32x32xf32>, vector<8x32xf32> -> vector<8x32xf32>
    %10 = vector.broadcast %4 : vector<1x32xf32> to vector<8x32xf32>
    %11 = arith.addf %9, %10 : vector<8x32xf32>
    %c0_12 = arith.constant 0 : index
    %c0_13 = arith.constant 0 : index
    %12 = vector.load %arg1[%c0_12, %c0_13] : memref<4x32xf32, #tpu.memory_space<vmem>>, vector<4x32xf32>
    %cst_14 = arith.constant dense<0.000000e+00> : vector<32x32xf32>
    %13 = tpu.matmul %1, %12, %cst_14 {dimension_numbers = #tpu.dot_dimension_numbers<[1], [0], [0], [1], [0, 0, 1, 1], [], []>} : vector<32x4xf32>, vector<4x32xf32>, vector<32x32xf32> -> vector<32x32xf32>
    %14 = tpu.iota {dimensions = array<i32: 0>} : vector<8x1xi32>
    %c5_i32 = arith.constant 5 : i32
    %15 = vector.broadcast %c5_i32 : i32 to vector<8x1xi32>
    %16 = arith.cmpi eq, %14, %15 : vector<8x1xi32>
    %17 = arith.extui %16 : vector<8x1xi1> to vector<8x1xi32>
    %18 = arith.sitofp %17 : vector<8x1xi32> to vector<8x1xf32>
    %c0_i32 = arith.constant 0 : i32
    %19 = vector.broadcast %c0_i32 : i32 to vector<8x1xi32>
    %20 = arith.cmpi eq, %14, %19 : vector<8x1xi32>
    %21 = arith.extui %20 : vector<8x1xi1> to vector<8x1xi32>
    %22 = arith.sitofp %21 : vector<8x1xi32> to vector<8x1xf32>
    %c0_15 = arith.constant 0 : index
    %c0_16 = arith.constant 0 : index
    %c0_17 = arith.constant 0 : index
    %23 = vector.load %arg4[%c0_15, %c0_16, %c0_17] : memref<2x416x32xf32, #tpu.memory_space<vmem>>, vector<1x416x32xf32>
    %24 = vector.shape_cast %23 : vector<1x416x32xf32> to vector<416x32xf32>
    %c3 = arith.constant 3 : index
    %c0_18 = arith.constant 0 : index
    %25 = vector.load %arg5[%c3, %c0_18] : memref<13x32xf32, #tpu.memory_space<vmem>>, vector<1x32xf32>
    %c4 = arith.constant 4 : index
    %c0_19 = arith.constant 0 : index
    %26 = vector.load %arg5[%c4, %c0_19] : memref<13x32xf32, #tpu.memory_space<vmem>>, vector<1x32xf32>
    %c5 = arith.constant 5 : index
    %c0_20 = arith.constant 0 : index
    %27 = vector.load %arg5[%c5, %c0_20] : memref<13x32xf32, #tpu.memory_space<vmem>>, vector<1x32xf32>
    %c6 = arith.constant 6 : index
    %c0_21 = arith.constant 0 : index
    %28 = vector.load %arg5[%c6, %c0_21] : memref<13x32xf32, #tpu.memory_space<vmem>>, vector<1x32xf32>
    %c7 = arith.constant 7 : index
    %c0_22 = arith.constant 0 : index
    %29 = vector.load %arg5[%c7, %c0_22] : memref<13x32xf32, #tpu.memory_space<vmem>>, vector<1x32xf32>
    %30 = vector.extract_strided_slice %24 {offsets = [0, 0], sizes = [32, 32], strides = [1, 1]} : vector<416x32xf32> to vector<32x32xf32>
    %cst_23 = arith.constant dense<0.000000e+00> : vector<8x32xf32>
    %31 = tpu.matmul %11, %30, %cst_23 {dimension_numbers = #tpu.dot_dimension_numbers<[1], [0], [0], [1], [0, 0, 1, 1], [], []>} : vector<8x32xf32>, vector<32x32xf32>, vector<8x32xf32> -> vector<8x32xf32>
    %32 = vector.extract_strided_slice %24 {offsets = [64, 0], sizes = [32, 32], strides = [1, 1]} : vector<416x32xf32> to vector<32x32xf32>
    %cst_24 = arith.constant dense<0.000000e+00> : vector<8x32xf32>
    %33 = tpu.matmul %11, %32, %cst_24 {dimension_numbers = #tpu.dot_dimension_numbers<[1], [0], [0], [1], [0, 0, 1, 1], [], []>} : vector<8x32xf32>, vector<32x32xf32>, vector<8x32xf32> -> vector<8x32xf32>
    %34 = tpu.concatenate %31, %33 in 0 : vector<8x32xf32>, vector<8x32xf32> -> vector<16x32xf32>
    %cst_25 = arith.constant dense<0.000000e+00> : vector<32x32xf32>
    %35 = tpu.matmul %0, %34, %cst_25 {dimension_numbers = #tpu.dot_dimension_numbers<[1], [0], [0], [1], [0, 0, 1, 1], [], []>} : vector<32x16xf32>, vector<16x32xf32>, vector<32x32xf32> -> vector<32x32xf32>
    %36 = vector.extract_strided_slice %24 {offsets = [32, 0], sizes = [32, 32], strides = [1, 1]} : vector<416x32xf32> to vector<32x32xf32>
    %cst_26 = arith.constant dense<0.000000e+00> : vector<32x32xf32>
    %37 = tpu.matmul %13, %36, %cst_26 {dimension_numbers = #tpu.dot_dimension_numbers<[1], [0], [0], [1], [0, 0, 1, 1], [], []>} : vector<32x32xf32>, vector<32x32xf32>, vector<32x32xf32> -> vector<32x32xf32>
    %38 = arith.addf %35, %37 : vector<32x32xf32>
    %39 = vector.broadcast %25 : vector<1x32xf32> to vector<32x32xf32>
    %40 = arith.addf %38, %39 : vector<32x32xf32>
    %41 = vector.extract_strided_slice %24 {offsets = [128, 0], sizes = [32, 32], strides = [1, 1]} : vector<416x32xf32> to vector<32x32xf32>
    %cst_27 = arith.constant dense<0.000000e+00> : vector<32x32xf32>
    %42 = tpu.matmul %40, %41, %cst_27 {dimension_numbers = #tpu.dot_dimension_numbers<[1], [0], [0], [1], [0, 0, 1, 1], [], []>} : vector<32x32xf32>, vector<32x32xf32>, vector<32x32xf32> -> vector<32x32xf32>
    %43 = vector.broadcast %27 : vector<1x32xf32> to vector<32x32xf32>
    %44 = arith.addf %42, %43 : vector<32x32xf32>
    %45 = vector.extract_strided_slice %24 {offsets = [160, 0], sizes = [32, 32], strides = [1, 1]} : vector<416x32xf32> to vector<32x32xf32>
    %cst_28 = arith.constant dense<0.000000e+00> : vector<32x32xf32>
    %46 = tpu.matmul %40, %45, %cst_28 {dimension_numbers = #tpu.dot_dimension_numbers<[1], [0], [0], [1], [0, 0, 1, 1], [], []>} : vector<32x32xf32>, vector<32x32xf32>, vector<32x32xf32> -> vector<32x32xf32>
    %47 = vector.broadcast %28 : vector<1x32xf32> to vector<32x32xf32>
    %48 = arith.addf %46, %47 : vector<32x32xf32>
    %49 = vector.extract_strided_slice %24 {offsets = [192, 0], sizes = [32, 32], strides = [1, 1]} : vector<416x32xf32> to vector<32x32xf32>
    %cst_29 = arith.constant dense<0.000000e+00> : vector<32x32xf32>
    %50 = tpu.matmul %40, %49, %cst_29 {dimension_numbers = #tpu.dot_dimension_numbers<[1], [0], [0], [1], [0, 0, 1, 1], [], []>} : vector<32x32xf32>, vector<32x32xf32>, vector<32x32xf32> -> vector<32x32xf32>
    %51 = vector.extract_strided_slice %24 {offsets = [224, 0], sizes = [32, 32], strides = [1, 1]} : vector<416x32xf32> to vector<32x32xf32>
    %cst_30 = arith.constant dense<0.000000e+00> : vector<32x32xf32>
    %52 = tpu.matmul %40, %51, %cst_30 {dimension_numbers = #tpu.dot_dimension_numbers<[1], [0], [0], [1], [0, 0, 1, 1], [], []>} : vector<32x32xf32>, vector<32x32xf32>, vector<32x32xf32> -> vector<32x32xf32>
    %53 = vector.extract_strided_slice %24 {offsets = [96, 0], sizes = [32, 32], strides = [1, 1]} : vector<416x32xf32> to vector<32x32xf32>
    %cst_31 = arith.constant dense<0.000000e+00> : vector<8x32xf32>
    %54 = tpu.matmul %11, %53, %cst_31 {dimension_numbers = #tpu.dot_dimension_numbers<[1], [0], [0], [1], [0, 0, 1, 1], [], []>} : vector<8x32xf32>, vector<32x32xf32>, vector<8x32xf32> -> vector<8x32xf32>
    %55 = vector.broadcast %26 : vector<1x32xf32> to vector<8x32xf32>
    %56 = arith.addf %54, %55 : vector<8x32xf32>
    %57 = vector.extract_strided_slice %11 {offsets = [5, 0], sizes = [1, 32], strides = [1, 1]} : vector<8x32xf32> to vector<1x32xf32>
    %58 = vector.extract_strided_slice %24 {offsets = [256, 0], sizes = [32, 32], strides = [1, 1]} : vector<416x32xf32> to vector<32x32xf32>
    %cst_32 = arith.constant dense<0.000000e+00> : vector<1x32xf32>
    %59 = tpu.matmul %57, %58, %cst_32 {dimension_numbers = #tpu.dot_dimension_numbers<[1], [0], [0], [1], [0, 0, 1, 1], [], []>} : vector<1x32xf32>, vector<32x32xf32>, vector<1x32xf32> -> vector<1x32xf32>
    %60 = vector.extract_strided_slice %11 {offsets = [0, 0], sizes = [1, 32], strides = [1, 1]} : vector<8x32xf32> to vector<1x32xf32>
    %61 = vector.extract_strided_slice %24 {offsets = [288, 0], sizes = [32, 32], strides = [1, 1]} : vector<416x32xf32> to vector<32x32xf32>
    %cst_33 = arith.constant dense<0.000000e+00> : vector<1x32xf32>
    %62 = tpu.matmul %60, %61, %cst_33 {dimension_numbers = #tpu.dot_dimension_numbers<[1], [0], [0], [1], [0, 0, 1, 1], [], []>} : vector<1x32xf32>, vector<32x32xf32>, vector<1x32xf32> -> vector<1x32xf32>
    %63 = arith.addf %59, %62 : vector<1x32xf32>
    %cst_34 = arith.constant dense<0.000000e+00> : vector<8x32xf32>
    %64 = tpu.matmul %56, %44, %cst_34 {dimension_numbers = #tpu.dot_dimension_numbers<[1], [1], [0], [0], [0, 0, 1, 0], [], []>} : vector<8x32xf32>, vector<32x32xf32>, vector<8x32xf32> -> vector<8x32xf32>
    %65 = arith.addf %64, %2 : vector<8x32xf32>
    %cst_35 = arith.constant dense<0xFF800000> : vector<8xf32>
    %66 = vector.multi_reduction <maximumf>, %65, %cst_35 [1] : vector<8x32xf32> to vector<8xf32>
    %67 = vector.shape_cast %66 : vector<8xf32> to vector<8x1xf32>
    %68 = vector.broadcast %67 : vector<8x1xf32> to vector<8x32xf32>
    %69 = arith.subf %65, %68 : vector<8x32xf32>
    %70 = math.exp %69 : vector<8x32xf32>
    %cst_36 = arith.constant dense<0.000000e+00> : vector<8xf32>
    %71 = vector.multi_reduction <add>, %70, %cst_36 [1] : vector<8x32xf32> to vector<8xf32>
    %72 = vector.shape_cast %71 : vector<8xf32> to vector<8x1xf32>
    %73 = vector.broadcast %72 : vector<8x1xf32> to vector<8x32xf32>
    %74 = arith.divf %70, %73 : vector<8x32xf32>
    %cst_37 = arith.constant dense<0.000000e+00> : vector<8x32xf32>
    %75 = tpu.matmul %74, %48, %cst_37 {dimension_numbers = #tpu.dot_dimension_numbers<[1], [0], [0], [1], [0, 0, 1, 1], [], []>} : vector<8x32xf32>, vector<32x32xf32>, vector<8x32xf32> -> vector<8x32xf32>
    %76 = vector.extract_strided_slice %24 {offsets = [320, 0], sizes = [32, 32], strides = [1, 1]} : vector<416x32xf32> to vector<32x32xf32>
    %cst_38 = arith.constant dense<0.000000e+00> : vector<8x32xf32>
    %77 = tpu.matmul %75, %76, %cst_38 {dimension_numbers = #tpu.dot_dimension_numbers<[1], [0], [0], [1], [0, 0, 1, 1], [], []>} : vector<8x32xf32>, vector<32x32xf32>, vector<8x32xf32> -> vector<8x32xf32>
    %78 = vector.broadcast %29 : vector<1x32xf32> to vector<8x32xf32>
    %79 = arith.addf %77, %78 : vector<8x32xf32>
    %cst_39 = arith.constant dense<0.000000e+00> : vector<1x32xf32>
    %80 = tpu.matmul %63, %50, %cst_39 {dimension_numbers = #tpu.dot_dimension_numbers<[1], [1], [0], [0], [0, 0, 1, 0], [], []>} : vector<1x32xf32>, vector<32x32xf32>, vector<1x32xf32> -> vector<1x32xf32>
    %81 = arith.addf %80, %3 : vector<1x32xf32>
    %cst_40 = arith.constant dense<0xFF800000> : vector<1xf32>
    %82 = vector.multi_reduction <maximumf>, %81, %cst_40 [1] : vector<1x32xf32> to vector<1xf32>
    %83 = vector.shape_cast %82 : vector<1xf32> to vector<1x1xf32>
    %84 = vector.broadcast %83 : vector<1x1xf32> to vector<1x32xf32>
    %85 = arith.subf %81, %84 : vector<1x32xf32>
    %86 = math.exp %85 : vector<1x32xf32>
    %cst_41 = arith.constant dense<0.000000e+00> : vector<1xf32>
    %87 = vector.multi_reduction <add>, %86, %cst_41 [1] : vector<1x32xf32> to vector<1xf32>
    %88 = vector.shape_cast %87 : vector<1xf32> to vector<1x1xf32>
    %89 = vector.broadcast %88 : vector<1x1xf32> to vector<1x32xf32>
    %90 = arith.divf %86, %89 : vector<1x32xf32>
    %cst_42 = arith.constant dense<0.000000e+00> : vector<1x32xf32>
    %91 = tpu.matmul %90, %52, %cst_42 {dimension_numbers = #tpu.dot_dimension_numbers<[1], [0], [0], [1], [0, 0, 1, 1], [], []>} : vector<1x32xf32>, vector<32x32xf32>, vector<1x32xf32> -> vector<1x32xf32>
    %92 = vector.extract_strided_slice %24 {offsets = [320, 0], sizes = [32, 32], strides = [1, 1]} : vector<416x32xf32> to vector<32x32xf32>
    %cst_43 = arith.constant dense<0.000000e+00> : vector<1x32xf32>
    %93 = tpu.matmul %91, %92, %cst_43 {dimension_numbers = #tpu.dot_dimension_numbers<[1], [0], [0], [1], [0, 0, 1, 1], [], []>} : vector<1x32xf32>, vector<32x32xf32>, vector<1x32xf32> -> vector<1x32xf32>
    %94 = arith.addf %93, %29 : vector<1x32xf32>
    %95 = vector.extract_strided_slice %79 {offsets = [5, 0], sizes = [1, 32], strides = [1, 1]} : vector<8x32xf32> to vector<1x32xf32>
    %96 = vector.extract_strided_slice %24 {offsets = [352, 0], sizes = [32, 32], strides = [1, 1]} : vector<416x32xf32> to vector<32x32xf32>
    %cst_44 = arith.constant dense<0.000000e+00> : vector<1x32xf32>
    %97 = tpu.matmul %95, %96, %cst_44 {dimension_numbers = #tpu.dot_dimension_numbers<[1], [0], [0], [1], [0, 0, 1, 1], [], []>} : vector<1x32xf32>, vector<32x32xf32>, vector<1x32xf32> -> vector<1x32xf32>
    %98 = vector.extract_strided_slice %24 {offsets = [384, 0], sizes = [32, 32], strides = [1, 1]} : vector<416x32xf32> to vector<32x32xf32>
    %cst_45 = arith.constant dense<0.000000e+00> : vector<1x32xf32>
    %99 = tpu.matmul %94, %98, %cst_45 {dimension_numbers = #tpu.dot_dimension_numbers<[1], [0], [0], [1], [0, 0, 1, 1], [], []>} : vector<1x32xf32>, vector<32x32xf32>, vector<1x32xf32> -> vector<1x32xf32>
    %100 = arith.addf %97, %99 : vector<1x32xf32>
    %101 = vector.extract_strided_slice %24 {offsets = [352, 0], sizes = [32, 32], strides = [1, 1]} : vector<416x32xf32> to vector<32x32xf32>
    %cst_46 = arith.constant dense<0.000000e+00> : vector<1x32xf32>
    %102 = tpu.matmul %94, %101, %cst_46 {dimension_numbers = #tpu.dot_dimension_numbers<[1], [0], [0], [1], [0, 0, 1, 1], [], []>} : vector<1x32xf32>, vector<32x32xf32>, vector<1x32xf32> -> vector<1x32xf32>
    %103 = vector.extract_strided_slice %79 {offsets = [0, 0], sizes = [1, 32], strides = [1, 1]} : vector<8x32xf32> to vector<1x32xf32>
    %104 = vector.extract_strided_slice %24 {offsets = [384, 0], sizes = [32, 32], strides = [1, 1]} : vector<416x32xf32> to vector<32x32xf32>
    %cst_47 = arith.constant dense<0.000000e+00> : vector<1x32xf32>
    %105 = tpu.matmul %103, %104, %cst_47 {dimension_numbers = #tpu.dot_dimension_numbers<[1], [0], [0], [1], [0, 0, 1, 1], [], []>} : vector<1x32xf32>, vector<32x32xf32>, vector<1x32xf32> -> vector<1x32xf32>
    %106 = arith.addf %102, %105 : vector<1x32xf32>
    %cst_48 = arith.constant 1.000000e+00 : f32
    %107 = vector.broadcast %cst_48 : f32 to vector<8x1xf32>
    %108 = arith.subf %107, %18 : vector<8x1xf32>
    %109 = arith.subf %108, %22 : vector<8x1xf32>
    %110 = vector.broadcast %109 : vector<8x1xf32> to vector<8x32xf32>
    %111 = arith.mulf %79, %110 : vector<8x32xf32>
    %112 = vector.broadcast %18 : vector<8x1xf32> to vector<8x32xf32>
    %113 = vector.broadcast %100 : vector<1x32xf32> to vector<8x32xf32>
    %114 = arith.mulf %112, %113 : vector<8x32xf32>
    %115 = arith.addf %111, %114 : vector<8x32xf32>
    %116 = vector.broadcast %22 : vector<8x1xf32> to vector<8x32xf32>
    %117 = vector.broadcast %106 : vector<1x32xf32> to vector<8x32xf32>
    %118 = arith.mulf %116, %117 : vector<8x32xf32>
    %119 = arith.addf %115, %118 : vector<8x32xf32>
    %120 = arith.addf %119, %11 : vector<8x32xf32>
    %cst_49 = arith.constant dense<0.000000e+00> : vector<8xf32>
    %121 = vector.multi_reduction <add>, %120, %cst_49 [1] : vector<8x32xf32> to vector<8xf32>
    %122 = vector.shape_cast %121 : vector<8xf32> to vector<8x1xf32>
    %cst_50 = arith.constant 3.200000e+01 : f32
    %123 = vector.broadcast %cst_50 : f32 to vector<8x1xf32>
    %124 = arith.divf %122, %123 : vector<8x1xf32>
    %125 = vector.broadcast %124 : vector<8x1xf32> to vector<8x32xf32>
    %126 = arith.subf %120, %125 : vector<8x32xf32>
    %127 = arith.mulf %126, %126 : vector<8x32xf32>
    %cst_51 = arith.constant dense<0.000000e+00> : vector<8xf32>
    %128 = vector.multi_reduction <add>, %127, %cst_51 [1] : vector<8x32xf32> to vector<8xf32>
    %129 = vector.shape_cast %128 : vector<8xf32> to vector<8x1xf32>
    %cst_52 = arith.constant 3.200000e+01 : f32
    %130 = vector.broadcast %cst_52 : f32 to vector<8x1xf32>
    %131 = arith.divf %129, %130 : vector<8x1xf32>
    %cst_53 = arith.constant 9.99999996E-13 : f32
    %132 = vector.broadcast %cst_53 : f32 to vector<8x1xf32>
    %133 = arith.addf %131, %132 : vector<8x1xf32>
    %134 = math.rsqrt %133 : vector<8x1xf32>
    %135 = vector.broadcast %134 : vector<8x1xf32> to vector<8x32xf32>
    %136 = arith.mulf %126, %135 : vector<8x32xf32>
    %137 = vector.broadcast %5 : vector<1x32xf32> to vector<8x32xf32>
    %138 = arith.mulf %136, %137 : vector<8x32xf32>
    %139 = vector.broadcast %6 : vector<1x32xf32> to vector<8x32xf32>
    %140 = arith.addf %138, %139 : vector<8x32xf32>
    %c1_54 = arith.constant 1 : index
    %c0_55 = arith.constant 0 : index
    %c0_56 = arith.constant 0 : index
    %141 = vector.load %arg4[%c1_54, %c0_55, %c0_56] : memref<2x416x32xf32, #tpu.memory_space<vmem>>, vector<1x416x32xf32>
    %142 = vector.shape_cast %141 : vector<1x416x32xf32> to vector<416x32xf32>
    %c8 = arith.constant 8 : index
    %c0_57 = arith.constant 0 : index
    %143 = vector.load %arg5[%c8, %c0_57] : memref<13x32xf32, #tpu.memory_space<vmem>>, vector<1x32xf32>
    %c9 = arith.constant 9 : index
    %c0_58 = arith.constant 0 : index
    %144 = vector.load %arg5[%c9, %c0_58] : memref<13x32xf32, #tpu.memory_space<vmem>>, vector<1x32xf32>
    %c10 = arith.constant 10 : index
    %c0_59 = arith.constant 0 : index
    %145 = vector.load %arg5[%c10, %c0_59] : memref<13x32xf32, #tpu.memory_space<vmem>>, vector<1x32xf32>
    %c11 = arith.constant 11 : index
    %c0_60 = arith.constant 0 : index
    %146 = vector.load %arg5[%c11, %c0_60] : memref<13x32xf32, #tpu.memory_space<vmem>>, vector<1x32xf32>
    %c12 = arith.constant 12 : index
    %c0_61 = arith.constant 0 : index
    %147 = vector.load %arg5[%c12, %c0_61] : memref<13x32xf32, #tpu.memory_space<vmem>>, vector<1x32xf32>
    %148 = vector.extract_strided_slice %142 {offsets = [0, 0], sizes = [32, 32], strides = [1, 1]} : vector<416x32xf32> to vector<32x32xf32>
    %cst_62 = arith.constant dense<0.000000e+00> : vector<8x32xf32>
    %149 = tpu.matmul %140, %148, %cst_62 {dimension_numbers = #tpu.dot_dimension_numbers<[1], [0], [0], [1], [0, 0, 1, 1], [], []>} : vector<8x32xf32>, vector<32x32xf32>, vector<8x32xf32> -> vector<8x32xf32>
    %150 = vector.extract_strided_slice %142 {offsets = [64, 0], sizes = [32, 32], strides = [1, 1]} : vector<416x32xf32> to vector<32x32xf32>
    %cst_63 = arith.constant dense<0.000000e+00> : vector<8x32xf32>
    %151 = tpu.matmul %140, %150, %cst_63 {dimension_numbers = #tpu.dot_dimension_numbers<[1], [0], [0], [1], [0, 0, 1, 1], [], []>} : vector<8x32xf32>, vector<32x32xf32>, vector<8x32xf32> -> vector<8x32xf32>
    %152 = tpu.concatenate %149, %151 in 0 : vector<8x32xf32>, vector<8x32xf32> -> vector<16x32xf32>
    %cst_64 = arith.constant dense<0.000000e+00> : vector<32x32xf32>
    %153 = tpu.matmul %0, %152, %cst_64 {dimension_numbers = #tpu.dot_dimension_numbers<[1], [0], [0], [1], [0, 0, 1, 1], [], []>} : vector<32x16xf32>, vector<16x32xf32>, vector<32x32xf32> -> vector<32x32xf32>
    %154 = vector.extract_strided_slice %142 {offsets = [32, 0], sizes = [32, 32], strides = [1, 1]} : vector<416x32xf32> to vector<32x32xf32>
    %cst_65 = arith.constant dense<0.000000e+00> : vector<32x32xf32>
    %155 = tpu.matmul %13, %154, %cst_65 {dimension_numbers = #tpu.dot_dimension_numbers<[1], [0], [0], [1], [0, 0, 1, 1], [], []>} : vector<32x32xf32>, vector<32x32xf32>, vector<32x32xf32> -> vector<32x32xf32>
    %156 = arith.addf %153, %155 : vector<32x32xf32>
    %157 = vector.broadcast %143 : vector<1x32xf32> to vector<32x32xf32>
    %158 = arith.addf %156, %157 : vector<32x32xf32>
    %159 = vector.extract_strided_slice %142 {offsets = [128, 0], sizes = [32, 32], strides = [1, 1]} : vector<416x32xf32> to vector<32x32xf32>
    %cst_66 = arith.constant dense<0.000000e+00> : vector<32x32xf32>
    %160 = tpu.matmul %158, %159, %cst_66 {dimension_numbers = #tpu.dot_dimension_numbers<[1], [0], [0], [1], [0, 0, 1, 1], [], []>} : vector<32x32xf32>, vector<32x32xf32>, vector<32x32xf32> -> vector<32x32xf32>
    %161 = vector.broadcast %145 : vector<1x32xf32> to vector<32x32xf32>
    %162 = arith.addf %160, %161 : vector<32x32xf32>
    %163 = vector.extract_strided_slice %142 {offsets = [160, 0], sizes = [32, 32], strides = [1, 1]} : vector<416x32xf32> to vector<32x32xf32>
    %cst_67 = arith.constant dense<0.000000e+00> : vector<32x32xf32>
    %164 = tpu.matmul %158, %163, %cst_67 {dimension_numbers = #tpu.dot_dimension_numbers<[1], [0], [0], [1], [0, 0, 1, 1], [], []>} : vector<32x32xf32>, vector<32x32xf32>, vector<32x32xf32> -> vector<32x32xf32>
    %165 = vector.broadcast %146 : vector<1x32xf32> to vector<32x32xf32>
    %166 = arith.addf %164, %165 : vector<32x32xf32>
    %167 = vector.extract_strided_slice %142 {offsets = [192, 0], sizes = [32, 32], strides = [1, 1]} : vector<416x32xf32> to vector<32x32xf32>
    %cst_68 = arith.constant dense<0.000000e+00> : vector<32x32xf32>
    %168 = tpu.matmul %158, %167, %cst_68 {dimension_numbers = #tpu.dot_dimension_numbers<[1], [0], [0], [1], [0, 0, 1, 1], [], []>} : vector<32x32xf32>, vector<32x32xf32>, vector<32x32xf32> -> vector<32x32xf32>
    %169 = vector.extract_strided_slice %142 {offsets = [224, 0], sizes = [32, 32], strides = [1, 1]} : vector<416x32xf32> to vector<32x32xf32>
    %cst_69 = arith.constant dense<0.000000e+00> : vector<32x32xf32>
    %170 = tpu.matmul %158, %169, %cst_69 {dimension_numbers = #tpu.dot_dimension_numbers<[1], [0], [0], [1], [0, 0, 1, 1], [], []>} : vector<32x32xf32>, vector<32x32xf32>, vector<32x32xf32> -> vector<32x32xf32>
    %171 = vector.extract_strided_slice %142 {offsets = [96, 0], sizes = [32, 32], strides = [1, 1]} : vector<416x32xf32> to vector<32x32xf32>
    %cst_70 = arith.constant dense<0.000000e+00> : vector<8x32xf32>
    %172 = tpu.matmul %140, %171, %cst_70 {dimension_numbers = #tpu.dot_dimension_numbers<[1], [0], [0], [1], [0, 0, 1, 1], [], []>} : vector<8x32xf32>, vector<32x32xf32>, vector<8x32xf32> -> vector<8x32xf32>
    %173 = vector.broadcast %144 : vector<1x32xf32> to vector<8x32xf32>
    %174 = arith.addf %172, %173 : vector<8x32xf32>
    %175 = vector.extract_strided_slice %140 {offsets = [5, 0], sizes = [1, 32], strides = [1, 1]} : vector<8x32xf32> to vector<1x32xf32>
    %176 = vector.extract_strided_slice %142 {offsets = [256, 0], sizes = [32, 32], strides = [1, 1]} : vector<416x32xf32> to vector<32x32xf32>
    %cst_71 = arith.constant dense<0.000000e+00> : vector<1x32xf32>
    %177 = tpu.matmul %175, %176, %cst_71 {dimension_numbers = #tpu.dot_dimension_numbers<[1], [0], [0], [1], [0, 0, 1, 1], [], []>} : vector<1x32xf32>, vector<32x32xf32>, vector<1x32xf32> -> vector<1x32xf32>
    %178 = vector.extract_strided_slice %140 {offsets = [0, 0], sizes = [1, 32], strides = [1, 1]} : vector<8x32xf32> to vector<1x32xf32>
    %179 = vector.extract_strided_slice %142 {offsets = [288, 0], sizes = [32, 32], strides = [1, 1]} : vector<416x32xf32> to vector<32x32xf32>
    %cst_72 = arith.constant dense<0.000000e+00> : vector<1x32xf32>
    %180 = tpu.matmul %178, %179, %cst_72 {dimension_numbers = #tpu.dot_dimension_numbers<[1], [0], [0], [1], [0, 0, 1, 1], [], []>} : vector<1x32xf32>, vector<32x32xf32>, vector<1x32xf32> -> vector<1x32xf32>
    %181 = arith.addf %177, %180 : vector<1x32xf32>
    %cst_73 = arith.constant dense<0.000000e+00> : vector<8x32xf32>
    %182 = tpu.matmul %174, %162, %cst_73 {dimension_numbers = #tpu.dot_dimension_numbers<[1], [1], [0], [0], [0, 0, 1, 0], [], []>} : vector<8x32xf32>, vector<32x32xf32>, vector<8x32xf32> -> vector<8x32xf32>
    %183 = arith.addf %182, %2 : vector<8x32xf32>
    %cst_74 = arith.constant dense<0xFF800000> : vector<8xf32>
    %184 = vector.multi_reduction <maximumf>, %183, %cst_74 [1] : vector<8x32xf32> to vector<8xf32>
    %185 = vector.shape_cast %184 : vector<8xf32> to vector<8x1xf32>
    %186 = vector.broadcast %185 : vector<8x1xf32> to vector<8x32xf32>
    %187 = arith.subf %183, %186 : vector<8x32xf32>
    %188 = math.exp %187 : vector<8x32xf32>
    %cst_75 = arith.constant dense<0.000000e+00> : vector<8xf32>
    %189 = vector.multi_reduction <add>, %188, %cst_75 [1] : vector<8x32xf32> to vector<8xf32>
    %190 = vector.shape_cast %189 : vector<8xf32> to vector<8x1xf32>
    %191 = vector.broadcast %190 : vector<8x1xf32> to vector<8x32xf32>
    %192 = arith.divf %188, %191 : vector<8x32xf32>
    %cst_76 = arith.constant dense<0.000000e+00> : vector<8x32xf32>
    %193 = tpu.matmul %192, %166, %cst_76 {dimension_numbers = #tpu.dot_dimension_numbers<[1], [0], [0], [1], [0, 0, 1, 1], [], []>} : vector<8x32xf32>, vector<32x32xf32>, vector<8x32xf32> -> vector<8x32xf32>
    %194 = vector.extract_strided_slice %142 {offsets = [320, 0], sizes = [32, 32], strides = [1, 1]} : vector<416x32xf32> to vector<32x32xf32>
    %cst_77 = arith.constant dense<0.000000e+00> : vector<8x32xf32>
    %195 = tpu.matmul %193, %194, %cst_77 {dimension_numbers = #tpu.dot_dimension_numbers<[1], [0], [0], [1], [0, 0, 1, 1], [], []>} : vector<8x32xf32>, vector<32x32xf32>, vector<8x32xf32> -> vector<8x32xf32>
    %196 = vector.broadcast %147 : vector<1x32xf32> to vector<8x32xf32>
    %197 = arith.addf %195, %196 : vector<8x32xf32>
    %cst_78 = arith.constant dense<0.000000e+00> : vector<1x32xf32>
    %198 = tpu.matmul %181, %168, %cst_78 {dimension_numbers = #tpu.dot_dimension_numbers<[1], [1], [0], [0], [0, 0, 1, 0], [], []>} : vector<1x32xf32>, vector<32x32xf32>, vector<1x32xf32> -> vector<1x32xf32>
    %199 = arith.addf %198, %3 : vector<1x32xf32>
    %cst_79 = arith.constant dense<0xFF800000> : vector<1xf32>
    %200 = vector.multi_reduction <maximumf>, %199, %cst_79 [1] : vector<1x32xf32> to vector<1xf32>
    %201 = vector.shape_cast %200 : vector<1xf32> to vector<1x1xf32>
    %202 = vector.broadcast %201 : vector<1x1xf32> to vector<1x32xf32>
    %203 = arith.subf %199, %202 : vector<1x32xf32>
    %204 = math.exp %203 : vector<1x32xf32>
    %cst_80 = arith.constant dense<0.000000e+00> : vector<1xf32>
    %205 = vector.multi_reduction <add>, %204, %cst_80 [1] : vector<1x32xf32> to vector<1xf32>
    %206 = vector.shape_cast %205 : vector<1xf32> to vector<1x1xf32>
    %207 = vector.broadcast %206 : vector<1x1xf32> to vector<1x32xf32>
    %208 = arith.divf %204, %207 : vector<1x32xf32>
    %cst_81 = arith.constant dense<0.000000e+00> : vector<1x32xf32>
    %209 = tpu.matmul %208, %170, %cst_81 {dimension_numbers = #tpu.dot_dimension_numbers<[1], [0], [0], [1], [0, 0, 1, 1], [], []>} : vector<1x32xf32>, vector<32x32xf32>, vector<1x32xf32> -> vector<1x32xf32>
    %210 = vector.extract_strided_slice %142 {offsets = [320, 0], sizes = [32, 32], strides = [1, 1]} : vector<416x32xf32> to vector<32x32xf32>
    %cst_82 = arith.constant dense<0.000000e+00> : vector<1x32xf32>
    %211 = tpu.matmul %209, %210, %cst_82 {dimension_numbers = #tpu.dot_dimension_numbers<[1], [0], [0], [1], [0, 0, 1, 1], [], []>} : vector<1x32xf32>, vector<32x32xf32>, vector<1x32xf32> -> vector<1x32xf32>
    %212 = arith.addf %211, %147 : vector<1x32xf32>
    %213 = vector.extract_strided_slice %197 {offsets = [5, 0], sizes = [1, 32], strides = [1, 1]} : vector<8x32xf32> to vector<1x32xf32>
    %214 = vector.extract_strided_slice %142 {offsets = [352, 0], sizes = [32, 32], strides = [1, 1]} : vector<416x32xf32> to vector<32x32xf32>
    %cst_83 = arith.constant dense<0.000000e+00> : vector<1x32xf32>
    %215 = tpu.matmul %213, %214, %cst_83 {dimension_numbers = #tpu.dot_dimension_numbers<[1], [0], [0], [1], [0, 0, 1, 1], [], []>} : vector<1x32xf32>, vector<32x32xf32>, vector<1x32xf32> -> vector<1x32xf32>
    %216 = vector.extract_strided_slice %142 {offsets = [384, 0], sizes = [32, 32], strides = [1, 1]} : vector<416x32xf32> to vector<32x32xf32>
    %cst_84 = arith.constant dense<0.000000e+00> : vector<1x32xf32>
    %217 = tpu.matmul %212, %216, %cst_84 {dimension_numbers = #tpu.dot_dimension_numbers<[1], [0], [0], [1], [0, 0, 1, 1], [], []>} : vector<1x32xf32>, vector<32x32xf32>, vector<1x32xf32> -> vector<1x32xf32>
    %218 = arith.addf %215, %217 : vector<1x32xf32>
    %219 = vector.extract_strided_slice %142 {offsets = [352, 0], sizes = [32, 32], strides = [1, 1]} : vector<416x32xf32> to vector<32x32xf32>
    %cst_85 = arith.constant dense<0.000000e+00> : vector<1x32xf32>
    %220 = tpu.matmul %212, %219, %cst_85 {dimension_numbers = #tpu.dot_dimension_numbers<[1], [0], [0], [1], [0, 0, 1, 1], [], []>} : vector<1x32xf32>, vector<32x32xf32>, vector<1x32xf32> -> vector<1x32xf32>
    %221 = vector.extract_strided_slice %197 {offsets = [0, 0], sizes = [1, 32], strides = [1, 1]} : vector<8x32xf32> to vector<1x32xf32>
    %222 = vector.extract_strided_slice %142 {offsets = [384, 0], sizes = [32, 32], strides = [1, 1]} : vector<416x32xf32> to vector<32x32xf32>
    %cst_86 = arith.constant dense<0.000000e+00> : vector<1x32xf32>
    %223 = tpu.matmul %221, %222, %cst_86 {dimension_numbers = #tpu.dot_dimension_numbers<[1], [0], [0], [1], [0, 0, 1, 1], [], []>} : vector<1x32xf32>, vector<32x32xf32>, vector<1x32xf32> -> vector<1x32xf32>
    %224 = arith.addf %220, %223 : vector<1x32xf32>
    %cst_87 = arith.constant 1.000000e+00 : f32
    %225 = vector.broadcast %cst_87 : f32 to vector<8x1xf32>
    %226 = arith.subf %225, %18 : vector<8x1xf32>
    %227 = arith.subf %226, %22 : vector<8x1xf32>
    %228 = vector.broadcast %227 : vector<8x1xf32> to vector<8x32xf32>
    %229 = arith.mulf %197, %228 : vector<8x32xf32>
    %230 = vector.broadcast %18 : vector<8x1xf32> to vector<8x32xf32>
    %231 = vector.broadcast %218 : vector<1x32xf32> to vector<8x32xf32>
    %232 = arith.mulf %230, %231 : vector<8x32xf32>
    %233 = arith.addf %229, %232 : vector<8x32xf32>
    %234 = vector.broadcast %22 : vector<8x1xf32> to vector<8x32xf32>
    %235 = vector.broadcast %224 : vector<1x32xf32> to vector<8x32xf32>
    %236 = arith.mulf %234, %235 : vector<8x32xf32>
    %237 = arith.addf %233, %236 : vector<8x32xf32>
    %238 = arith.addf %237, %140 : vector<8x32xf32>
    %cst_88 = arith.constant dense<0.000000e+00> : vector<8xf32>
    %239 = vector.multi_reduction <add>, %238, %cst_88 [1] : vector<8x32xf32> to vector<8xf32>
    %240 = vector.shape_cast %239 : vector<8xf32> to vector<8x1xf32>
    %cst_89 = arith.constant 3.200000e+01 : f32
    %241 = vector.broadcast %cst_89 : f32 to vector<8x1xf32>
    %242 = arith.divf %240, %241 : vector<8x1xf32>
    %243 = vector.broadcast %242 : vector<8x1xf32> to vector<8x32xf32>
    %244 = arith.subf %238, %243 : vector<8x32xf32>
    %245 = arith.mulf %244, %244 : vector<8x32xf32>
    %cst_90 = arith.constant dense<0.000000e+00> : vector<8xf32>
    %246 = vector.multi_reduction <add>, %245, %cst_90 [1] : vector<8x32xf32> to vector<8xf32>
    %247 = vector.shape_cast %246 : vector<8xf32> to vector<8x1xf32>
    %cst_91 = arith.constant 3.200000e+01 : f32
    %248 = vector.broadcast %cst_91 : f32 to vector<8x1xf32>
    %249 = arith.divf %247, %248 : vector<8x1xf32>
    %cst_92 = arith.constant 9.99999996E-13 : f32
    %250 = vector.broadcast %cst_92 : f32 to vector<8x1xf32>
    %251 = arith.addf %249, %250 : vector<8x1xf32>
    %252 = math.rsqrt %251 : vector<8x1xf32>
    %253 = vector.broadcast %252 : vector<8x1xf32> to vector<8x32xf32>
    %254 = arith.mulf %244, %253 : vector<8x32xf32>
    %255 = vector.broadcast %5 : vector<1x32xf32> to vector<8x32xf32>
    %256 = arith.mulf %254, %255 : vector<8x32xf32>
    %257 = vector.broadcast %6 : vector<1x32xf32> to vector<8x32xf32>
    %258 = arith.addf %256, %257 : vector<8x32xf32>
    %c0_93 = arith.constant 0 : index
    %c0_94 = arith.constant 0 : index
    %259 = vector.load %arg6[%c0_93, %c0_94] : memref<8x32xf32, #tpu.memory_space<vmem>>, vector<8x32xf32>
    tpu.vector_store %arg6[%c0_93, %c0_94], %258 {strides = array<i32>} : memref<8x32xf32, #tpu.memory_space<vmem>>, vector<8x32xf32>,
    return
  }
}

</mosaic_0001>

<llo_original>
// kernel: transformer_module_forward.1
$region0: #{transformer_module_forward.1}
  #allocation0 [shape = 'u32[]', space=smem, size = 0x4, offset = 0x4, fixed_abs, tag = 'smem constant byte address 0x4 - core index']
  #allocation1 [shape = 'u32[144,128]{1,0:T(1,128)}', space=vmem, size = 0x12000, scoped, tag = 'internal scratch']
  %s0 = inlined_call_operand.vmem [shape: f32[8,32], index: 0, kind: input, shape index: {}]
  %s1 = inlined_call_operand.vmem [shape: f32[4,32], index: 1, kind: input, shape index: {}]
  %s2 = inlined_call_operand.vmem [shape: f32[73,32], index: 2, kind: input, shape index: {}]
  %s3 = inlined_call_operand.vmem [shape: f32[32,32], index: 3, kind: input, shape index: {}]
  %s4 = inlined_call_operand.vmem [shape: f32[2,416,32], index: 4, kind: input, shape index: {}]
  %s5 = inlined_call_operand.vmem [shape: f32[13,32], index: 5, kind: input, shape index: {}]
  %s6 = inlined_call_operand.hbm [shape: f32[8,32], index: 6, kind: output, shape index: {}]
  %s7 = sld [smem:[#allocation0]]
  $region34: #{transformer_module_forward.1} parent=0
    _
  %s9 = ssub.s32 1, %s7
  %s10 = scalar_select 0, %s9, %s7
  $region1: #{transformer_module_forward.1} parent=0
    #allocation2 [shape = 'u8[4096]{0}', space=vmem, size = 0x1000, scoped, tag = 'output window, operand 0, single buffered']
    #allocation3 [shape = 's32[1]{0}', space=sflag, size = 0x4, scoped, tag = 'scoped memory for transformer_module_forward.1']
    %11 = vsyncpa [#allocation3], 0
    // Predicated region
    $region2: #{transformer_module_forward.1} parent=1 // pred_check
      _
    $region3: #{transformer_module_forward.1} parent=1 // pred_check_branch
      %13 = sbr.rel (0) target = $region5
    $region4: #{transformer_module_forward.1} parent=1 // pred_region
      _
    $region5: #{transformer_module_forward.1} parent=1 // pred_fallthru
      _
    // Predicated region
    $region6: #{transformer_module_forward.1} parent=1 // pred_check
      _
    $region7: #{transformer_module_forward.1} parent=1 // pred_check_branch
      %15 = sbr.rel (0) target = $region9
    $region8: #{transformer_module_forward.1} parent=1 // pred_region
      _
    $region9: #{transformer_module_forward.1} parent=1 // pred_fallthru
      _
    // Predicated region
    $region10: #{transformer_module_forward.1} parent=1 // pred_check
      _
    $region11: #{transformer_module_forward.1} parent=1 // pred_check_branch
      %17 = sbr.rel (0) target = $region13
    $region12: #{transformer_module_forward.1} parent=1 // pred_region
      _
    $region13: #{transformer_module_forward.1} parent=1 // pred_fallthru
      _
    // Predicated region
    $region14: #{transformer_module_forward.1} parent=1 // pred_check
      _
    $region15: #{transformer_module_forward.1} parent=1 // pred_check_branch
      %19 = sbr.rel (0) target = $region17
    $region16: #{transformer_module_forward.1} parent=1 // pred_region
      _
    $region17: #{transformer_module_forward.1} parent=1 // pred_fallthru
      _
    // Predicated region
    $region18: #{transformer_module_forward.1} parent=1 // pred_check
      _
    $region19: #{transformer_module_forward.1} parent=1 // pred_check_branch
      %21 = sbr.rel (0) target = $region21
    $region20: #{transformer_module_forward.1} parent=1 // pred_region
      _
    $region21: #{transformer_module_forward.1} parent=1 // pred_fallthru
      _
    // Predicated region
    $region22: #{transformer_module_forward.1} parent=1 // pred_check
      _
    $region23: #{transformer_module_forward.1} parent=1 // pred_check_branch
      %23 = sbr.rel (0) target = $region25
    $region24: #{transformer_module_forward.1} parent=1 // pred_region
      _
    $region25: #{transformer_module_forward.1} parent=1 // pred_fallthru
      _
    %v24 = vld [vmem:[%s2] sm:$0xff]
    %v25 = vld [vmem:[%s2 + $0x8] sm:$0xff]
    %v26 = vld [vmem:[%s2 + $0x10] sm:$0xff]
    %v27 = vld [vmem:[%s2 + $0x18] sm:$0xff]
    %v28 = vld [vmem:[%s2 + $0x20] sm:$0xff]
    %v29 = vld [vmem:[%s2 + $0x28] sm:$0xff]
    %v30 = vld [vmem:[%s2 + $0x30] sm:$0xff]
    %v31 = vld [vmem:[%s2 + $0x38] sm:$0xff]
    %v32 = vld [vmem:[%s2 + $0x40] sm:$0xff]
    %v33 = vld [vmem:[%s2 + $0x48] sm:$0x1]
    %v34 = vld [vmem:[%s5] sm:$0x1]
    %v35 = vld [vmem:[%s5 + $0x1] sm:$0x1]
    %v36 = vld [vmem:[%s5 + $0x2] sm:$0x1]
    %v37 = vld [vmem:[%s0] sm:$0xff]
    %v38 = vld [vmem:[%s3] sm:$0xff]
    %v39 = vld [vmem:[%s3 + $0x8] sm:$0xff]
    %v40 = vld [vmem:[%s3 + $0x10] sm:$0xff]
    %v41 = vld [vmem:[%s3 + $0x18] sm:$0xff]
    %v42 = vlaneseq
    %v43 = vshrl.u32 %v42, 7
    %v44 = vsub.s32 0, %v43
    %v45 = vrot.slane %v34, %v44
    %vm46 = vcmask 261120
    %v48 = vsel %vm46, %v37, 0
    %50 = vmatprep.subr.mxu0 0.0
    %51 = vmatpush1.msra.mxu0 %v38
    %52 = vmatprep.subr.mxu0 0.0
    %53 = vmatpush1.msra.mxu0 %v39
    %54 = vmatprep.subr.mxu0 0.0
    %55 = vmatpush1.msra.mxu0 %v40
    %56 = vmatprep.subr.mxu0 0.0
    %57 = vmatpush1.msra.mxu0 %v41
    %58 = vmatprep.subr.mxu0 0.0
    %59 = vmatpush1.msra.mxu0 0.0
    %60 = vmatprep.subr.mxu0 0.0
    %61 = vmatpush1.msra.mxu0 0.0
    %62 = vmatprep.subr.mxu0 0.0
    %63 = vmatpush1.msra.mxu0 0.0
    %64 = vmatprep.subr.mxu0 0.0
    %65 = vmatpush1.msra.mxu0 0.0
    %66 = vmatprep.subr.mxu0 0.0
    %67 = vmatpush1.msra.mxu0 0.0
    %68 = vmatprep.subr.mxu0 0.0
    %69 = vmatpush1.msra.mxu0 0.0
    %70 = vmatprep.subr.mxu0 0.0
    %71 = vmatpush1.msra.mxu0 0.0
    %72 = vmatprep.subr.mxu0 0.0
    %73 = vmatpush1.msra.mxu0 0.0
    %74 = vmatprep.subr.mxu0 0.0
    %75 = vmatpush1.msra.mxu0 0.0
    %76 = vmatprep.subr.mxu0 0.0
    %77 = vmatpush1.msra.mxu0 0.0
    %78 = vmatprep.subr.mxu0 0.0
    %79 = vmatpush1.msra.mxu0 0.0
    %80 = vmatprep.subr.mxu0 0.0
    %81 = vmatpush1.msra.mxu0 0.0
    %82 = vmatprep.subr.mxu0 0.0
    %83 = vmatpush1.msra.mxu0 0.0
    %84 = vmatprep.subr.mxu0 0.0
    %85 = vmatpush1.msra.mxu0 0.0
    %86 = vmatprep.subr.mxu0 0.0
    %87 = vmatpush1.msra.mxu0 0.0
    %88 = vmatprep.subr.mxu0 0.0
    %89 = vmatpush1.msra.mxu0 0.0
    %90 = vmatprep.subr.mxu0 0.0
    %91 = vmatpush1.msra.mxu0 0.0
    %92 = vmatprep.subr.mxu0 0.0
    %93 = vmatpush1.msra.mxu0 0.0
    %94 = vmatprep.subr.mxu0 0.0
    %95 = vmatpush1.msra.mxu0 0.0
    %96 = vmatprep.subr.mxu0 0.0
    %97 = vmatpush1.msra.mxu0 0.0
    %98 = vmatprep.subr.mxu0 0.0
    %99 = vmatpush1.msra.mxu0 0.0
    %100 = vmatprep.subr.mxu0 0.0
    %101 = vmatpush1.msra.mxu0 0.0
    %102 = vmatprep.subr.mxu0 0.0
    %103 = vmatpush1.msra.mxu0 0.0
    %104 = vmatprep.subr.mxu0 0.0
    %105 = vmatpush1.msra.mxu0 0.0
    %106 = vmatprep.subr.mxu0 0.0
    %107 = vmatpush1.msra.mxu0 0.0
    %108 = vmatprep.subr.mxu0 0.0
    %109 = vmatpush1.msra.mxu0 0.0
    %110 = vmatprep.subr.mxu0 0.0
    %111 = vmatpush1.msra.mxu0 0.0
    %112 = vmatprep.subr.mxu0 0.0
    %113 = vmatpush1.msra.mxu0 0.0
    %114 = vmatprep.mubr.f32.mxu0 0.0
    %115 = vmatmul.mubr.f32.gmra.mrb[0].mxu0 %v48
    %v116 = vpop.f32.mrb[0].mxu0
    %v117 = vadd.f32 %v45, %v116
    %v118 = vpop.f32.mrb[0].mxu0
    %119 = vdwg.mxu0
    %v120 = vld [vmem:[%s1] sm:$0xf]
    %vm121 = vcmask 31744
    %v123 = vsel %vm121, %v28, 0
    %v126 = vsel %vm121, %v29, 0
    %v129 = vsel %vm121, %v30, 0
    %v132 = vsel %vm121, %v31, 0
    %vm134 = vcmask 1043456
    %v136 = vsel %vm134, %v120, 0
    %138 = vmatprep.subr.mxu0 0.0
    %139 = vmatpush1.msra.mxu0 %v136
    %140 = vmatprep.subr.mxu0 0.0
    %141 = vmatpush1.msra.mxu0 0.0
    %142 = vmatprep.subr.mxu0 0.0
    %143 = vmatpush1.msra.mxu0 0.0
    %144 = vmatprep.subr.mxu0 0.0
    %145 = vmatpush1.msra.mxu0 0.0
    %146 = vmatprep.subr.mxu0 0.0
    %147 = vmatpush1.msra.mxu0 0.0
    %148 = vmatprep.subr.mxu0 0.0
    %149 = vmatpush1.msra.mxu0 0.0
    %150 = vmatprep.subr.mxu0 0.0
    %151 = vmatpush1.msra.mxu0 0.0
    %152 = vmatprep.subr.mxu0 0.0
    %153 = vmatpush1.msra.mxu0 0.0
    %154 = vmatprep.subr.mxu0 0.0
    %155 = vmatpush1.msra.mxu0 0.0
    %156 = vmatprep.subr.mxu0 0.0
    %157 = vmatpush1.msra.mxu0 0.0
    %158 = vmatprep.subr.mxu0 0.0
    %159 = vmatpush1.msra.mxu0 0.0
    %160 = vmatprep.subr.mxu0 0.0
    %161 = vmatpush1.msra.mxu0 0.0
    %162 = vmatprep.subr.mxu0 0.0
    %163 = vmatpush1.msra.mxu0 0.0
    %164 = vmatprep.subr.mxu0 0.0
    %165 = vmatpush1.msra.mxu0 0.0
    %166 = vmatprep.subr.mxu0 0.0
    %167 = vmatpush1.msra.mxu0 0.0
    %168 = vmatprep.subr.mxu0 0.0
    %169 = vmatpush1.msra.mxu0 0.0
    %170 = vmatprep.subr.mxu0 0.0
    %171 = vmatpush1.msra.mxu0 0.0
    %172 = vmatprep.subr.mxu0 0.0
    %173 = vmatpush1.msra.mxu0 0.0
    %174 = vmatprep.subr.mxu0 0.0
    %175 = vmatpush1.msra.mxu0 0.0
    %176 = vmatprep.subr.mxu0 0.0
    %177 = vmatpush1.msra.mxu0 0.0
    %178 = vmatprep.subr.mxu0 0.0
    %179 = vmatpush1.msra.mxu0 0.0
    %180 = vmatprep.subr.mxu0 0.0
    %181 = vmatpush1.msra.mxu0 0.0
    %182 = vmatprep.subr.mxu0 0.0
    %183 = vmatpush1.msra.mxu0 0.0
    %184 = vmatprep.subr.mxu0 0.0
    %185 = vmatpush1.msra.mxu0 0.0
    %186 = vmatprep.subr.mxu0 0.0
    %187 = vmatpush1.msra.mxu0 0.0
    %188 = vmatprep.subr.mxu0 0.0
    %189 = vmatpush1.msra.mxu0 0.0
    %190 = vmatprep.subr.mxu0 0.0
    %191 = vmatpush1.msra.mxu0 0.0
    %192 = vmatprep.subr.mxu0 0.0
    %193 = vmatpush1.msra.mxu0 0.0
    %194 = vmatprep.subr.mxu0 0.0
    %195 = vmatpush1.msra.mxu0 0.0
    %196 = vmatprep.subr.mxu0 0.0
    %197 = vmatpush1.msra.mxu0 0.0
    %198 = vmatprep.subr.mxu0 0.0
    %199 = vmatpush1.msra.mxu0 0.0
    %200 = vmatprep.subr.mxu0 0.0
    %201 = vmatpush1.msra.mxu0 0.0
    %202 = vmatprep.mubr.f32.mxu0 0.0
    %203 = vmatmul.mubr.f32.gmra.mrb[0].mxu0 %v123
    %v204 = vpop.f32.mrb[0].mxu0
    %v205 = vadd.f32 0.0, %v204
    %v206 = vpop.f32.mrb[0].mxu0
    %207 = vmatprep.mubr.f32.mxu0 0.0
    %208 = vmatmul.mubr.f32.gmra.mrb[0].mxu0 %v126
    %v209 = vpop.f32.mrb[0].mxu0
    %v210 = vadd.f32 0.0, %v209
    %v211 = vpop.f32.mrb[0].mxu0
    %212 = vmatprep.mubr.f32.mxu0 0.0
    %213 = vmatmul.mubr.f32.gmra.mrb[0].mxu0 %v129
    %v214 = vpop.f32.mrb[0].mxu0
    %v215 = vadd.f32 0.0, %v214
    %v216 = vpop.f32.mrb[0].mxu0
    %217 = vmatprep.mubr.f32.mxu0 0.0
    %218 = vmatmul.mubr.f32.gmra.mrb[0].mxu0 %v132
    %v219 = vpop.f32.mrb[0].mxu0
    %v220 = vadd.f32 0.0, %v219
    %v221 = vpop.f32.mrb[0].mxu0
    %222 = vdwg.mxu0
    %v223 = vlaneseq
    %v224 = vshrl.u32 %v223, 7
    %vm225 = vcmp.eq.s32.totalorder %v224, 5
    %v226 = vsel %vm225, 1, 0
    %v227 = vcvt.s32.f32 %v226
    %vm228 = vcmp.eq.s32.totalorder %v224, 0
    %v229 = vsel %vm228, 1, 0
    %v230 = vcvt.s32.f32 %v229
    %v231 = vld [vmem:[%s4] sm:$0xff]
    %v232 = vld [vmem:[%s4 + $0x8] sm:$0xff]
    %v233 = vld [vmem:[%s4 + $0x10] sm:$0xff]
    %v234 = vld [vmem:[%s4 + $0x18] sm:$0xff]
    %v235 = vld [vmem:[%s4 + $0x20] sm:$0xff]
    %v236 = vld [vmem:[%s4 + $0x28] sm:$0xff]
    %v237 = vld [vmem:[%s4 + $0x30] sm:$0xff]
    %v238 = vld [vmem:[%s4 + $0x38] sm:$0xff]
    %v239 = vld [vmem:[%s4 + $0x40] sm:$0xff]
    %v240 = vld [vmem:[%s4 + $0x48] sm:$0xff]
    %v241 = vld [vmem:[%s4 + $0x50] sm:$0xff]
    %v242 = vld [vmem:[%s4 + $0x58] sm:$0xff]
    %v243 = vld [vmem:[%s4 + $0x60] sm:$0xff]
    %v244 = vld [vmem:[%s4 + $0x68] sm:$0xff]
    %v245 = vld [vmem:[%s4 + $0x70] sm:$0xff]
    %v246 = vld [vmem:[%s4 + $0x78] sm:$0xff]
    %v247 = vld [vmem:[%s4 + $0x80] sm:$0xff]
    %v248 = vld [vmem:[%s4 + $0x88] sm:$0xff]
    %v249 = vld [vmem:[%s4 + $0x90] sm:$0xff]
    %v250 = vld [vmem:[%s4 + $0x98] sm:$0xff]
    %v251 = vld [vmem:[%s4 + $0xa0] sm:$0xff]
    %v252 = vld [vmem:[%s4 + $0xa8] sm:$0xff]
    %v253 = vld [vmem:[%s4 + $0xb0] sm:$0xff]
    %v254 = vld [vmem:[%s4 + $0xb8] sm:$0xff]
    %v255 = vld [vmem:[%s4 + $0xc0] sm:$0xff]
    %v256 = vld [vmem:[%s4 + $0xc8] sm:$0xff]
    %v257 = vld [vmem:[%s4 + $0xd0] sm:$0xff]
    %v258 = vld [vmem:[%s4 + $0xd8] sm:$0xff]
    %v259 = vld [vmem:[%s4 + $0xe0] sm:$0xff]
    %v260 = vld [vmem:[%s4 + $0xe8] sm:$0xff]
    %v261 = vld [vmem:[%s4 + $0xf0] sm:$0xff]
    %v262 = vld [vmem:[%s4 + $0xf8] sm:$0xff]
    %v263 = vld [vmem:[%s4 + $0x100] sm:$0xff]
    %v264 = vld [vmem:[%s4 + $0x108] sm:$0xff]
    %v265 = vld [vmem:[%s4 + $0x110] sm:$0xff]
    %v266 = vld [vmem:[%s4 + $0x118] sm:$0xff]
    %v267 = vld [vmem:[%s4 + $0x120] sm:$0xff]
    %v268 = vld [vmem:[%s4 + $0x128] sm:$0xff]
    %v269 = vld [vmem:[%s4 + $0x130] sm:$0xff]
    %v270 = vld [vmem:[%s4 + $0x138] sm:$0xff]
    %v271 = vld [vmem:[%s4 + $0x140] sm:$0xff]
    %v272 = vld [vmem:[%s4 + $0x148] sm:$0xff]
    %v273 = vld [vmem:[%s4 + $0x150] sm:$0xff]
    %v274 = vld [vmem:[%s4 + $0x158] sm:$0xff]
    %v275 = vld [vmem:[%s4 + $0x160] sm:$0xff]
    %v276 = vld [vmem:[%s4 + $0x168] sm:$0xff]
    %v277 = vld [vmem:[%s4 + $0x170] sm:$0xff]
    %v278 = vld [vmem:[%s4 + $0x178] sm:$0xff]
    %v279 = vld [vmem:[%s4 + $0x180] sm:$0xff]
    %v280 = vld [vmem:[%s4 + $0x188] sm:$0xff]
    %v281 = vld [vmem:[%s4 + $0x190] sm:$0xff]
    %v282 = vld [vmem:[%s4 + $0x198] sm:$0xff]
    %v283 = vld [vmem:[%s5 + $0x3] sm:$0x1]
    %v284 = vld [vmem:[%s5 + $0x4] sm:$0x1]
    %v285 = vld [vmem:[%s5 + $0x5] sm:$0x1]
    %v286 = vld [vmem:[%s5 + $0x6] sm:$0x1]
    %v287 = vld [vmem:[%s5 + $0x7] sm:$0x1]
    %v289 = vsel %vm46, %v117, 0
    %291 = vmatprep.subr.mxu0 0.0
    %292 = vmatpush1.msra.mxu0 %v231
    %293 = vmatprep.subr.mxu0 0.0
    %294 = vmatpush1.msra.mxu0 %v232
    %295 = vmatprep.subr.mxu0 0.0
    %296 = vmatpush1.msra.mxu0 %v233
    %297 = vmatprep.subr.mxu0 0.0
    %298 = vmatpush1.msra.mxu0 %v234
    %299 = vmatprep.subr.mxu0 0.0
    %300 = vmatpush1.msra.mxu0 0.0
    %301 = vmatprep.subr.mxu0 0.0
    %302 = vmatpush1.msra.mxu0 0.0
    %303 = vmatprep.subr.mxu0 0.0
    %304 = vmatpush1.msra.mxu0 0.0
    %305 = vmatprep.subr.mxu0 0.0
    %306 = vmatpush1.msra.mxu0 0.0
    %307 = vmatprep.subr.mxu0 0.0
    %308 = vmatpush1.msra.mxu0 0.0
    %309 = vmatprep.subr.mxu0 0.0
    %310 = vmatpush1.msra.mxu0 0.0
    %311 = vmatprep.subr.mxu0 0.0
    %312 = vmatpush1.msra.mxu0 0.0
    %313 = vmatprep.subr.mxu0 0.0
    %314 = vmatpush1.msra.mxu0 0.0
    %315 = vmatprep.subr.mxu0 0.0
    %316 = vmatpush1.msra.mxu0 0.0
    %317 = vmatprep.subr.mxu0 0.0
    %318 = vmatpush1.msra.mxu0 0.0
    %319 = vmatprep.subr.mxu0 0.0
    %320 = vmatpush1.msra.mxu0 0.0
    %321 = vmatprep.subr.mxu0 0.0
    %322 = vmatpush1.msra.mxu0 0.0
    %323 = vmatprep.subr.mxu0 0.0
    %324 = vmatpush1.msra.mxu0 0.0
    %325 = vmatprep.subr.mxu0 0.0
    %326 = vmatpush1.msra.mxu0 0.0
    %327 = vmatprep.subr.mxu0 0.0
    %328 = vmatpush1.msra.mxu0 0.0
    %329 = vmatprep.subr.mxu0 0.0
    %330 = vmatpush1.msra.mxu0 0.0
    %331 = vmatprep.subr.mxu0 0.0
    %332 = vmatpush1.msra.mxu0 0.0
    %333 = vmatprep.subr.mxu0 0.0
    %334 = vmatpush1.msra.mxu0 0.0
    %335 = vmatprep.subr.mxu0 0.0
    %336 = vmatpush1.msra.mxu0 0.0
    %337 = vmatprep.subr.mxu0 0.0
    %338 = vmatpush1.msra.mxu0 0.0
    %339 = vmatprep.subr.mxu0 0.0
    %340 = vmatpush1.msra.mxu0 0.0
    %341 = vmatprep.subr.mxu0 0.0
    %342 = vmatpush1.msra.mxu0 0.0
    %343 = vmatprep.subr.mxu0 0.0
    %344 = vmatpush1.msra.mxu0 0.0
    %345 = vmatprep.subr.mxu0 0.0
    %346 = vmatpush1.msra.mxu0 0.0
    %347 = vmatprep.subr.mxu0 0.0
    %348 = vmatpush1.msra.mxu0 0.0
    %349 = vmatprep.subr.mxu0 0.0
    %350 = vmatpush1.msra.mxu0 0.0
    %351 = vmatprep.subr.mxu0 0.0
    %352 = vmatpush1.msra.mxu0 0.0
    %353 = vmatprep.subr.mxu0 0.0
    %354 = vmatpush1.msra.mxu0 0.0
    %355 = vmatprep.mubr.f32.mxu0 0.0
    %356 = vmatmul.mubr.f32.gmra.mrb[0].mxu0 %v289
    %v357 = vpop.f32.mrb[0].mxu0
    %v358 = vadd.f32 0.0, %v357
    %v359 = vpop.f32.mrb[0].mxu0
    %360 = vdwg.mxu0
    %361 = vmatprep.subr.mxu0 0.0
    %362 = vmatpush1.msra.mxu0 %v239
    %363 = vmatprep.subr.mxu0 0.0
    %364 = vmatpush1.msra.mxu0 %v240
    %365 = vmatprep.subr.mxu0 0.0
    %366 = vmatpush1.msra.mxu0 %v241
    %367 = vmatprep.subr.mxu0 0.0
    %368 = vmatpush1.msra.mxu0 %v242
    %369 = vmatprep.subr.mxu0 0.0
    %370 = vmatpush1.msra.mxu0 0.0
    %371 = vmatprep.subr.mxu0 0.0
    %372 = vmatpush1.msra.mxu0 0.0
    %373 = vmatprep.subr.mxu0 0.0
    %374 = vmatpush1.msra.mxu0 0.0
    %375 = vmatprep.subr.mxu0 0.0
    %376 = vmatpush1.msra.mxu0 0.0
    %377 = vmatprep.subr.mxu0 0.0
    %378 = vmatpush1.msra.mxu0 0.0
    %379 = vmatprep.subr.mxu0 0.0
    %380 = vmatpush1.msra.mxu0 0.0
    %381 = vmatprep.subr.mxu0 0.0
    %382 = vmatpush1.msra.mxu0 0.0
    %383 = vmatprep.subr.mxu0 0.0
    %384 = vmatpush1.msra.mxu0 0.0
    %385 = vmatprep.subr.mxu0 0.0
    %386 = vmatpush1.msra.mxu0 0.0
    %387 = vmatprep.subr.mxu0 0.0
    %388 = vmatpush1.msra.mxu0 0.0
    %389 = vmatprep.subr.mxu0 0.0
    %390 = vmatpush1.msra.mxu0 0.0
    %391 = vmatprep.subr.mxu0 0.0
    %392 = vmatpush1.msra.mxu0 0.0
    %393 = vmatprep.subr.mxu0 0.0
    %394 = vmatpush1.msra.mxu0 0.0
    %395 = vmatprep.subr.mxu0 0.0
    %396 = vmatpush1.msra.mxu0 0.0
    %397 = vmatprep.subr.mxu0 0.0
    %398 = vmatpush1.msra.mxu0 0.0
    %399 = vmatprep.subr.mxu0 0.0
    %400 = vmatpush1.msra.mxu0 0.0
    %401 = vmatprep.subr.mxu0 0.0
    %402 = vmatpush1.msra.mxu0 0.0
    %403 = vmatprep.subr.mxu0 0.0
    %404 = vmatpush1.msra.mxu0 0.0
    %405 = vmatprep.subr.mxu0 0.0
    %406 = vmatpush1.msra.mxu0 0.0
    %407 = vmatprep.subr.mxu0 0.0
    %408 = vmatpush1.msra.mxu0 0.0
    %409 = vmatprep.subr.mxu0 0.0
    %410 = vmatpush1.msra.mxu0 0.0
    %411 = vmatprep.subr.mxu0 0.0
    %412 = vmatpush1.msra.mxu0 0.0
    %413 = vmatprep.subr.mxu0 0.0
    %414 = vmatpush1.msra.mxu0 0.0
    %415 = vmatprep.subr.mxu0 0.0
    %416 = vmatpush1.msra.mxu0 0.0
    %417 = vmatprep.subr.mxu0 0.0
    %418 = vmatpush1.msra.mxu0 0.0
    %419 = vmatprep.subr.mxu0 0.0
    %420 = vmatpush1.msra.mxu0 0.0
    %421 = vmatprep.subr.mxu0 0.0
    %422 = vmatpush1.msra.mxu0 0.0
    %423 = vmatprep.subr.mxu0 0.0
    %424 = vmatpush1.msra.mxu0 0.0
    %425 = vmatprep.mubr.f32.mxu0 0.0
    %426 = vmatmul.mubr.f32.gmra.mrb[0].mxu0 %v289
    %v427 = vpop.f32.mrb[0].mxu0
    %v428 = vadd.f32 0.0, %v427
    %v429 = vpop.f32.mrb[0].mxu0
    %430 = vdwg.mxu0
    %v432 = vsel %vm46, %v205, 0
    %v435 = vsel %vm46, %v210, 0
    %v438 = vsel %vm46, %v215, 0
    %v441 = vsel %vm46, %v220, 0
    %443 = vmatprep.subr.mxu0 0.0
    %444 = vmatpush1.msra.mxu0 %v235
    %445 = vmatprep.subr.mxu0 0.0
    %446 = vmatpush1.msra.mxu0 %v236
    %447 = vmatprep.subr.mxu0 0.0
    %448 = vmatpush1.msra.mxu0 %v237
    %449 = vmatprep.subr.mxu0 0.0
    %450 = vmatpush1.msra.mxu0 %v238
    %451 = vmatprep.subr.mxu0 0.0
    %452 = vmatpush1.msra.mxu0 0.0
    %453 = vmatprep.subr.mxu0 0.0
    %454 = vmatpush1.msra.mxu0 0.0
    %455 = vmatprep.subr.mxu0 0.0
    %456 = vmatpush1.msra.mxu0 0.0
    %457 = vmatprep.subr.mxu0 0.0
    %458 = vmatpush1.msra.mxu0 0.0
    %459 = vmatprep.subr.mxu0 0.0
    %460 = vmatpush1.msra.mxu0 0.0
    %461 = vmatprep.subr.mxu0 0.0
    %462 = vmatpush1.msra.mxu0 0.0
    %463 = vmatprep.subr.mxu0 0.0
    %464 = vmatpush1.msra.mxu0 0.0
    %465 = vmatprep.subr.mxu0 0.0
    %466 = vmatpush1.msra.mxu0 0.0
    %467 = vmatprep.subr.mxu0 0.0
    %468 = vmatpush1.msra.mxu0 0.0
    %469 = vmatprep.subr.mxu0 0.0
    %470 = vmatpush1.msra.mxu0 0.0
    %471 = vmatprep.subr.mxu0 0.0
    %472 = vmatpush1.msra.mxu0 0.0
    %473 = vmatprep.subr.mxu0 0.0
    %474 = vmatpush1.msra.mxu0 0.0
    %475 = vmatprep.subr.mxu0 0.0
    %476 = vmatpush1.msra.mxu0 0.0
    %477 = vmatprep.subr.mxu0 0.0
    %478 = vmatpush1.msra.mxu0 0.0
    %479 = vmatprep.subr.mxu0 0.0
    %480 = vmatpush1.msra.mxu0 0.0
    %481 = vmatprep.subr.mxu0 0.0
    %482 = vmatpush1.msra.mxu0 0.0
    %483 = vmatprep.subr.mxu0 0.0
    %484 = vmatpush1.msra.mxu0 0.0
    %485 = vmatprep.subr.mxu0 0.0
    %486 = vmatpush1.msra.mxu0 0.0
    %487 = vmatprep.subr.mxu0 0.0
    %488 = vmatpush1.msra.mxu0 0.0
    %489 = vmatprep.subr.mxu0 0.0
    %490 = vmatpush1.msra.mxu0 0.0
    %491 = vmatprep.subr.mxu0 0.0
    %492 = vmatpush1.msra.mxu0 0.0
    %493 = vmatprep.subr.mxu0 0.0
    %494 = vmatpush1.msra.mxu0 0.0
    %495 = vmatprep.subr.mxu0 0.0
    %496 = vmatpush1.msra.mxu0 0.0
    %497 = vmatprep.subr.mxu0 0.0
    %498 = vmatpush1.msra.mxu0 0.0
    %499 = vmatprep.subr.mxu0 0.0
    %500 = vmatpush1.msra.mxu0 0.0
    %501 = vmatprep.subr.mxu0 0.0
    %502 = vmatpush1.msra.mxu0 0.0
    %503 = vmatprep.subr.mxu0 0.0
    %504 = vmatpush1.msra.mxu0 0.0
    %505 = vmatprep.subr.mxu0 0.0
    %506 = vmatpush1.msra.mxu0 0.0
    %507 = vmatprep.mubr.f32.mxu0 0.0
    %508 = vmatmul.mubr.f32.gmra.mrb[0].mxu0 %v432
    %v509 = vpop.f32.mrb[0].mxu0
    %v510 = vadd.f32 0.0, %v509
    %v511 = vpop.f32.mrb[0].mxu0
    %512 = vmatprep.mubr.f32.mxu0 0.0
    %513 = vmatmul.mubr.f32.gmra.mrb[0].mxu0 %v435
    %v514 = vpop.f32.mrb[0].mxu0
    %v515 = vadd.f32 0.0, %v514
    %v516 = vpop.f32.mrb[0].mxu0
    %517 = vmatprep.mubr.f32.mxu0 0.0
    %518 = vmatmul.mubr.f32.gmra.mrb[0].mxu0 %v438
    %v519 = vpop.f32.mrb[0].mxu0
    %v520 = vadd.f32 0.0, %v519
    %v521 = vpop.f32.mrb[0].mxu0
    %522 = vmatprep.mubr.f32.mxu0 0.0
    %523 = vmatmul.mubr.f32.gmra.mrb[0].mxu0 %v441
    %v524 = vpop.f32.mrb[0].mxu0
    %v525 = vadd.f32 0.0, %v524
    %v526 = vpop.f32.mrb[0].mxu0
    %527 = vdwg.mxu0
    %vm528 = vcmask 130048
    %v530 = vsel %vm528, %v24, 0
    %v533 = vsel %vm528, %v25, 0
    %v536 = vsel %vm528, %v26, 0
    %v539 = vsel %vm528, %v27, 0
    %541 = vmatprep.subr.mxu0 0.0
    %542 = vmatpush1.msra.mxu0 %v358
    %543 = vmatprep.subr.mxu0 0.0
    %544 = vmatpush1.msra.mxu0 %v428
    %545 = vmatprep.subr.mxu0 0.0
    %546 = vmatpush1.msra.mxu0 0.0
    %547 = vmatprep.subr.mxu0 0.0
    %548 = vmatpush1.msra.mxu0 0.0
    %549 = vmatprep.subr.mxu0 0.0
    %550 = vmatpush1.msra.mxu0 0.0
    %551 = vmatprep.subr.mxu0 0.0
    %552 = vmatpush1.msra.mxu0 0.0
    %553 = vmatprep.subr.mxu0 0.0
    %554 = vmatpush1.msra.mxu0 0.0
    %555 = vmatprep.subr.mxu0 0.0
    %556 = vmatpush1.msra.mxu0 0.0
    %557 = vmatprep.subr.mxu0 0.0
    %558 = vmatpush1.msra.mxu0 0.0
    %559 = vmatprep.subr.mxu0 0.0
    %560 = vmatpush1.msra.mxu0 0.0
    %561 = vmatprep.subr.mxu0 0.0
    %562 = vmatpush1.msra.mxu0 0.0
    %563 = vmatprep.subr.mxu0 0.0
    %564 = vmatpush1.msra.mxu0 0.0
    %565 = vmatprep.subr.mxu0 0.0
    %566 = vmatpush1.msra.mxu0 0.0
    %567 = vmatprep.subr.mxu0 0.0
    %568 = vmatpush1.msra.mxu0 0.0
    %569 = vmatprep.subr.mxu0 0.0
    %570 = vmatpush1.msra.mxu0 0.0
    %571 = vmatprep.subr.mxu0 0.0
    %572 = vmatpush1.msra.mxu0 0.0
    %573 = vmatprep.subr.mxu0 0.0
    %574 = vmatpush1.msra.mxu0 0.0
    %575 = vmatprep.subr.mxu0 0.0
    %576 = vmatpush1.msra.mxu0 0.0
    %577 = vmatprep.subr.mxu0 0.0
    %578 = vmatpush1.msra.mxu0 0.0
    %579 = vmatprep.subr.mxu0 0.0
    %580 = vmatpush1.msra.mxu0 0.0
    %581 = vmatprep.subr.mxu0 0.0
    %582 = vmatpush1.msra.mxu0 0.0
    %583 = vmatprep.subr.mxu0 0.0
    %584 = vmatpush1.msra.mxu0 0.0
    %585 = vmatprep.subr.mxu0 0.0
    %586 = vmatpush1.msra.mxu0 0.0
    %587 = vmatprep.subr.mxu0 0.0
    %588 = vmatpush1.msra.mxu0 0.0
    %589 = vmatprep.subr.mxu0 0.0
    %590 = vmatpush1.msra.mxu0 0.0
    %591 = vmatprep.subr.mxu0 0.0
    %592 = vmatpush1.msra.mxu0 0.0
    %593 = vmatprep.subr.mxu0 0.0
    %594 = vmatpush1.msra.mxu0 0.0
    %595 = vmatprep.subr.mxu0 0.0
    %596 = vmatpush1.msra.mxu0 0.0
    %597 = vmatprep.subr.mxu0 0.0
    %598 = vmatpush1.msra.mxu0 0.0
    %599 = vmatprep.subr.mxu0 0.0
    %600 = vmatpush1.msra.mxu0 0.0
    %601 = vmatprep.subr.mxu0 0.0
    %602 = vmatpush1.msra.mxu0 0.0
    %603 = vmatprep.subr.mxu0 0.0
    %604 = vmatpush1.msra.mxu0 0.0
    %605 = vmatprep.mubr.f32.mxu0 0.0
    %606 = vmatmul.mubr.f32.gmra.mrb[0].mxu0 %v530
    %v607 = vpop.f32.mrb[0].mxu0
    %v608 = vadd.f32 %v510, %v607
    %v609 = vpop.f32.mrb[0].mxu0
    %610 = vmatprep.mubr.f32.mxu0 0.0
    %611 = vmatmul.mubr.f32.gmra.mrb[0].mxu0 %v533
    %v612 = vpop.f32.mrb[0].mxu0
    %v613 = vadd.f32 %v515, %v612
    %v614 = vpop.f32.mrb[0].mxu0
    %615 = vmatprep.mubr.f32.mxu0 0.0
    %616 = vmatmul.mubr.f32.gmra.mrb[0].mxu0 %v536
    %v617 = vpop.f32.mrb[0].mxu0
    %v618 = vadd.f32 %v520, %v617
    %v619 = vpop.f32.mrb[0].mxu0
    %620 = vmatprep.mubr.f32.mxu0 0.0
    %621 = vmatmul.mubr.f32.gmra.mrb[0].mxu0 %v539
    %v622 = vpop.f32.mrb[0].mxu0
    %v623 = vadd.f32 %v525, %v622
    %v624 = vpop.f32.mrb[0].mxu0
    %625 = vdwg.mxu0
    %v626 = vlaneseq
    %v627 = vshrl.u32 %v626, 7
    %v628 = vsub.s32 0, %v627
    %v629 = vrot.slane %v283, %v628
    %v630 = vadd.f32 %v608, %v629
    %v631 = vadd.f32 %v613, %v629
    %v632 = vadd.f32 %v618, %v629
    %v633 = vadd.f32 %v623, %v629
    %v634 = vlaneseq
    %v635 = vshrl.u32 %v634, 7
    %v636 = vsub.s32 0, %v635
    %v637 = vrot.slane %v285, %v636
    %v639 = vsel %vm46, %v630, 0
    %v642 = vsel %vm46, %v631, 0
    %v645 = vsel %vm46, %v632, 0
    %v648 = vsel %vm46, %v633, 0
    %650 = vmatprep.subr.mxu0 0.0
    %651 = vmatpush1.msra.mxu0 %v247
    %652 = vmatprep.subr.mxu0 0.0
    %653 = vmatpush1.msra.mxu0 %v248
    %654 = vmatprep.subr.mxu0 0.0
    %655 = vmatpush1.msra.mxu0 %v249
    %656 = vmatprep.subr.mxu0 0.0
    %657 = vmatpush1.msra.mxu0 %v250
    %658 = vmatprep.subr.mxu0 0.0
    %659 = vmatpush1.msra.mxu0 0.0
    %660 = vmatprep.subr.mxu0 0.0
    %661 = vmatpush1.msra.mxu0 0.0
    %662 = vmatprep.subr.mxu0 0.0
    %663 = vmatpush1.msra.mxu0 0.0
    %664 = vmatprep.subr.mxu0 0.0
    %665 = vmatpush1.msra.mxu0 0.0
    %666 = vmatprep.subr.mxu0 0.0
    %667 = vmatpush1.msra.mxu0 0.0
    %668 = vmatprep.subr.mxu0 0.0
    %669 = vmatpush1.msra.mxu0 0.0
    %670 = vmatprep.subr.mxu0 0.0
    %671 = vmatpush1.msra.mxu0 0.0
    %672 = vmatprep.subr.mxu0 0.0
    %673 = vmatpush1.msra.mxu0 0.0
    %674 = vmatprep.subr.mxu0 0.0
    %675 = vmatpush1.msra.mxu0 0.0
    %676 = vmatprep.subr.mxu0 0.0
    %677 = vmatpush1.msra.mxu0 0.0
    %678 = vmatprep.subr.mxu0 0.0
    %679 = vmatpush1.msra.mxu0 0.0
    %680 = vmatprep.subr.mxu0 0.0
    %681 = vmatpush1.msra.mxu0 0.0
    %682 = vmatprep.subr.mxu0 0.0
    %683 = vmatpush1.msra.mxu0 0.0
    %684 = vmatprep.subr.mxu0 0.0
    %685 = vmatpush1.msra.mxu0 0.0
    %686 = vmatprep.subr.mxu0 0.0
    %687 = vmatpush1.msra.mxu0 0.0
    %688 = vmatprep.subr.mxu0 0.0
    %689 = vmatpush1.msra.mxu0 0.0
    %690 = vmatprep.subr.mxu0 0.0
    %691 = vmatpush1.msra.mxu0 0.0
    %692 = vmatprep.subr.mxu0 0.0
    %693 = vmatpush1.msra.mxu0 0.0
    %694 = vmatprep.subr.mxu0 0.0
    %695 = vmatpush1.msra.mxu0 0.0
    %696 = vmatprep.subr.mxu0 0.0
    %697 = vmatpush1.msra.mxu0 0.0
    %698 = vmatprep.subr.mxu0 0.0
    %699 = vmatpush1.msra.mxu0 0.0
    %700 = vmatprep.subr.mxu0 0.0
    %701 = vmatpush1.msra.mxu0 0.0
    %702 = vmatprep.subr.mxu0 0.0
    %703 = vmatpush1.msra.mxu0 0.0
    %704 = vmatprep.subr.mxu0 0.0
    %705 = vmatpush1.msra.mxu0 0.0
    %706 = vmatprep.subr.mxu0 0.0
    %707 = vmatpush1.msra.mxu0 0.0
    %708 = vmatprep.subr.mxu0 0.0
    %709 = vmatpush1.msra.mxu0 0.0
    %710 = vmatprep.subr.mxu0 0.0
    %711 = vmatpush1.msra.mxu0 0.0
    %712 = vmatprep.subr.mxu0 0.0
    %713 = vmatpush1.msra.mxu0 0.0
    %714 = vmatprep.mubr.f32.mxu0 0.0
    %715 = vmatmul.mubr.f32.gmra.mrb[0].mxu0 %v639
    %v716 = vpop.f32.mrb[0].mxu0
    %v717 = vadd.f32 %v637, %v716
    %v718 = vpop.f32.mrb[0].mxu0
    %719 = vmatprep.mubr.f32.mxu0 0.0
    %720 = vmatmul.mubr.f32.gmra.mrb[0].mxu0 %v642
    %v721 = vpop.f32.mrb[0].mxu0
    %v722 = vadd.f32 %v637, %v721
    %v723 = vpop.f32.mrb[0].mxu0
    %724 = vmatprep.mubr.f32.mxu0 0.0
    %725 = vmatmul.mubr.f32.gmra.mrb[0].mxu0 %v645
    %v726 = vpop.f32.mrb[0].mxu0
    %v727 = vadd.f32 %v637, %v726
    %v728 = vpop.f32.mrb[0].mxu0
    %729 = vmatprep.mubr.f32.mxu0 0.0
    %730 = vmatmul.mubr.f32.gmra.mrb[0].mxu0 %v648
    %v731 = vpop.f32.mrb[0].mxu0
    %v732 = vadd.f32 %v637, %v731
    %v733 = vpop.f32.mrb[0].mxu0
    %734 = vdwg.mxu0
    %v735 = vlaneseq
    %v736 = vshrl.u32 %v735, 7
    %v737 = vsub.s32 0, %v736
    %v738 = vrot.slane %v286, %v737
    %739 = vmatprep.subr.mxu0 0.0
    %740 = vmatpush1.msra.mxu0 %v251
    %741 = vmatprep.subr.mxu0 0.0
    %742 = vmatpush1.msra.mxu0 %v252
    %743 = vmatprep.subr.mxu0 0.0
    %744 = vmatpush1.msra.mxu0 %v253
    %745 = vmatprep.subr.mxu0 0.0
    %746 = vmatpush1.msra.mxu0 %v254
    %747 = vmatprep.subr.mxu0 0.0
    %748 = vmatpush1.msra.mxu0 0.0
    %749 = vmatprep.subr.mxu0 0.0
    %750 = vmatpush1.msra.mxu0 0.0
    %751 = vmatprep.subr.mxu0 0.0
    %752 = vmatpush1.msra.mxu0 0.0
    %753 = vmatprep.subr.mxu0 0.0
    %754 = vmatpush1.msra.mxu0 0.0
    %755 = vmatprep.subr.mxu0 0.0
    %756 = vmatpush1.msra.mxu0 0.0
    %757 = vmatprep.subr.mxu0 0.0
    %758 = vmatpush1.msra.mxu0 0.0
    %759 = vmatprep.subr.mxu0 0.0
    %760 = vmatpush1.msra.mxu0 0.0
    %761 = vmatprep.subr.mxu0 0.0
    %762 = vmatpush1.msra.mxu0 0.0
    %763 = vmatprep.subr.mxu0 0.0
    %764 = vmatpush1.msra.mxu0 0.0
    %765 = vmatprep.subr.mxu0 0.0
    %766 = vmatpush1.msra.mxu0 0.0
    %767 = vmatprep.subr.mxu0 0.0
    %768 = vmatpush1.msra.mxu0 0.0
    %769 = vmatprep.subr.mxu0 0.0
    %770 = vmatpush1.msra.mxu0 0.0
    %771 = vmatprep.subr.mxu0 0.0
    %772 = vmatpush1.msra.mxu0 0.0
    %773 = vmatprep.subr.mxu0 0.0
    %774 = vmatpush1.msra.mxu0 0.0
    %775 = vmatprep.subr.mxu0 0.0
    %776 = vmatpush1.msra.mxu0 0.0
    %777 = vmatprep.subr.mxu0 0.0
    %778 = vmatpush1.msra.mxu0 0.0
    %779 = vmatprep.subr.mxu0 0.0
    %780 = vmatpush1.msra.mxu0 0.0
    %781 = vmatprep.subr.mxu0 0.0
    %782 = vmatpush1.msra.mxu0 0.0
    %783 = vmatprep.subr.mxu0 0.0
    %784 = vmatpush1.msra.mxu0 0.0
    %785 = vmatprep.subr.mxu0 0.0
    %786 = vmatpush1.msra.mxu0 0.0
    %787 = vmatprep.subr.mxu0 0.0
    %788 = vmatpush1.msra.mxu0 0.0
    %789 = vmatprep.subr.mxu0 0.0
    %790 = vmatpush1.msra.mxu0 0.0
    %791 = vmatprep.subr.mxu0 0.0
    %792 = vmatpush1.msra.mxu0 0.0
    %793 = vmatprep.subr.mxu0 0.0
    %794 = vmatpush1.msra.mxu0 0.0
    %795 = vmatprep.subr.mxu0 0.0
    %796 = vmatpush1.msra.mxu0 0.0
    %797 = vmatprep.subr.mxu0 0.0
    %798 = vmatpush1.msra.mxu0 0.0
    %799 = vmatprep.subr.mxu0 0.0
    %800 = vmatpush1.msra.mxu0 0.0
    %801 = vmatprep.subr.mxu0 0.0
    %802 = vmatpush1.msra.mxu0 0.0
    %803 = vmatprep.mubr.f32.mxu0 0.0
    %804 = vmatmul.mubr.f32.gmra.mrb[0].mxu0 %v639
    %v805 = vpop.f32.mrb[0].mxu0
    %v806 = vadd.f32 %v738, %v805
    %v807 = vpop.f32.mrb[0].mxu0
    %808 = vmatprep.mubr.f32.mxu0 0.0
    %809 = vmatmul.mubr.f32.gmra.mrb[0].mxu0 %v642
    %v810 = vpop.f32.mrb[0].mxu0
    %v811 = vadd.f32 %v738, %v810
    %v812 = vpop.f32.mrb[0].mxu0
    %813 = vmatprep.mubr.f32.mxu0 0.0
    %814 = vmatmul.mubr.f32.gmra.mrb[0].mxu0 %v645
    %v815 = vpop.f32.mrb[0].mxu0
    %v816 = vadd.f32 %v738, %v815
    %v817 = vpop.f32.mrb[0].mxu0
    %818 = vmatprep.mubr.f32.mxu0 0.0
    %819 = vmatmul.mubr.f32.gmra.mrb[0].mxu0 %v648
    %v820 = vpop.f32.mrb[0].mxu0
    %v821 = vadd.f32 %v738, %v820
    %v822 = vpop.f32.mrb[0].mxu0
    %823 = vdwg.mxu0
    %824 = vmatprep.subr.mxu0 0.0
    %825 = vmatpush1.msra.mxu0 %v255
    %826 = vmatprep.subr.mxu0 0.0
    %827 = vmatpush1.msra.mxu0 %v256
    %828 = vmatprep.subr.mxu0 0.0
    %829 = vmatpush1.msra.mxu0 %v257
    %830 = vmatprep.subr.mxu0 0.0
    %831 = vmatpush1.msra.mxu0 %v258
    %832 = vmatprep.subr.mxu0 0.0
    %833 = vmatpush1.msra.mxu0 0.0
    %834 = vmatprep.subr.mxu0 0.0
    %835 = vmatpush1.msra.mxu0 0.0
    %836 = vmatprep.subr.mxu0 0.0
    %837 = vmatpush1.msra.mxu0 0.0
    %838 = vmatprep.subr.mxu0 0.0
    %839 = vmatpush1.msra.mxu0 0.0
    %840 = vmatprep.subr.mxu0 0.0
    %841 = vmatpush1.msra.mxu0 0.0
    %842 = vmatprep.subr.mxu0 0.0
    %843 = vmatpush1.msra.mxu0 0.0
    %844 = vmatprep.subr.mxu0 0.0
    %845 = vmatpush1.msra.mxu0 0.0
    %846 = vmatprep.subr.mxu0 0.0
    %847 = vmatpush1.msra.mxu0 0.0
    %848 = vmatprep.subr.mxu0 0.0
    %849 = vmatpush1.msra.mxu0 0.0
    %850 = vmatprep.subr.mxu0 0.0
    %851 = vmatpush1.msra.mxu0 0.0
    %852 = vmatprep.subr.mxu0 0.0
    %853 = vmatpush1.msra.mxu0 0.0
    %854 = vmatprep.subr.mxu0 0.0
    %855 = vmatpush1.msra.mxu0 0.0
    %856 = vmatprep.subr.mxu0 0.0
    %857 = vmatpush1.msra.mxu0 0.0
    %858 = vmatprep.subr.mxu0 0.0
    %859 = vmatpush1.msra.mxu0 0.0
    %860 = vmatprep.subr.mxu0 0.0
    %861 = vmatpush1.msra.mxu0 0.0
    %862 = vmatprep.subr.mxu0 0.0
    %863 = vmatpush1.msra.mxu0 0.0
    %864 = vmatprep.subr.mxu0 0.0
    %865 = vmatpush1.msra.mxu0 0.0
    %866 = vmatprep.subr.mxu0 0.0
    %867 = vmatpush1.msra.mxu0 0.0
    %868 = vmatprep.subr.mxu0 0.0
    %869 = vmatpush1.msra.mxu0 0.0
    %870 = vmatprep.subr.mxu0 0.0
    %871 = vmatpush1.msra.mxu0 0.0
    %872 = vmatprep.subr.mxu0 0.0
    %873 = vmatpush1.msra.mxu0 0.0
    %874 = vmatprep.subr.mxu0 0.0
    %875 = vmatpush1.msra.mxu0 0.0
    %876 = vmatprep.subr.mxu0 0.0
    %877 = vmatpush1.msra.mxu0 0.0
    %878 = vmatprep.subr.mxu0 0.0
    %879 = vmatpush1.msra.mxu0 0.0
    %880 = vmatprep.subr.mxu0 0.0
    %881 = vmatpush1.msra.mxu0 0.0
    %882 = vmatprep.subr.mxu0 0.0
    %883 = vmatpush1.msra.mxu0 0.0
    %884 = vmatprep.subr.mxu0 0.0
    %885 = vmatpush1.msra.mxu0 0.0
    %886 = vmatprep.subr.mxu0 0.0
    %887 = vmatpush1.msra.mxu0 0.0
    %888 = vmatprep.mubr.f32.mxu0 0.0
    %889 = vmatmul.mubr.f32.gmra.mrb[0].mxu0 %v639
    %v890 = vpop.f32.mrb[0].mxu0
    %v891 = vadd.f32 0.0, %v890
    %v892 = vpop.f32.mrb[0].mxu0
    %893 = vmatprep.mubr.f32.mxu0 0.0
    %894 = vmatmul.mubr.f32.gmra.mrb[0].mxu0 %v642
    %v895 = vpop.f32.mrb[0].mxu0
    %v896 = vadd.f32 0.0, %v895
    %v897 = vpop.f32.mrb[0].mxu0
    %898 = vmatprep.mubr.f32.mxu0 0.0
    %899 = vmatmul.mubr.f32.gmra.mrb[0].mxu0 %v645
    %v900 = vpop.f32.mrb[0].mxu0
    %v901 = vadd.f32 0.0, %v900
    %v902 = vpop.f32.mrb[0].mxu0
    %903 = vmatprep.mubr.f32.mxu0 0.0
    %904 = vmatmul.mubr.f32.gmra.mrb[0].mxu0 %v648
    %v905 = vpop.f32.mrb[0].mxu0
    %v906 = vadd.f32 0.0, %v905
    %v907 = vpop.f32.mrb[0].mxu0
    %908 = vdwg.mxu0
    %909 = vmatprep.subr.mxu0 0.0
    %910 = vmatpush1.msra.mxu0 %v259
    %911 = vmatprep.subr.mxu0 0.0
    %912 = vmatpush1.msra.mxu0 %v260
    %913 = vmatprep.subr.mxu0 0.0
    %914 = vmatpush1.msra.mxu0 %v261
    %915 = vmatprep.subr.mxu0 0.0
    %916 = vmatpush1.msra.mxu0 %v262
    %917 = vmatprep.subr.mxu0 0.0
    %918 = vmatpush1.msra.mxu0 0.0
    %919 = vmatprep.subr.mxu0 0.0
    %920 = vmatpush1.msra.mxu0 0.0
    %921 = vmatprep.subr.mxu0 0.0
    %922 = vmatpush1.msra.mxu0 0.0
    %923 = vmatprep.subr.mxu0 0.0
    %924 = vmatpush1.msra.mxu0 0.0
    %925 = vmatprep.subr.mxu0 0.0
    %926 = vmatpush1.msra.mxu0 0.0
    %927 = vmatprep.subr.mxu0 0.0
    %928 = vmatpush1.msra.mxu0 0.0
    %929 = vmatprep.subr.mxu0 0.0
    %930 = vmatpush1.msra.mxu0 0.0
    %931 = vmatprep.subr.mxu0 0.0
    %932 = vmatpush1.msra.mxu0 0.0
    %933 = vmatprep.subr.mxu0 0.0
    %934 = vmatpush1.msra.mxu0 0.0
    %935 = vmatprep.subr.mxu0 0.0
    %936 = vmatpush1.msra.mxu0 0.0
    %937 = vmatprep.subr.mxu0 0.0
    %938 = vmatpush1.msra.mxu0 0.0
    %939 = vmatprep.subr.mxu0 0.0
    %940 = vmatpush1.msra.mxu0 0.0
    %941 = vmatprep.subr.mxu0 0.0
    %942 = vmatpush1.msra.mxu0 0.0
    %943 = vmatprep.subr.mxu0 0.0
    %944 = vmatpush1.msra.mxu0 0.0
    %945 = vmatprep.subr.mxu0 0.0
    %946 = vmatpush1.msra.mxu0 0.0
    %947 = vmatprep.subr.mxu0 0.0
    %948 = vmatpush1.msra.mxu0 0.0
    %949 = vmatprep.subr.mxu0 0.0
    %950 = vmatpush1.msra.mxu0 0.0
    %951 = vmatprep.subr.mxu0 0.0
    %952 = vmatpush1.msra.mxu0 0.0
    %953 = vmatprep.subr.mxu0 0.0
    %954 = vmatpush1.msra.mxu0 0.0
    %955 = vmatprep.subr.mxu0 0.0
    %956 = vmatpush1.msra.mxu0 0.0
    %957 = vmatprep.subr.mxu0 0.0
    %958 = vmatpush1.msra.mxu0 0.0
    %959 = vmatprep.subr.mxu0 0.0
    %960 = vmatpush1.msra.mxu0 0.0
    %961 = vmatprep.subr.mxu0 0.0
    %962 = vmatpush1.msra.mxu0 0.0
    %963 = vmatprep.subr.mxu0 0.0
    %964 = vmatpush1.msra.mxu0 0.0
    %965 = vmatprep.subr.mxu0 0.0
    %966 = vmatpush1.msra.mxu0 0.0
    %967 = vmatprep.subr.mxu0 0.0
    %968 = vmatpush1.msra.mxu0 0.0
    %969 = vmatprep.subr.mxu0 0.0
    %970 = vmatpush1.msra.mxu0 0.0
    %971 = vmatprep.subr.mxu0 0.0
    %972 = vmatpush1.msra.mxu0 0.0
    %973 = vmatprep.mubr.f32.mxu0 0.0
    %974 = vmatmul.mubr.f32.gmra.mrb[0].mxu0 %v639
    %v975 = vpop.f32.mrb[0].mxu0
    %v976 = vadd.f32 0.0, %v975
    %v977 = vpop.f32.mrb[0].mxu0
    %978 = vmatprep.mubr.f32.mxu0 0.0
    %979 = vmatmul.mubr.f32.gmra.mrb[0].mxu0 %v642
    %v980 = vpop.f32.mrb[0].mxu0
    %v981 = vadd.f32 0.0, %v980
    %v982 = vpop.f32.mrb[0].mxu0
    %983 = vmatprep.mubr.f32.mxu0 0.0
    %984 = vmatmul.mubr.f32.gmra.mrb[0].mxu0 %v645
    %v985 = vpop.f32.mrb[0].mxu0
    %v986 = vadd.f32 0.0, %v985
    %v987 = vpop.f32.mrb[0].mxu0
    %988 = vmatprep.mubr.f32.mxu0 0.0
    %989 = vmatmul.mubr.f32.gmra.mrb[0].mxu0 %v648
    %v990 = vpop.f32.mrb[0].mxu0
    %v991 = vadd.f32 0.0, %v990
    %v992 = vpop.f32.mrb[0].mxu0
    %993 = vdwg.mxu0
    %v994 = vlaneseq
    %v995 = vshrl.u32 %v994, 7
    %v996 = vsub.s32 0, %v995
    %v997 = vrot.slane %v284, %v996
    %998 = vmatprep.subr.mxu0 0.0
    %999 = vmatpush1.msra.mxu0 %v243
    %1000 = vmatprep.subr.mxu0 0.0
    %1001 = vmatpush1.msra.mxu0 %v244
    %1002 = vmatprep.subr.mxu0 0.0
    %1003 = vmatpush1.msra.mxu0 %v245
    %1004 = vmatprep.subr.mxu0 0.0
    %1005 = vmatpush1.msra.mxu0 %v246
    %1006 = vmatprep.subr.mxu0 0.0
    %1007 = vmatpush1.msra.mxu0 0.0
    %1008 = vmatprep.subr.mxu0 0.0
    %1009 = vmatpush1.msra.mxu0 0.0
    %1010 = vmatprep.subr.mxu0 0.0
    %1011 = vmatpush1.msra.mxu0 0.0
    %1012 = vmatprep.subr.mxu0 0.0
    %1013 = vmatpush1.msra.mxu0 0.0
    %1014 = vmatprep.subr.mxu0 0.0
    %1015 = vmatpush1.msra.mxu0 0.0
    %1016 = vmatprep.subr.mxu0 0.0
    %1017 = vmatpush1.msra.mxu0 0.0
    %1018 = vmatprep.subr.mxu0 0.0
    %1019 = vmatpush1.msra.mxu0 0.0
    %1020 = vmatprep.subr.mxu0 0.0
    %1021 = vmatpush1.msra.mxu0 0.0
    %1022 = vmatprep.subr.mxu0 0.0
    %1023 = vmatpush1.msra.mxu0 0.0
    %1024 = vmatprep.subr.mxu0 0.0
    %1025 = vmatpush1.msra.mxu0 0.0
    %1026 = vmatprep.subr.mxu0 0.0
    %1027 = vmatpush1.msra.mxu0 0.0
    %1028 = vmatprep.subr.mxu0 0.0
    %1029 = vmatpush1.msra.mxu0 0.0
    %1030 = vmatprep.subr.mxu0 0.0
    %1031 = vmatpush1.msra.mxu0 0.0
    %1032 = vmatprep.subr.mxu0 0.0
    %1033 = vmatpush1.msra.mxu0 0.0
    %1034 = vmatprep.subr.mxu0 0.0
    %1035 = vmatpush1.msra.mxu0 0.0
    %1036 = vmatprep.subr.mxu0 0.0
    %1037 = vmatpush1.msra.mxu0 0.0
    %1038 = vmatprep.subr.mxu0 0.0
    %1039 = vmatpush1.msra.mxu0 0.0
    %1040 = vmatprep.subr.mxu0 0.0
    %1041 = vmatpush1.msra.mxu0 0.0
    %1042 = vmatprep.subr.mxu0 0.0
    %1043 = vmatpush1.msra.mxu0 0.0
    %1044 = vmatprep.subr.mxu0 0.0
    %1045 = vmatpush1.msra.mxu0 0.0
    %1046 = vmatprep.subr.mxu0 0.0
    %1047 = vmatpush1.msra.mxu0 0.0
    %1048 = vmatprep.subr.mxu0 0.0
    %1049 = vmatpush1.msra.mxu0 0.0
    %1050 = vmatprep.subr.mxu0 0.0
    %1051 = vmatpush1.msra.mxu0 0.0
    %1052 = vmatprep.subr.mxu0 0.0
    %1053 = vmatpush1.msra.mxu0 0.0
    %1054 = vmatprep.subr.mxu0 0.0
    %1055 = vmatpush1.msra.mxu0 0.0
    %1056 = vmatprep.subr.mxu0 0.0
    %1057 = vmatpush1.msra.mxu0 0.0
    %1058 = vmatprep.subr.mxu0 0.0
    %1059 = vmatpush1.msra.mxu0 0.0
    %1060 = vmatprep.subr.mxu0 0.0
    %1061 = vmatpush1.msra.mxu0 0.0
    %1062 = vmatprep.mubr.f32.mxu0 0.0
    %1063 = vmatmul.mubr.f32.gmra.mrb[0].mxu0 %v289
    %v1064 = vpop.f32.mrb[0].mxu0
    %v1065 = vadd.f32 %v997, %v1064
    %v1066 = vpop.f32.mrb[0].mxu0
    %1067 = vdwg.mxu0
    %1068 = vmatprep.subr.mxu0 0.0
    %1069 = vmatpush1.msra.mxu0 %v267
    %1070 = vmatprep.subr.mxu0 0.0
    %1071 = vmatpush1.msra.mxu0 %v268
    %1072 = vmatprep.subr.mxu0 0.0
    %1073 = vmatpush1.msra.mxu0 %v269
    %1074 = vmatprep.subr.mxu0 0.0
    %1075 = vmatpush1.msra.mxu0 %v270
    %1076 = vmatprep.subr.mxu0 0.0
    %1077 = vmatpush1.msra.mxu0 0.0
    %1078 = vmatprep.subr.mxu0 0.0
    %1079 = vmatpush1.msra.mxu0 0.0
    %1080 = vmatprep.subr.mxu0 0.0
    %1081 = vmatpush1.msra.mxu0 0.0
    %1082 = vmatprep.subr.mxu0 0.0
    %1083 = vmatpush1.msra.mxu0 0.0
    %1084 = vmatprep.subr.mxu0 0.0
    %1085 = vmatpush1.msra.mxu0 0.0
    %1086 = vmatprep.subr.mxu0 0.0
    %1087 = vmatpush1.msra.mxu0 0.0
    %1088 = vmatprep.subr.mxu0 0.0
    %1089 = vmatpush1.msra.mxu0 0.0
    %1090 = vmatprep.subr.mxu0 0.0
    %1091 = vmatpush1.msra.mxu0 0.0
    %1092 = vmatprep.subr.mxu0 0.0
    %1093 = vmatpush1.msra.mxu0 0.0
    %1094 = vmatprep.subr.mxu0 0.0
    %1095 = vmatpush1.msra.mxu0 0.0
    %1096 = vmatprep.subr.mxu0 0.0
    %1097 = vmatpush1.msra.mxu0 0.0
    %1098 = vmatprep.subr.mxu0 0.0
    %1099 = vmatpush1.msra.mxu0 0.0
    %1100 = vmatprep.subr.mxu0 0.0
    %1101 = vmatpush1.msra.mxu0 0.0
    %1102 = vmatprep.subr.mxu0 0.0
    %1103 = vmatpush1.msra.mxu0 0.0
    %1104 = vmatprep.subr.mxu0 0.0
    %1105 = vmatpush1.msra.mxu0 0.0
    %1106 = vmatprep.subr.mxu0 0.0
    %1107 = vmatpush1.msra.mxu0 0.0
    %1108 = vmatprep.subr.mxu0 0.0
    %1109 = vmatpush1.msra.mxu0 0.0
    %1110 = vmatprep.subr.mxu0 0.0
    %1111 = vmatpush1.msra.mxu0 0.0
    %1112 = vmatprep.subr.mxu0 0.0
    %1113 = vmatpush1.msra.mxu0 0.0
    %1114 = vmatprep.subr.mxu0 0.0
    %1115 = vmatpush1.msra.mxu0 0.0
    %1116 = vmatprep.subr.mxu0 0.0
    %1117 = vmatpush1.msra.mxu0 0.0
    %1118 = vmatprep.subr.mxu0 0.0
    %1119 = vmatpush1.msra.mxu0 0.0
    %1120 = vmatprep.subr.mxu0 0.0
    %1121 = vmatpush1.msra.mxu0 0.0
    %1122 = vmatprep.subr.mxu0 0.0
    %1123 = vmatpush1.msra.mxu0 0.0
    %1124 = vmatprep.subr.mxu0 0.0
    %1125 = vmatpush1.msra.mxu0 0.0
    %1126 = vmatprep.subr.mxu0 0.0
    %1127 = vmatpush1.msra.mxu0 0.0
    %1128 = vmatprep.subr.mxu0 0.0
    %1129 = vmatpush1.msra.mxu0 0.0
    %1130 = vmatprep.subr.mxu0 0.0
    %1131 = vmatpush1.msra.mxu0 0.0
    %1132 = vmatprep.mubr.f32.mxu0 0.0
    %1133 = vmatmul.mubr.f32.gmra.mrb[0].mxu0 %v289
    %v1134 = vpop.f32.mrb[0].mxu0
    %v1135 = vadd.f32 0.0, %v1134
    %v1136 = vpop.f32.mrb[0].mxu0
    %1137 = vdwg.mxu0
    %v1138 = vrot.slane %v117, 5
    %v1139 = vsel %vm46, %v1138, 0
    %1141 = vmatprep.subr.mxu0 0.0
    %1142 = vmatpush1.msra.mxu0 %v263
    %1143 = vmatprep.subr.mxu0 0.0
    %1144 = vmatpush1.msra.mxu0 %v264
    %1145 = vmatprep.subr.mxu0 0.0
    %1146 = vmatpush1.msra.mxu0 %v265
    %1147 = vmatprep.subr.mxu0 0.0
    %1148 = vmatpush1.msra.mxu0 %v266
    %1149 = vmatprep.subr.mxu0 0.0
    %1150 = vmatpush1.msra.mxu0 0.0
    %1151 = vmatprep.subr.mxu0 0.0
    %1152 = vmatpush1.msra.mxu0 0.0
    %1153 = vmatprep.subr.mxu0 0.0
    %1154 = vmatpush1.msra.mxu0 0.0
    %1155 = vmatprep.subr.mxu0 0.0
    %1156 = vmatpush1.msra.mxu0 0.0
    %1157 = vmatprep.subr.mxu0 0.0
    %1158 = vmatpush1.msra.mxu0 0.0
    %1159 = vmatprep.subr.mxu0 0.0
    %1160 = vmatpush1.msra.mxu0 0.0
    %1161 = vmatprep.subr.mxu0 0.0
    %1162 = vmatpush1.msra.mxu0 0.0
    %1163 = vmatprep.subr.mxu0 0.0
    %1164 = vmatpush1.msra.mxu0 0.0
    %1165 = vmatprep.subr.mxu0 0.0
    %1166 = vmatpush1.msra.mxu0 0.0
    %1167 = vmatprep.subr.mxu0 0.0
    %1168 = vmatpush1.msra.mxu0 0.0
    %1169 = vmatprep.subr.mxu0 0.0
    %1170 = vmatpush1.msra.mxu0 0.0
    %1171 = vmatprep.subr.mxu0 0.0
    %1172 = vmatpush1.msra.mxu0 0.0
    %1173 = vmatprep.subr.mxu0 0.0
    %1174 = vmatpush1.msra.mxu0 0.0
    %1175 = vmatprep.subr.mxu0 0.0
    %1176 = vmatpush1.msra.mxu0 0.0
    %1177 = vmatprep.subr.mxu0 0.0
    %1178 = vmatpush1.msra.mxu0 0.0
    %1179 = vmatprep.subr.mxu0 0.0
    %1180 = vmatpush1.msra.mxu0 0.0
    %1181 = vmatprep.subr.mxu0 0.0
    %1182 = vmatpush1.msra.mxu0 0.0
    %1183 = vmatprep.subr.mxu0 0.0
    %1184 = vmatpush1.msra.mxu0 0.0
    %1185 = vmatprep.subr.mxu0 0.0
    %1186 = vmatpush1.msra.mxu0 0.0
    %1187 = vmatprep.subr.mxu0 0.0
    %1188 = vmatpush1.msra.mxu0 0.0
    %1189 = vmatprep.subr.mxu0 0.0
    %1190 = vmatpush1.msra.mxu0 0.0
    %1191 = vmatprep.subr.mxu0 0.0
    %1192 = vmatpush1.msra.mxu0 0.0
    %1193 = vmatprep.subr.mxu0 0.0
    %1194 = vmatpush1.msra.mxu0 0.0
    %1195 = vmatprep.subr.mxu0 0.0
    %1196 = vmatpush1.msra.mxu0 0.0
    %1197 = vmatprep.subr.mxu0 0.0
    %1198 = vmatpush1.msra.mxu0 0.0
    %1199 = vmatprep.subr.mxu0 0.0
    %1200 = vmatpush1.msra.mxu0 0.0
    %1201 = vmatprep.subr.mxu0 0.0
    %1202 = vmatpush1.msra.mxu0 0.0
    %1203 = vmatprep.subr.mxu0 0.0
    %1204 = vmatpush1.msra.mxu0 0.0
    %1205 = vmatprep.mubr.f32.mxu0 0.0
    %1206 = vmatmul.mubr.f32.gmra.mrb[0].mxu0 %v1139
    %v1207 = vpop.f32.mrb[0].mxu0
    %v1208 = vadd.f32 %v1135, %v1207
    %v1209 = vpop.f32.mrb[0].mxu0
    %1210 = vdwg.mxu0
    %v1212 = vsel %vm46, %v1065, 0
    %v1215 = vsel %vm46, %v717, 0
    %v1218 = vsel %vm46, %v722, 0
    %v1221 = vsel %vm46, %v727, 0
    %v1224 = vsel %vm46, %v732, 0
    %1226 = vmatprep.subr.mxu0 0.0
    %1227 = vmatpush1.xpose.msra.mxu0 %v1215
    %1228 = vmatprep.subr.mxu0 0.0
    %1229 = vmatpush1.xpose.msra.mxu0 %v1218
    %1230 = vmatprep.subr.mxu0 0.0
    %1231 = vmatpush1.xpose.msra.mxu0 %v1221
    %1232 = vmatprep.subr.mxu0 0.0
    %1233 = vmatpush1.xpose.msra.mxu0 %v1224
    %1234 = vmatprep.subr.mxu0 0.0
    %1235 = vmatpush1.xpose.msra.mxu0 0.0
    %1236 = vmatprep.subr.mxu0 0.0
    %1237 = vmatpush1.xpose.msra.mxu0 0.0
    %1238 = vmatprep.subr.mxu0 0.0
    %1239 = vmatpush1.xpose.msra.mxu0 0.0
    %1240 = vmatprep.subr.mxu0 0.0
    %1241 = vmatpush1.xpose.msra.mxu0 0.0
    %1242 = vmatprep.subr.mxu0 0.0
    %1243 = vmatpush1.xpose.msra.mxu0 0.0
    %1244 = vmatprep.subr.mxu0 0.0
    %1245 = vmatpush1.xpose.msra.mxu0 0.0
    %1246 = vmatprep.subr.mxu0 0.0
    %1247 = vmatpush1.xpose.msra.mxu0 0.0
    %1248 = vmatprep.subr.mxu0 0.0
    %1249 = vmatpush1.xpose.msra.mxu0 0.0
    %1250 = vmatprep.subr.mxu0 0.0
    %1251 = vmatpush1.xpose.msra.mxu0 0.0
    %1252 = vmatprep.subr.mxu0 0.0
    %1253 = vmatpush1.xpose.msra.mxu0 0.0
    %1254 = vmatprep.subr.mxu0 0.0
    %1255 = vmatpush1.xpose.msra.mxu0 0.0
    %1256 = vmatprep.subr.mxu0 0.0
    %1257 = vmatpush1.xpose.msra.mxu0 0.0
    %1258 = vmatprep.subr.mxu0 0.0
    %1259 = vmatpush1.xpose.msra.mxu0 0.0
    %1260 = vmatprep.subr.mxu0 0.0
    %1261 = vmatpush1.xpose.msra.mxu0 0.0
    %1262 = vmatprep.subr.mxu0 0.0
    %1263 = vmatpush1.xpose.msra.mxu0 0.0
    %1264 = vmatprep.subr.mxu0 0.0
    %1265 = vmatpush1.xpose.msra.mxu0 0.0
    %1266 = vmatprep.subr.mxu0 0.0
    %1267 = vmatpush1.xpose.msra.mxu0 0.0
    %1268 = vmatprep.subr.mxu0 0.0
    %1269 = vmatpush1.xpose.msra.mxu0 0.0
    %1270 = vmatprep.subr.mxu0 0.0
    %1271 = vmatpush1.xpose.msra.mxu0 0.0
    %1272 = vmatprep.subr.mxu0 0.0
    %1273 = vmatpush1.xpose.msra.mxu0 0.0
    %1274 = vmatprep.subr.mxu0 0.0
    %1275 = vmatpush1.xpose.msra.mxu0 0.0
    %1276 = vmatprep.subr.mxu0 0.0
    %1277 = vmatpush1.xpose.msra.mxu0 0.0
    %1278 = vmatprep.subr.mxu0 0.0
    %1279 = vmatpush1.xpose.msra.mxu0 0.0
    %1280 = vmatprep.subr.mxu0 0.0
    %1281 = vmatpush1.xpose.msra.mxu0 0.0
    %1282 = vmatprep.subr.mxu0 0.0
    %1283 = vmatpush1.xpose.msra.mxu0 0.0
    %1284 = vmatprep.subr.mxu0 0.0
    %1285 = vmatpush1.xpose.msra.mxu0 0.0
    %1286 = vmatprep.subr.mxu0 0.0
    %1287 = vmatpush1.xpose.msra.mxu0 0.0
    %1288 = vmatprep.subr.mxu0 0.0
    %1289 = vmatpush1.xpose.msra.mxu0 0.0
    %1290 = vmatprep.mubr.f32.mxu0 0.0
    %1291 = vmatmul.mubr.f32.gmra.mrb[0].mxu0 %v1212
    %v1292 = vpop.f32.mrb[0].mxu0
    %v1293 = vadd.f32 %v32, %v1292
    %v1294 = vpop.f32.mrb[0].mxu0
    %1295 = vdwg.mxu0
    %v1296 = vsel %vm46, %v1293, -inf
    %1297 = vmax.xlane.f32.xlu0 %v1296
    %v1298 = vpop.xlane.xlu0 %1297
    %v1299 = vsub.f32 %v1293, %v1298
    %v1300 = vmul.f32 %v1299, 1.442695
    %v1301 = vpow.pop %v1300
    %v1302 = vsel %vm46, %v1301, 0.0
    %1303 = vadd.xlane.f32.xlu0 %v1302
    %v1304 = vpop.xlane.xlu0 %1303
    %v1305 = vrcp.pop %v1304
    %v1306 = vmul.f32 %v1301, %v1305
    %v1308 = vsel %vm46, %v1306, 0
    %1310 = vmatprep.subr.mxu0 0.0
    %1311 = vmatpush1.msra.mxu0 %v806
    %1312 = vmatprep.subr.mxu0 0.0
    %1313 = vmatpush1.msra.mxu0 %v811
    %1314 = vmatprep.subr.mxu0 0.0
    %1315 = vmatpush1.msra.mxu0 %v816
    %1316 = vmatprep.subr.mxu0 0.0
    %1317 = vmatpush1.msra.mxu0 %v821
    %1318 = vmatprep.subr.mxu0 0.0
    %1319 = vmatpush1.msra.mxu0 0.0
    %1320 = vmatprep.subr.mxu0 0.0
    %1321 = vmatpush1.msra.mxu0 0.0
    %1322 = vmatprep.subr.mxu0 0.0
    %1323 = vmatpush1.msra.mxu0 0.0
    %1324 = vmatprep.subr.mxu0 0.0
    %1325 = vmatpush1.msra.mxu0 0.0
    %1326 = vmatprep.subr.mxu0 0.0
    %1327 = vmatpush1.msra.mxu0 0.0
    %1328 = vmatprep.subr.mxu0 0.0
    %1329 = vmatpush1.msra.mxu0 0.0
    %1330 = vmatprep.subr.mxu0 0.0
    %1331 = vmatpush1.msra.mxu0 0.0
    %1332 = vmatprep.subr.mxu0 0.0
    %1333 = vmatpush1.msra.mxu0 0.0
    %1334 = vmatprep.subr.mxu0 0.0
    %1335 = vmatpush1.msra.mxu0 0.0
    %1336 = vmatprep.subr.mxu0 0.0
    %1337 = vmatpush1.msra.mxu0 0.0
    %1338 = vmatprep.subr.mxu0 0.0
    %1339 = vmatpush1.msra.mxu0 0.0
    %1340 = vmatprep.subr.mxu0 0.0
    %1341 = vmatpush1.msra.mxu0 0.0
    %1342 = vmatprep.subr.mxu0 0.0
    %1343 = vmatpush1.msra.mxu0 0.0
    %1344 = vmatprep.subr.mxu0 0.0
    %1345 = vmatpush1.msra.mxu0 0.0
    %1346 = vmatprep.subr.mxu0 0.0
    %1347 = vmatpush1.msra.mxu0 0.0
    %1348 = vmatprep.subr.mxu0 0.0
    %1349 = vmatpush1.msra.mxu0 0.0
    %1350 = vmatprep.subr.mxu0 0.0
    %1351 = vmatpush1.msra.mxu0 0.0
    %1352 = vmatprep.subr.mxu0 0.0
    %1353 = vmatpush1.msra.mxu0 0.0
    %1354 = vmatprep.subr.mxu0 0.0
    %1355 = vmatpush1.msra.mxu0 0.0
    %1356 = vmatprep.subr.mxu0 0.0
    %1357 = vmatpush1.msra.mxu0 0.0
    %1358 = vmatprep.subr.mxu0 0.0
    %1359 = vmatpush1.msra.mxu0 0.0
    %1360 = vmatprep.subr.mxu0 0.0
    %1361 = vmatpush1.msra.mxu0 0.0
    %1362 = vmatprep.subr.mxu0 0.0
    %1363 = vmatpush1.msra.mxu0 0.0
    %1364 = vmatprep.subr.mxu0 0.0
    %1365 = vmatpush1.msra.mxu0 0.0
    %1366 = vmatprep.subr.mxu0 0.0
    %1367 = vmatpush1.msra.mxu0 0.0
    %1368 = vmatprep.subr.mxu0 0.0
    %1369 = vmatpush1.msra.mxu0 0.0
    %1370 = vmatprep.subr.mxu0 0.0
    %1371 = vmatpush1.msra.mxu0 0.0
    %1372 = vmatprep.subr.mxu0 0.0
    %1373 = vmatpush1.msra.mxu0 0.0
    %1374 = vmatprep.mubr.f32.mxu0 0.0
    %1375 = vmatmul.mubr.f32.gmra.mrb[0].mxu0 %v1308
    %v1376 = vpop.f32.mrb[0].mxu0
    %v1377 = vadd.f32 0.0, %v1376
    %v1378 = vpop.f32.mrb[0].mxu0
    %1379 = vdwg.mxu0
    %v1380 = vlaneseq
    %v1381 = vshrl.u32 %v1380, 7
    %v1382 = vsub.s32 0, %v1381
    %v1383 = vrot.slane %v287, %v1382
    %v1385 = vsel %vm46, %v1377, 0
    %1387 = vmatprep.subr.mxu0 0.0
    %1388 = vmatpush1.msra.mxu0 %v271
    %1389 = vmatprep.subr.mxu0 0.0
    %1390 = vmatpush1.msra.mxu0 %v272
    %1391 = vmatprep.subr.mxu0 0.0
    %1392 = vmatpush1.msra.mxu0 %v273
    %1393 = vmatprep.subr.mxu0 0.0
    %1394 = vmatpush1.msra.mxu0 %v274
    %1395 = vmatprep.subr.mxu0 0.0
    %1396 = vmatpush1.msra.mxu0 0.0
    %1397 = vmatprep.subr.mxu0 0.0
    %1398 = vmatpush1.msra.mxu0 0.0
    %1399 = vmatprep.subr.mxu0 0.0
    %1400 = vmatpush1.msra.mxu0 0.0
    %1401 = vmatprep.subr.mxu0 0.0
    %1402 = vmatpush1.msra.mxu0 0.0
    %1403 = vmatprep.subr.mxu0 0.0
    %1404 = vmatpush1.msra.mxu0 0.0
    %1405 = vmatprep.subr.mxu0 0.0
    %1406 = vmatpush1.msra.mxu0 0.0
    %1407 = vmatprep.subr.mxu0 0.0
    %1408 = vmatpush1.msra.mxu0 0.0
    %1409 = vmatprep.subr.mxu0 0.0
    %1410 = vmatpush1.msra.mxu0 0.0
    %1411 = vmatprep.subr.mxu0 0.0
    %1412 = vmatpush1.msra.mxu0 0.0
    %1413 = vmatprep.subr.mxu0 0.0
    %1414 = vmatpush1.msra.mxu0 0.0
    %1415 = vmatprep.subr.mxu0 0.0
    %1416 = vmatpush1.msra.mxu0 0.0
    %1417 = vmatprep.subr.mxu0 0.0
    %1418 = vmatpush1.msra.mxu0 0.0
    %1419 = vmatprep.subr.mxu0 0.0
    %1420 = vmatpush1.msra.mxu0 0.0
    %1421 = vmatprep.subr.mxu0 0.0
    %1422 = vmatpush1.msra.mxu0 0.0
    %1423 = vmatprep.subr.mxu0 0.0
    %1424 = vmatpush1.msra.mxu0 0.0
    %1425 = vmatprep.subr.mxu0 0.0
    %1426 = vmatpush1.msra.mxu0 0.0
    %1427 = vmatprep.subr.mxu0 0.0
    %1428 = vmatpush1.msra.mxu0 0.0
    %1429 = vmatprep.subr.mxu0 0.0
    %1430 = vmatpush1.msra.mxu0 0.0
    %1431 = vmatprep.subr.mxu0 0.0
    %1432 = vmatpush1.msra.mxu0 0.0
    %1433 = vmatprep.subr.mxu0 0.0
    %1434 = vmatpush1.msra.mxu0 0.0
    %1435 = vmatprep.subr.mxu0 0.0
    %1436 = vmatpush1.msra.mxu0 0.0
    %1437 = vmatprep.subr.mxu0 0.0
    %1438 = vmatpush1.msra.mxu0 0.0
    %1439 = vmatprep.subr.mxu0 0.0
    %1440 = vmatpush1.msra.mxu0 0.0
    %1441 = vmatprep.subr.mxu0 0.0
    %1442 = vmatpush1.msra.mxu0 0.0
    %1443 = vmatprep.subr.mxu0 0.0
    %1444 = vmatpush1.msra.mxu0 0.0
    %1445 = vmatprep.subr.mxu0 0.0
    %1446 = vmatpush1.msra.mxu0 0.0
    %1447 = vmatprep.subr.mxu0 0.0
    %1448 = vmatpush1.msra.mxu0 0.0
    %1449 = vmatprep.subr.mxu0 0.0
    %1450 = vmatpush1.msra.mxu0 0.0
    %1451 = vmatprep.mubr.f32.mxu0 0.0
    %1452 = vmatmul.mubr.f32.gmra.mrb[0].mxu0 %v1385
    %v1453 = vpop.f32.mrb[0].mxu0
    %v1454 = vadd.f32 %v1383, %v1453
    %v1455 = vpop.f32.mrb[0].mxu0
    %1456 = vdwg.mxu0
    %v1458 = vsel %vm46, %v1208, 0
    %v1461 = vsel %vm46, %v891, 0
    %v1464 = vsel %vm46, %v896, 0
    %v1467 = vsel %vm46, %v901, 0
    %v1470 = vsel %vm46, %v906, 0
    %1472 = vmatprep.subr.mxu0 0.0
    %1473 = vmatpush1.xpose.msra.mxu0 %v1461
    %1474 = vmatprep.subr.mxu0 0.0
    %1475 = vmatpush1.xpose.msra.mxu0 %v1464
    %1476 = vmatprep.subr.mxu0 0.0
    %1477 = vmatpush1.xpose.msra.mxu0 %v1467
    %1478 = vmatprep.subr.mxu0 0.0
    %1479 = vmatpush1.xpose.msra.mxu0 %v1470
    %1480 = vmatprep.subr.mxu0 0.0
    %1481 = vmatpush1.xpose.msra.mxu0 0.0
    %1482 = vmatprep.subr.mxu0 0.0
    %1483 = vmatpush1.xpose.msra.mxu0 0.0
    %1484 = vmatprep.subr.mxu0 0.0
    %1485 = vmatpush1.xpose.msra.mxu0 0.0
    %1486 = vmatprep.subr.mxu0 0.0
    %1487 = vmatpush1.xpose.msra.mxu0 0.0
    %1488 = vmatprep.subr.mxu0 0.0
    %1489 = vmatpush1.xpose.msra.mxu0 0.0
    %1490 = vmatprep.subr.mxu0 0.0
    %1491 = vmatpush1.xpose.msra.mxu0 0.0
    %1492 = vmatprep.subr.mxu0 0.0
    %1493 = vmatpush1.xpose.msra.mxu0 0.0
    %1494 = vmatprep.subr.mxu0 0.0
    %1495 = vmatpush1.xpose.msra.mxu0 0.0
    %1496 = vmatprep.subr.mxu0 0.0
    %1497 = vmatpush1.xpose.msra.mxu0 0.0
    %1498 = vmatprep.subr.mxu0 0.0
    %1499 = vmatpush1.xpose.msra.mxu0 0.0
    %1500 = vmatprep.subr.mxu0 0.0
    %1501 = vmatpush1.xpose.msra.mxu0 0.0
    %1502 = vmatprep.subr.mxu0 0.0
    %1503 = vmatpush1.xpose.msra.mxu0 0.0
    %1504 = vmatprep.subr.mxu0 0.0
    %1505 = vmatpush1.xpose.msra.mxu0 0.0
    %1506 = vmatprep.subr.mxu0 0.0
    %1507 = vmatpush1.xpose.msra.mxu0 0.0
    %1508 = vmatprep.subr.mxu0 0.0
    %1509 = vmatpush1.xpose.msra.mxu0 0.0
    %1510 = vmatprep.subr.mxu0 0.0
    %1511 = vmatpush1.xpose.msra.mxu0 0.0
    %1512 = vmatprep.subr.mxu0 0.0
    %1513 = vmatpush1.xpose.msra.mxu0 0.0
    %1514 = vmatprep.subr.mxu0 0.0
    %1515 = vmatpush1.xpose.msra.mxu0 0.0
    %1516 = vmatprep.subr.mxu0 0.0
    %1517 = vmatpush1.xpose.msra.mxu0 0.0
    %1518 = vmatprep.subr.mxu0 0.0
    %1519 = vmatpush1.xpose.msra.mxu0 0.0
    %1520 = vmatprep.subr.mxu0 0.0
    %1521 = vmatpush1.xpose.msra.mxu0 0.0
    %1522 = vmatprep.subr.mxu0 0.0
    %1523 = vmatpush1.xpose.msra.mxu0 0.0
    %1524 = vmatprep.subr.mxu0 0.0
    %1525 = vmatpush1.xpose.msra.mxu0 0.0
    %1526 = vmatprep.subr.mxu0 0.0
    %1527 = vmatpush1.xpose.msra.mxu0 0.0
    %1528 = vmatprep.subr.mxu0 0.0
    %1529 = vmatpush1.xpose.msra.mxu0 0.0
    %1530 = vmatprep.subr.mxu0 0.0
    %1531 = vmatpush1.xpose.msra.mxu0 0.0
    %1532 = vmatprep.subr.mxu0 0.0
    %1533 = vmatpush1.xpose.msra.mxu0 0.0
    %1534 = vmatprep.subr.mxu0 0.0
    %1535 = vmatpush1.xpose.msra.mxu0 0.0
    %1536 = vmatprep.mubr.f32.mxu0 0.0
    %1537 = vmatmul.mubr.f32.gmra.mrb[0].mxu0 %v1458
    %v1538 = vpop.f32.mrb[0].mxu0
    %v1539 = vadd.f32 %v33, %v1538
    %v1540 = vpop.f32.mrb[0].mxu0
    %1541 = vdwg.mxu0
    %vm1542 = vcmask 253952
    %v1543 = vsel %vm1542, %v1539, -inf
    %1544 = vmax.xlane.f32.xlu0 %v1543
    %v1545 = vpop.xlane.xlu0 %1544
    %v1546 = vsub.f32 %v1539, %v1545
    %v1547 = vmul.f32 %v1546, 1.442695
    %v1548 = vpow.pop %v1547
    %v1549 = vsel %vm1542, %v1548, 0.0
    %1550 = vadd.xlane.f32.xlu0 %v1549
    %v1551 = vpop.xlane.xlu0 %1550
    %v1552 = vrcp.pop %v1551
    %v1553 = vmul.f32 %v1548, %v1552
    %v1555 = vsel %vm46, %v1553, 0
    %1557 = vmatprep.subr.mxu0 0.0
    %1558 = vmatpush1.msra.mxu0 %v976
    %1559 = vmatprep.subr.mxu0 0.0
    %1560 = vmatpush1.msra.mxu0 %v981
    %1561 = vmatprep.subr.mxu0 0.0
    %1562 = vmatpush1.msra.mxu0 %v986
    %1563 = vmatprep.subr.mxu0 0.0
    %1564 = vmatpush1.msra.mxu0 %v991
    %1565 = vmatprep.subr.mxu0 0.0
    %1566 = vmatpush1.msra.mxu0 0.0
    %1567 = vmatprep.subr.mxu0 0.0
    %1568 = vmatpush1.msra.mxu0 0.0
    %1569 = vmatprep.subr.mxu0 0.0
    %1570 = vmatpush1.msra.mxu0 0.0
    %1571 = vmatprep.subr.mxu0 0.0
    %1572 = vmatpush1.msra.mxu0 0.0
    %1573 = vmatprep.subr.mxu0 0.0
    %1574 = vmatpush1.msra.mxu0 0.0
    %1575 = vmatprep.subr.mxu0 0.0
    %1576 = vmatpush1.msra.mxu0 0.0
    %1577 = vmatprep.subr.mxu0 0.0
    %1578 = vmatpush1.msra.mxu0 0.0
    %1579 = vmatprep.subr.mxu0 0.0
    %1580 = vmatpush1.msra.mxu0 0.0
    %1581 = vmatprep.subr.mxu0 0.0
    %1582 = vmatpush1.msra.mxu0 0.0
    %1583 = vmatprep.subr.mxu0 0.0
    %1584 = vmatpush1.msra.mxu0 0.0
    %1585 = vmatprep.subr.mxu0 0.0
    %1586 = vmatpush1.msra.mxu0 0.0
    %1587 = vmatprep.subr.mxu0 0.0
    %1588 = vmatpush1.msra.mxu0 0.0
    %1589 = vmatprep.subr.mxu0 0.0
    %1590 = vmatpush1.msra.mxu0 0.0
    %1591 = vmatprep.subr.mxu0 0.0
    %1592 = vmatpush1.msra.mxu0 0.0
    %1593 = vmatprep.subr.mxu0 0.0
    %1594 = vmatpush1.msra.mxu0 0.0
    %1595 = vmatprep.subr.mxu0 0.0
    %1596 = vmatpush1.msra.mxu0 0.0
    %1597 = vmatprep.subr.mxu0 0.0
    %1598 = vmatpush1.msra.mxu0 0.0
    %1599 = vmatprep.subr.mxu0 0.0
    %1600 = vmatpush1.msra.mxu0 0.0
    %1601 = vmatprep.subr.mxu0 0.0
    %1602 = vmatpush1.msra.mxu0 0.0
    %1603 = vmatprep.subr.mxu0 0.0
    %1604 = vmatpush1.msra.mxu0 0.0
    %1605 = vmatprep.subr.mxu0 0.0
    %1606 = vmatpush1.msra.mxu0 0.0
    %1607 = vmatprep.subr.mxu0 0.0
    %1608 = vmatpush1.msra.mxu0 0.0
    %1609 = vmatprep.subr.mxu0 0.0
    %1610 = vmatpush1.msra.mxu0 0.0
    %1611 = vmatprep.subr.mxu0 0.0
    %1612 = vmatpush1.msra.mxu0 0.0
    %1613 = vmatprep.subr.mxu0 0.0
    %1614 = vmatpush1.msra.mxu0 0.0
    %1615 = vmatprep.subr.mxu0 0.0
    %1616 = vmatpush1.msra.mxu0 0.0
    %1617 = vmatprep.subr.mxu0 0.0
    %1618 = vmatpush1.msra.mxu0 0.0
    %1619 = vmatprep.subr.mxu0 0.0
    %1620 = vmatpush1.msra.mxu0 0.0
    %1621 = vmatprep.mubr.f32.mxu0 0.0
    %1622 = vmatmul.mubr.f32.gmra.mrb[0].mxu0 %v1555
    %v1623 = vpop.f32.mrb[0].mxu0
    %v1624 = vadd.f32 0.0, %v1623
    %v1625 = vpop.f32.mrb[0].mxu0
    %1626 = vdwg.mxu0
    %v1628 = vsel %vm46, %v1624, 0
    %1630 = vmatprep.subr.mxu0 0.0
    %1631 = vmatpush1.msra.mxu0 %v271
    %1632 = vmatprep.subr.mxu0 0.0
    %1633 = vmatpush1.msra.mxu0 %v272
    %1634 = vmatprep.subr.mxu0 0.0
    %1635 = vmatpush1.msra.mxu0 %v273
    %1636 = vmatprep.subr.mxu0 0.0
    %1637 = vmatpush1.msra.mxu0 %v274
    %1638 = vmatprep.subr.mxu0 0.0
    %1639 = vmatpush1.msra.mxu0 0.0
    %1640 = vmatprep.subr.mxu0 0.0
    %1641 = vmatpush1.msra.mxu0 0.0
    %1642 = vmatprep.subr.mxu0 0.0
    %1643 = vmatpush1.msra.mxu0 0.0
    %1644 = vmatprep.subr.mxu0 0.0
    %1645 = vmatpush1.msra.mxu0 0.0
    %1646 = vmatprep.subr.mxu0 0.0
    %1647 = vmatpush1.msra.mxu0 0.0
    %1648 = vmatprep.subr.mxu0 0.0
    %1649 = vmatpush1.msra.mxu0 0.0
    %1650 = vmatprep.subr.mxu0 0.0
    %1651 = vmatpush1.msra.mxu0 0.0
    %1652 = vmatprep.subr.mxu0 0.0
    %1653 = vmatpush1.msra.mxu0 0.0
    %1654 = vmatprep.subr.mxu0 0.0
    %1655 = vmatpush1.msra.mxu0 0.0
    %1656 = vmatprep.subr.mxu0 0.0
    %1657 = vmatpush1.msra.mxu0 0.0
    %1658 = vmatprep.subr.mxu0 0.0
    %1659 = vmatpush1.msra.mxu0 0.0
    %1660 = vmatprep.subr.mxu0 0.0
    %1661 = vmatpush1.msra.mxu0 0.0
    %1662 = vmatprep.subr.mxu0 0.0
    %1663 = vmatpush1.msra.mxu0 0.0
    %1664 = vmatprep.subr.mxu0 0.0
    %1665 = vmatpush1.msra.mxu0 0.0
    %1666 = vmatprep.subr.mxu0 0.0
    %1667 = vmatpush1.msra.mxu0 0.0
    %1668 = vmatprep.subr.mxu0 0.0
    %1669 = vmatpush1.msra.mxu0 0.0
    %1670 = vmatprep.subr.mxu0 0.0
    %1671 = vmatpush1.msra.mxu0 0.0
    %1672 = vmatprep.subr.mxu0 0.0
    %1673 = vmatpush1.msra.mxu0 0.0
    %1674 = vmatprep.subr.mxu0 0.0
    %1675 = vmatpush1.msra.mxu0 0.0
    %1676 = vmatprep.subr.mxu0 0.0
    %1677 = vmatpush1.msra.mxu0 0.0
    %1678 = vmatprep.subr.mxu0 0.0
    %1679 = vmatpush1.msra.mxu0 0.0
    %1680 = vmatprep.subr.mxu0 0.0
    %1681 = vmatpush1.msra.mxu0 0.0
    %1682 = vmatprep.subr.mxu0 0.0
    %1683 = vmatpush1.msra.mxu0 0.0
    %1684 = vmatprep.subr.mxu0 0.0
    %1685 = vmatpush1.msra.mxu0 0.0
    %1686 = vmatprep.subr.mxu0 0.0
    %1687 = vmatpush1.msra.mxu0 0.0
    %1688 = vmatprep.subr.mxu0 0.0
    %1689 = vmatpush1.msra.mxu0 0.0
    %1690 = vmatprep.subr.mxu0 0.0
    %1691 = vmatpush1.msra.mxu0 0.0
    %1692 = vmatprep.subr.mxu0 0.0
    %1693 = vmatpush1.msra.mxu0 0.0
    %1694 = vmatprep.mubr.f32.mxu0 0.0
    %1695 = vmatmul.mubr.f32.gmra.mrb[0].mxu0 %v1628
    %v1696 = vpop.f32.mrb[0].mxu0
    %v1697 = vadd.f32 %v287, %v1696
    %v1698 = vpop.f32.mrb[0].mxu0
    %1699 = vdwg.mxu0
    %v1701 = vsel %vm46, %v1697, 0
    %1703 = vmatprep.subr.mxu0 0.0
    %1704 = vmatpush1.msra.mxu0 %v279
    %1705 = vmatprep.subr.mxu0 0.0
    %1706 = vmatpush1.msra.mxu0 %v280
    %1707 = vmatprep.subr.mxu0 0.0
    %1708 = vmatpush1.msra.mxu0 %v281
    %1709 = vmatprep.subr.mxu0 0.0
    %1710 = vmatpush1.msra.mxu0 %v282
    %1711 = vmatprep.subr.mxu0 0.0
    %1712 = vmatpush1.msra.mxu0 0.0
    %1713 = vmatprep.subr.mxu0 0.0
    %1714 = vmatpush1.msra.mxu0 0.0
    %1715 = vmatprep.subr.mxu0 0.0
    %1716 = vmatpush1.msra.mxu0 0.0
    %1717 = vmatprep.subr.mxu0 0.0
    %1718 = vmatpush1.msra.mxu0 0.0
    %1719 = vmatprep.subr.mxu0 0.0
    %1720 = vmatpush1.msra.mxu0 0.0
    %1721 = vmatprep.subr.mxu0 0.0
    %1722 = vmatpush1.msra.mxu0 0.0
    %1723 = vmatprep.subr.mxu0 0.0
    %1724 = vmatpush1.msra.mxu0 0.0
    %1725 = vmatprep.subr.mxu0 0.0
    %1726 = vmatpush1.msra.mxu0 0.0
    %1727 = vmatprep.subr.mxu0 0.0
    %1728 = vmatpush1.msra.mxu0 0.0
    %1729 = vmatprep.subr.mxu0 0.0
    %1730 = vmatpush1.msra.mxu0 0.0
    %1731 = vmatprep.subr.mxu0 0.0
    %1732 = vmatpush1.msra.mxu0 0.0
    %1733 = vmatprep.subr.mxu0 0.0
    %1734 = vmatpush1.msra.mxu0 0.0
    %1735 = vmatprep.subr.mxu0 0.0
    %1736 = vmatpush1.msra.mxu0 0.0
    %1737 = vmatprep.subr.mxu0 0.0
    %1738 = vmatpush1.msra.mxu0 0.0
    %1739 = vmatprep.subr.mxu0 0.0
    %1740 = vmatpush1.msra.mxu0 0.0
    %1741 = vmatprep.subr.mxu0 0.0
    %1742 = vmatpush1.msra.mxu0 0.0
    %1743 = vmatprep.subr.mxu0 0.0
    %1744 = vmatpush1.msra.mxu0 0.0
    %1745 = vmatprep.subr.mxu0 0.0
    %1746 = vmatpush1.msra.mxu0 0.0
    %1747 = vmatprep.subr.mxu0 0.0
    %1748 = vmatpush1.msra.mxu0 0.0
    %1749 = vmatprep.subr.mxu0 0.0
    %1750 = vmatpush1.msra.mxu0 0.0
    %1751 = vmatprep.subr.mxu0 0.0
    %1752 = vmatpush1.msra.mxu0 0.0
    %1753 = vmatprep.subr.mxu0 0.0
    %1754 = vmatpush1.msra.mxu0 0.0
    %1755 = vmatprep.subr.mxu0 0.0
    %1756 = vmatpush1.msra.mxu0 0.0
    %1757 = vmatprep.subr.mxu0 0.0
    %1758 = vmatpush1.msra.mxu0 0.0
    %1759 = vmatprep.subr.mxu0 0.0
    %1760 = vmatpush1.msra.mxu0 0.0
    %1761 = vmatprep.subr.mxu0 0.0
    %1762 = vmatpush1.msra.mxu0 0.0
    %1763 = vmatprep.subr.mxu0 0.0
    %1764 = vmatpush1.msra.mxu0 0.0
    %1765 = vmatprep.subr.mxu0 0.0
    %1766 = vmatpush1.msra.mxu0 0.0
    %1767 = vmatprep.mubr.f32.mxu0 0.0
    %1768 = vmatmul.mubr.f32.gmra.mrb[0].mxu0 %v1701
    %v1769 = vpop.f32.mrb[0].mxu0
    %v1770 = vadd.f32 0.0, %v1769
    %v1771 = vpop.f32.mrb[0].mxu0
    %1772 = vdwg.mxu0
    %v1774 = vrot.slane %v1454, 5
    %v1775 = vsel %vm46, %v1774, 0
    %1777 = vmatprep.subr.mxu0 0.0
    %1778 = vmatpush1.msra.mxu0 %v275
    %1779 = vmatprep.subr.mxu0 0.0
    %1780 = vmatpush1.msra.mxu0 %v276
    %1781 = vmatprep.subr.mxu0 0.0
    %1782 = vmatpush1.msra.mxu0 %v277
    %1783 = vmatprep.subr.mxu0 0.0
    %1784 = vmatpush1.msra.mxu0 %v278
    %1785 = vmatprep.subr.mxu0 0.0
    %1786 = vmatpush1.msra.mxu0 0.0
    %1787 = vmatprep.subr.mxu0 0.0
    %1788 = vmatpush1.msra.mxu0 0.0
    %1789 = vmatprep.subr.mxu0 0.0
    %1790 = vmatpush1.msra.mxu0 0.0
    %1791 = vmatprep.subr.mxu0 0.0
    %1792 = vmatpush1.msra.mxu0 0.0
    %1793 = vmatprep.subr.mxu0 0.0
    %1794 = vmatpush1.msra.mxu0 0.0
    %1795 = vmatprep.subr.mxu0 0.0
    %1796 = vmatpush1.msra.mxu0 0.0
    %1797 = vmatprep.subr.mxu0 0.0
    %1798 = vmatpush1.msra.mxu0 0.0
    %1799 = vmatprep.subr.mxu0 0.0
    %1800 = vmatpush1.msra.mxu0 0.0
    %1801 = vmatprep.subr.mxu0 0.0
    %1802 = vmatpush1.msra.mxu0 0.0
    %1803 = vmatprep.subr.mxu0 0.0
    %1804 = vmatpush1.msra.mxu0 0.0
    %1805 = vmatprep.subr.mxu0 0.0
    %1806 = vmatpush1.msra.mxu0 0.0
    %1807 = vmatprep.subr.mxu0 0.0
    %1808 = vmatpush1.msra.mxu0 0.0
    %1809 = vmatprep.subr.mxu0 0.0
    %1810 = vmatpush1.msra.mxu0 0.0
    %1811 = vmatprep.subr.mxu0 0.0
    %1812 = vmatpush1.msra.mxu0 0.0
    %1813 = vmatprep.subr.mxu0 0.0
    %1814 = vmatpush1.msra.mxu0 0.0
    %1815 = vmatprep.subr.mxu0 0.0
    %1816 = vmatpush1.msra.mxu0 0.0
    %1817 = vmatprep.subr.mxu0 0.0
    %1818 = vmatpush1.msra.mxu0 0.0
    %1819 = vmatprep.subr.mxu0 0.0
    %1820 = vmatpush1.msra.mxu0 0.0
    %1821 = vmatprep.subr.mxu0 0.0
    %1822 = vmatpush1.msra.mxu0 0.0
    %1823 = vmatprep.subr.mxu0 0.0
    %1824 = vmatpush1.msra.mxu0 0.0
    %1825 = vmatprep.subr.mxu0 0.0
    %1826 = vmatpush1.msra.mxu0 0.0
    %1827 = vmatprep.subr.mxu0 0.0
    %1828 = vmatpush1.msra.mxu0 0.0
    %1829 = vmatprep.subr.mxu0 0.0
    %1830 = vmatpush1.msra.mxu0 0.0
    %1831 = vmatprep.subr.mxu0 0.0
    %1832 = vmatpush1.msra.mxu0 0.0
    %1833 = vmatprep.subr.mxu0 0.0
    %1834 = vmatpush1.msra.mxu0 0.0
    %1835 = vmatprep.subr.mxu0 0.0
    %1836 = vmatpush1.msra.mxu0 0.0
    %1837 = vmatprep.subr.mxu0 0.0
    %1838 = vmatpush1.msra.mxu0 0.0
    %1839 = vmatprep.subr.mxu0 0.0
    %1840 = vmatpush1.msra.mxu0 0.0
    %1841 = vmatprep.mubr.f32.mxu0 0.0
    %1842 = vmatmul.mubr.f32.gmra.mrb[0].mxu0 %v1775
    %v1843 = vpop.f32.mrb[0].mxu0
    %v1844 = vadd.f32 %v1770, %v1843
    %v1845 = vpop.f32.mrb[0].mxu0
    %1846 = vdwg.mxu0
    %v1847 = vsel %vm46, %v1454, 0
    %1849 = vmatprep.subr.mxu0 0.0
    %1850 = vmatpush1.msra.mxu0 %v279
    %1851 = vmatprep.subr.mxu0 0.0
    %1852 = vmatpush1.msra.mxu0 %v280
    %1853 = vmatprep.subr.mxu0 0.0
    %1854 = vmatpush1.msra.mxu0 %v281
    %1855 = vmatprep.subr.mxu0 0.0
    %1856 = vmatpush1.msra.mxu0 %v282
    %1857 = vmatprep.subr.mxu0 0.0
    %1858 = vmatpush1.msra.mxu0 0.0
    %1859 = vmatprep.subr.mxu0 0.0
    %1860 = vmatpush1.msra.mxu0 0.0
    %1861 = vmatprep.subr.mxu0 0.0
    %1862 = vmatpush1.msra.mxu0 0.0
    %1863 = vmatprep.subr.mxu0 0.0
    %1864 = vmatpush1.msra.mxu0 0.0
    %1865 = vmatprep.subr.mxu0 0.0
    %1866 = vmatpush1.msra.mxu0 0.0
    %1867 = vmatprep.subr.mxu0 0.0
    %1868 = vmatpush1.msra.mxu0 0.0
    %1869 = vmatprep.subr.mxu0 0.0
    %1870 = vmatpush1.msra.mxu0 0.0
    %1871 = vmatprep.subr.mxu0 0.0
    %1872 = vmatpush1.msra.mxu0 0.0
    %1873 = vmatprep.subr.mxu0 0.0
    %1874 = vmatpush1.msra.mxu0 0.0
    %1875 = vmatprep.subr.mxu0 0.0
    %1876 = vmatpush1.msra.mxu0 0.0
    %1877 = vmatprep.subr.mxu0 0.0
    %1878 = vmatpush1.msra.mxu0 0.0
    %1879 = vmatprep.subr.mxu0 0.0
    %1880 = vmatpush1.msra.mxu0 0.0
    %1881 = vmatprep.subr.mxu0 0.0
    %1882 = vmatpush1.msra.mxu0 0.0
    %1883 = vmatprep.subr.mxu0 0.0
    %1884 = vmatpush1.msra.mxu0 0.0
    %1885 = vmatprep.subr.mxu0 0.0
    %1886 = vmatpush1.msra.mxu0 0.0
    %1887 = vmatprep.subr.mxu0 0.0
    %1888 = vmatpush1.msra.mxu0 0.0
    %1889 = vmatprep.subr.mxu0 0.0
    %1890 = vmatpush1.msra.mxu0 0.0
    %1891 = vmatprep.subr.mxu0 0.0
    %1892 = vmatpush1.msra.mxu0 0.0
    %1893 = vmatprep.subr.mxu0 0.0
    %1894 = vmatpush1.msra.mxu0 0.0
    %1895 = vmatprep.subr.mxu0 0.0
    %1896 = vmatpush1.msra.mxu0 0.0
    %1897 = vmatprep.subr.mxu0 0.0
    %1898 = vmatpush1.msra.mxu0 0.0
    %1899 = vmatprep.subr.mxu0 0.0
    %1900 = vmatpush1.msra.mxu0 0.0
    %1901 = vmatprep.subr.mxu0 0.0
    %1902 = vmatpush1.msra.mxu0 0.0
    %1903 = vmatprep.subr.mxu0 0.0
    %1904 = vmatpush1.msra.mxu0 0.0
    %1905 = vmatprep.subr.mxu0 0.0
    %1906 = vmatpush1.msra.mxu0 0.0
    %1907 = vmatprep.subr.mxu0 0.0
    %1908 = vmatpush1.msra.mxu0 0.0
    %1909 = vmatprep.subr.mxu0 0.0
    %1910 = vmatpush1.msra.mxu0 0.0
    %1911 = vmatprep.subr.mxu0 0.0
    %1912 = vmatpush1.msra.mxu0 0.0
    %1913 = vmatprep.mubr.f32.mxu0 0.0
    %1914 = vmatmul.mubr.f32.gmra.mrb[0].mxu0 %v1847
    %v1915 = vpop.f32.mrb[0].mxu0
    %v1916 = vadd.f32 0.0, %v1915
    %v1917 = vpop.f32.mrb[0].mxu0
    %1918 = vdwg.mxu0
    %1919 = vmatprep.subr.mxu0 0.0
    %1920 = vmatpush1.msra.mxu0 %v275
    %1921 = vmatprep.subr.mxu0 0.0
    %1922 = vmatpush1.msra.mxu0 %v276
    %1923 = vmatprep.subr.mxu0 0.0
    %1924 = vmatpush1.msra.mxu0 %v277
    %1925 = vmatprep.subr.mxu0 0.0
    %1926 = vmatpush1.msra.mxu0 %v278
    %1927 = vmatprep.subr.mxu0 0.0
    %1928 = vmatpush1.msra.mxu0 0.0
    %1929 = vmatprep.subr.mxu0 0.0
    %1930 = vmatpush1.msra.mxu0 0.0
    %1931 = vmatprep.subr.mxu0 0.0
    %1932 = vmatpush1.msra.mxu0 0.0
    %1933 = vmatprep.subr.mxu0 0.0
    %1934 = vmatpush1.msra.mxu0 0.0
    %1935 = vmatprep.subr.mxu0 0.0
    %1936 = vmatpush1.msra.mxu0 0.0
    %1937 = vmatprep.subr.mxu0 0.0
    %1938 = vmatpush1.msra.mxu0 0.0
    %1939 = vmatprep.subr.mxu0 0.0
    %1940 = vmatpush1.msra.mxu0 0.0
    %1941 = vmatprep.subr.mxu0 0.0
    %1942 = vmatpush1.msra.mxu0 0.0
    %1943 = vmatprep.subr.mxu0 0.0
    %1944 = vmatpush1.msra.mxu0 0.0
    %1945 = vmatprep.subr.mxu0 0.0
    %1946 = vmatpush1.msra.mxu0 0.0
    %1947 = vmatprep.subr.mxu0 0.0
    %1948 = vmatpush1.msra.mxu0 0.0
    %1949 = vmatprep.subr.mxu0 0.0
    %1950 = vmatpush1.msra.mxu0 0.0
    %1951 = vmatprep.subr.mxu0 0.0
    %1952 = vmatpush1.msra.mxu0 0.0
    %1953 = vmatprep.subr.mxu0 0.0
    %1954 = vmatpush1.msra.mxu0 0.0
    %1955 = vmatprep.subr.mxu0 0.0
    %1956 = vmatpush1.msra.mxu0 0.0
    %1957 = vmatprep.subr.mxu0 0.0
    %1958 = vmatpush1.msra.mxu0 0.0
    %1959 = vmatprep.subr.mxu0 0.0
    %1960 = vmatpush1.msra.mxu0 0.0
    %1961 = vmatprep.subr.mxu0 0.0
    %1962 = vmatpush1.msra.mxu0 0.0
    %1963 = vmatprep.subr.mxu0 0.0
    %1964 = vmatpush1.msra.mxu0 0.0
    %1965 = vmatprep.subr.mxu0 0.0
    %1966 = vmatpush1.msra.mxu0 0.0
    %1967 = vmatprep.subr.mxu0 0.0
    %1968 = vmatpush1.msra.mxu0 0.0
    %1969 = vmatprep.subr.mxu0 0.0
    %1970 = vmatpush1.msra.mxu0 0.0
    %1971 = vmatprep.subr.mxu0 0.0
    %1972 = vmatpush1.msra.mxu0 0.0
    %1973 = vmatprep.subr.mxu0 0.0
    %1974 = vmatpush1.msra.mxu0 0.0
    %1975 = vmatprep.subr.mxu0 0.0
    %1976 = vmatpush1.msra.mxu0 0.0
    %1977 = vmatprep.subr.mxu0 0.0
    %1978 = vmatpush1.msra.mxu0 0.0
    %1979 = vmatprep.subr.mxu0 0.0
    %1980 = vmatpush1.msra.mxu0 0.0
    %1981 = vmatprep.subr.mxu0 0.0
    %1982 = vmatpush1.msra.mxu0 0.0
    %1983 = vmatprep.mubr.f32.mxu0 0.0
    %1984 = vmatmul.mubr.f32.gmra.mrb[0].mxu0 %v1701
    %v1985 = vpop.f32.mrb[0].mxu0
    %v1986 = vadd.f32 %v1916, %v1985
    %v1987 = vpop.f32.mrb[0].mxu0
    %1988 = vdwg.mxu0
    %v1989 = vsub.f32 1.0, %v227
    %v1990 = vsub.f32 %v1989, %v230
    %v1991 = vmul.f32 %v1454, %v1990
    %v1992 = vlaneseq
    %v1993 = vshrl.u32 %v1992, 7
    %v1994 = vsub.s32 0, %v1993
    %v1995 = vrot.slane %v1844, %v1994
    %v1996 = vmul.f32 %v227, %v1995
    %v1997 = vadd.f32 %v1991, %v1996
    %v1998 = vlaneseq
    %v1999 = vshrl.u32 %v1998, 7
    %v2000 = vsub.s32 0, %v1999
    %v2001 = vrot.slane %v1986, %v2000
    %v2002 = vmul.f32 %v230, %v2001
    %v2003 = vadd.f32 %v1997, %v2002
    %v2004 = vadd.f32 %v2003, %v117
    %v2005 = vsel %vm46, %v2004, 0.0
    %2006 = vadd.xlane.f32.xlu0 %v2005
    %v2007 = vpop.xlane.xlu0 %2006
    %v2008 = vrcp.pop 32.0
    %v2009 = vmul.f32 %v2007, %v2008
    %v2010 = vsub.f32 %v2004, %v2009
    %v2011 = vmul.f32 %v2010, %v2010
    %v2012 = vsel %vm46, %v2011, 0.0
    %2013 = vadd.xlane.f32.xlu0 %v2012
    %v2014 = vpop.xlane.xlu0 %2013
    %v2015 = vmul.f32 %v2014, %v2008
    %v2016 = vadd.f32 %v2015, 1e-12
    %v2017 = vrsqrt.pop %v2016
    %v2018 = vmul.f32 %v2010, %v2017
    %v2019 = vlaneseq
    %v2020 = vshrl.u32 %v2019, 7
    %v2021 = vsub.s32 0, %v2020
    %v2022 = vrot.slane %v35, %v2021
    %v2023 = vmul.f32 %v2018, %v2022
    %v2024 = vlaneseq
    %v2025 = vshrl.u32 %v2024, 7
    %v2026 = vsub.s32 0, %v2025
    %v2027 = vrot.slane %v36, %v2026
    %v2028 = vadd.f32 %v2023, %v2027
    %s2029 = scalar_lea.vmem %s4, 416
    %v2030 = vld [vmem:[%s2029] sm:$0xff]
    %v2031 = vld [vmem:[%s2029 + $0x8] sm:$0xff]
    %v2032 = vld [vmem:[%s2029 + $0x10] sm:$0xff]
    %v2033 = vld [vmem:[%s2029 + $0x18] sm:$0xff]
    %v2034 = vld [vmem:[%s2029 + $0x20] sm:$0xff]
    %v2035 = vld [vmem:[%s2029 + $0x28] sm:$0xff]
    %v2036 = vld [vmem:[%s2029 + $0x30] sm:$0xff]
    %v2037 = vld [vmem:[%s2029 + $0x38] sm:$0xff]
    %v2038 = vld [vmem:[%s2029 + $0x40] sm:$0xff]
    %v2039 = vld [vmem:[%s2029 + $0x48] sm:$0xff]
    %v2040 = vld [vmem:[%s2029 + $0x50] sm:$0xff]
    %v2041 = vld [vmem:[%s2029 + $0x58] sm:$0xff]
    %v2042 = vld [vmem:[%s2029 + $0x60] sm:$0xff]
    %v2043 = vld [vmem:[%s2029 + $0x68] sm:$0xff]
    %v2044 = vld [vmem:[%s2029 + $0x70] sm:$0xff]
    %v2045 = vld [vmem:[%s2029 + $0x78] sm:$0xff]
    %v2046 = vld [vmem:[%s2029 + $0x80] sm:$0xff]
    %v2047 = vld [vmem:[%s2029 + $0x88] sm:$0xff]
    %v2048 = vld [vmem:[%s2029 + $0x90] sm:$0xff]
    %v2049 = vld [vmem:[%s2029 + $0x98] sm:$0xff]
    %v2050 = vld [vmem:[%s2029 + $0xa0] sm:$0xff]
    %v2051 = vld [vmem:[%s2029 + $0xa8] sm:$0xff]
    %v2052 = vld [vmem:[%s2029 + $0xb0] sm:$0xff]
    %v2053 = vld [vmem:[%s2029 + $0xb8] sm:$0xff]
    %v2054 = vld [vmem:[%s2029 + $0xc0] sm:$0xff]
    %v2055 = vld [vmem:[%s2029 + $0xc8] sm:$0xff]
    %v2056 = vld [vmem:[%s2029 + $0xd0] sm:$0xff]
    %v2057 = vld [vmem:[%s2029 + $0xd8] sm:$0xff]
    %v2058 = vld [vmem:[%s2029 + $0xe0] sm:$0xff]
    %v2059 = vld [vmem:[%s2029 + $0xe8] sm:$0xff]
    %v2060 = vld [vmem:[%s2029 + $0xf0] sm:$0xff]
    %v2061 = vld [vmem:[%s2029 + $0xf8] sm:$0xff]
    %v2062 = vld [vmem:[%s2029 + $0x100] sm:$0xff]
    %v2063 = vld [vmem:[%s2029 + $0x108] sm:$0xff]
    %v2064 = vld [vmem:[%s2029 + $0x110] sm:$0xff]
    %v2065 = vld [vmem:[%s2029 + $0x118] sm:$0xff]
    %v2066 = vld [vmem:[%s2029 + $0x120] sm:$0xff]
    %v2067 = vld [vmem:[%s2029 + $0x128] sm:$0xff]
    %v2068 = vld [vmem:[%s2029 + $0x130] sm:$0xff]
    %v2069 = vld [vmem:[%s2029 + $0x138] sm:$0xff]
    %v2070 = vld [vmem:[%s2029 + $0x140] sm:$0xff]
    %v2071 = vld [vmem:[%s2029 + $0x148] sm:$0xff]
    %v2072 = vld [vmem:[%s2029 + $0x150] sm:$0xff]
    %v2073 = vld [vmem:[%s2029 + $0x158] sm:$0xff]
    %v2074 = vld [vmem:[%s2029 + $0x160] sm:$0xff]
    %v2075 = vld [vmem:[%s2029 + $0x168] sm:$0xff]
    %v2076 = vld [vmem:[%s2029 + $0x170] sm:$0xff]
    %v2077 = vld [vmem:[%s2029 + $0x178] sm:$0xff]
    %v2078 = vld [vmem:[%s2029 + $0x180] sm:$0xff]
    %v2079 = vld [vmem:[%s2029 + $0x188] sm:$0xff]
    %v2080 = vld [vmem:[%s2029 + $0x190] sm:$0xff]
    %v2081 = vld [vmem:[%s2029 + $0x198] sm:$0xff]
    %v2082 = vld [vmem:[%s5 + $0x8] sm:$0x1]
    %v2083 = vld [vmem:[%s5 + $0x9] sm:$0x1]
    %v2084 = vld [vmem:[%s5 + $0xa] sm:$0x1]
    %v2085 = vld [vmem:[%s5 + $0xb] sm:$0x1]
    %v2086 = vld [vmem:[%s5 + $0xc] sm:$0x1]
    %v2088 = vsel %vm46, %v2028, 0
    %2090 = vmatprep.subr.mxu0 0.0
    %2091 = vmatpush1.msra.mxu0 %v2030
    %2092 = vmatprep.subr.mxu0 0.0
    %2093 = vmatpush1.msra.mxu0 %v2031
    %2094 = vmatprep.subr.mxu0 0.0
    %2095 = vmatpush1.msra.mxu0 %v2032
    %2096 = vmatprep.subr.mxu0 0.0
    %2097 = vmatpush1.msra.mxu0 %v2033
    %2098 = vmatprep.subr.mxu0 0.0
    %2099 = vmatpush1.msra.mxu0 0.0
    %2100 = vmatprep.subr.mxu0 0.0
    %2101 = vmatpush1.msra.mxu0 0.0
    %2102 = vmatprep.subr.mxu0 0.0
    %2103 = vmatpush1.msra.mxu0 0.0
    %2104 = vmatprep.subr.mxu0 0.0
    %2105 = vmatpush1.msra.mxu0 0.0
    %2106 = vmatprep.subr.mxu0 0.0
    %2107 = vmatpush1.msra.mxu0 0.0
    %2108 = vmatprep.subr.mxu0 0.0
    %2109 = vmatpush1.msra.mxu0 0.0
    %2110 = vmatprep.subr.mxu0 0.0
    %2111 = vmatpush1.msra.mxu0 0.0
    %2112 = vmatprep.subr.mxu0 0.0
    %2113 = vmatpush1.msra.mxu0 0.0
    %2114 = vmatprep.subr.mxu0 0.0
    %2115 = vmatpush1.msra.mxu0 0.0
    %2116 = vmatprep.subr.mxu0 0.0
    %2117 = vmatpush1.msra.mxu0 0.0
    %2118 = vmatprep.subr.mxu0 0.0
    %2119 = vmatpush1.msra.mxu0 0.0
    %2120 = vmatprep.subr.mxu0 0.0
    %2121 = vmatpush1.msra.mxu0 0.0
    %2122 = vmatprep.subr.mxu0 0.0
    %2123 = vmatpush1.msra.mxu0 0.0
    %2124 = vmatprep.subr.mxu0 0.0
    %2125 = vmatpush1.msra.mxu0 0.0
    %2126 = vmatprep.subr.mxu0 0.0
    %2127 = vmatpush1.msra.mxu0 0.0
    %2128 = vmatprep.subr.mxu0 0.0
    %2129 = vmatpush1.msra.mxu0 0.0
    %2130 = vmatprep.subr.mxu0 0.0
    %2131 = vmatpush1.msra.mxu0 0.0
    %2132 = vmatprep.subr.mxu0 0.0
    %2133 = vmatpush1.msra.mxu0 0.0
    %2134 = vmatprep.subr.mxu0 0.0
    %2135 = vmatpush1.msra.mxu0 0.0
    %2136 = vmatprep.subr.mxu0 0.0
    %2137 = vmatpush1.msra.mxu0 0.0
    %2138 = vmatprep.subr.mxu0 0.0
    %2139 = vmatpush1.msra.mxu0 0.0
    %2140 = vmatprep.subr.mxu0 0.0
    %2141 = vmatpush1.msra.mxu0 0.0
    %2142 = vmatprep.subr.mxu0 0.0
    %2143 = vmatpush1.msra.mxu0 0.0
    %2144 = vmatprep.subr.mxu0 0.0
    %2145 = vmatpush1.msra.mxu0 0.0
    %2146 = vmatprep.subr.mxu0 0.0
    %2147 = vmatpush1.msra.mxu0 0.0
    %2148 = vmatprep.subr.mxu0 0.0
    %2149 = vmatpush1.msra.mxu0 0.0
    %2150 = vmatprep.subr.mxu0 0.0
    %2151 = vmatpush1.msra.mxu0 0.0
    %2152 = vmatprep.subr.mxu0 0.0
    %2153 = vmatpush1.msra.mxu0 0.0
    %2154 = vmatprep.mubr.f32.mxu0 0.0
    %2155 = vmatmul.mubr.f32.gmra.mrb[0].mxu0 %v2088
    %v2156 = vpop.f32.mrb[0].mxu0
    %v2157 = vadd.f32 0.0, %v2156
    %v2158 = vpop.f32.mrb[0].mxu0
    %2159 = vdwg.mxu0
    %2160 = vmatprep.subr.mxu0 0.0
    %2161 = vmatpush1.msra.mxu0 %v2038
    %2162 = vmatprep.subr.mxu0 0.0
    %2163 = vmatpush1.msra.mxu0 %v2039
    %2164 = vmatprep.subr.mxu0 0.0
    %2165 = vmatpush1.msra.mxu0 %v2040
    %2166 = vmatprep.subr.mxu0 0.0
    %2167 = vmatpush1.msra.mxu0 %v2041
    %2168 = vmatprep.subr.mxu0 0.0
    %2169 = vmatpush1.msra.mxu0 0.0
    %2170 = vmatprep.subr.mxu0 0.0
    %2171 = vmatpush1.msra.mxu0 0.0
    %2172 = vmatprep.subr.mxu0 0.0
    %2173 = vmatpush1.msra.mxu0 0.0
    %2174 = vmatprep.subr.mxu0 0.0
    %2175 = vmatpush1.msra.mxu0 0.0
    %2176 = vmatprep.subr.mxu0 0.0
    %2177 = vmatpush1.msra.mxu0 0.0
    %2178 = vmatprep.subr.mxu0 0.0
    %2179 = vmatpush1.msra.mxu0 0.0
    %2180 = vmatprep.subr.mxu0 0.0
    %2181 = vmatpush1.msra.mxu0 0.0
    %2182 = vmatprep.subr.mxu0 0.0
    %2183 = vmatpush1.msra.mxu0 0.0
    %2184 = vmatprep.subr.mxu0 0.0
    %2185 = vmatpush1.msra.mxu0 0.0
    %2186 = vmatprep.subr.mxu0 0.0
    %2187 = vmatpush1.msra.mxu0 0.0
    %2188 = vmatprep.subr.mxu0 0.0
    %2189 = vmatpush1.msra.mxu0 0.0
    %2190 = vmatprep.subr.mxu0 0.0
    %2191 = vmatpush1.msra.mxu0 0.0
    %2192 = vmatprep.subr.mxu0 0.0
    %2193 = vmatpush1.msra.mxu0 0.0
    %2194 = vmatprep.subr.mxu0 0.0
    %2195 = vmatpush1.msra.mxu0 0.0
    %2196 = vmatprep.subr.mxu0 0.0
    %2197 = vmatpush1.msra.mxu0 0.0
    %2198 = vmatprep.subr.mxu0 0.0
    %2199 = vmatpush1.msra.mxu0 0.0
    %2200 = vmatprep.subr.mxu0 0.0
    %2201 = vmatpush1.msra.mxu0 0.0
    %2202 = vmatprep.subr.mxu0 0.0
    %2203 = vmatpush1.msra.mxu0 0.0
    %2204 = vmatprep.subr.mxu0 0.0
    %2205 = vmatpush1.msra.mxu0 0.0
    %2206 = vmatprep.subr.mxu0 0.0
    %2207 = vmatpush1.msra.mxu0 0.0
    %2208 = vmatprep.subr.mxu0 0.0
    %2209 = vmatpush1.msra.mxu0 0.0
    %2210 = vmatprep.subr.mxu0 0.0
    %2211 = vmatpush1.msra.mxu0 0.0
    %2212 = vmatprep.subr.mxu0 0.0
    %2213 = vmatpush1.msra.mxu0 0.0
    %2214 = vmatprep.subr.mxu0 0.0
    %2215 = vmatpush1.msra.mxu0 0.0
    %2216 = vmatprep.subr.mxu0 0.0
    %2217 = vmatpush1.msra.mxu0 0.0
    %2218 = vmatprep.subr.mxu0 0.0
    %2219 = vmatpush1.msra.mxu0 0.0
    %2220 = vmatprep.subr.mxu0 0.0
    %2221 = vmatpush1.msra.mxu0 0.0
    %2222 = vmatprep.subr.mxu0 0.0
    %2223 = vmatpush1.msra.mxu0 0.0
    %2224 = vmatprep.mubr.f32.mxu0 0.0
    %2225 = vmatmul.mubr.f32.gmra.mrb[0].mxu0 %v2088
    %v2226 = vpop.f32.mrb[0].mxu0
    %v2227 = vadd.f32 0.0, %v2226
    %v2228 = vpop.f32.mrb[0].mxu0
    %2229 = vdwg.mxu0
    %2230 = vmatprep.subr.mxu0 0.0
    %2231 = vmatpush1.msra.mxu0 %v2034
    %2232 = vmatprep.subr.mxu0 0.0
    %2233 = vmatpush1.msra.mxu0 %v2035
    %2234 = vmatprep.subr.mxu0 0.0
    %2235 = vmatpush1.msra.mxu0 %v2036
    %2236 = vmatprep.subr.mxu0 0.0
    %2237 = vmatpush1.msra.mxu0 %v2037
    %2238 = vmatprep.subr.mxu0 0.0
    %2239 = vmatpush1.msra.mxu0 0.0
    %2240 = vmatprep.subr.mxu0 0.0
    %2241 = vmatpush1.msra.mxu0 0.0
    %2242 = vmatprep.subr.mxu0 0.0
    %2243 = vmatpush1.msra.mxu0 0.0
    %2244 = vmatprep.subr.mxu0 0.0
    %2245 = vmatpush1.msra.mxu0 0.0
    %2246 = vmatprep.subr.mxu0 0.0
    %2247 = vmatpush1.msra.mxu0 0.0
    %2248 = vmatprep.subr.mxu0 0.0
    %2249 = vmatpush1.msra.mxu0 0.0
    %2250 = vmatprep.subr.mxu0 0.0
    %2251 = vmatpush1.msra.mxu0 0.0
    %2252 = vmatprep.subr.mxu0 0.0
    %2253 = vmatpush1.msra.mxu0 0.0
    %2254 = vmatprep.subr.mxu0 0.0
    %2255 = vmatpush1.msra.mxu0 0.0
    %2256 = vmatprep.subr.mxu0 0.0
    %2257 = vmatpush1.msra.mxu0 0.0
    %2258 = vmatprep.subr.mxu0 0.0
    %2259 = vmatpush1.msra.mxu0 0.0
    %2260 = vmatprep.subr.mxu0 0.0
    %2261 = vmatpush1.msra.mxu0 0.0
    %2262 = vmatprep.subr.mxu0 0.0
    %2263 = vmatpush1.msra.mxu0 0.0
    %2264 = vmatprep.subr.mxu0 0.0
    %2265 = vmatpush1.msra.mxu0 0.0
    %2266 = vmatprep.subr.mxu0 0.0
    %2267 = vmatpush1.msra.mxu0 0.0
    %2268 = vmatprep.subr.mxu0 0.0
    %2269 = vmatpush1.msra.mxu0 0.0
    %2270 = vmatprep.subr.mxu0 0.0
    %2271 = vmatpush1.msra.mxu0 0.0
    %2272 = vmatprep.subr.mxu0 0.0
    %2273 = vmatpush1.msra.mxu0 0.0
    %2274 = vmatprep.subr.mxu0 0.0
    %2275 = vmatpush1.msra.mxu0 0.0
    %2276 = vmatprep.subr.mxu0 0.0
    %2277 = vmatpush1.msra.mxu0 0.0
    %2278 = vmatprep.subr.mxu0 0.0
    %2279 = vmatpush1.msra.mxu0 0.0
    %2280 = vmatprep.subr.mxu0 0.0
    %2281 = vmatpush1.msra.mxu0 0.0
    %2282 = vmatprep.subr.mxu0 0.0
    %2283 = vmatpush1.msra.mxu0 0.0
    %2284 = vmatprep.subr.mxu0 0.0
    %2285 = vmatpush1.msra.mxu0 0.0
    %2286 = vmatprep.subr.mxu0 0.0
    %2287 = vmatpush1.msra.mxu0 0.0
    %2288 = vmatprep.subr.mxu0 0.0
    %2289 = vmatpush1.msra.mxu0 0.0
    %2290 = vmatprep.subr.mxu0 0.0
    %2291 = vmatpush1.msra.mxu0 0.0
    %2292 = vmatprep.subr.mxu0 0.0
    %2293 = vmatpush1.msra.mxu0 0.0
    %2294 = vmatprep.mubr.f32.mxu0 0.0
    %2295 = vmatmul.mubr.f32.gmra.mrb[0].mxu0 %v432
    %v2296 = vpop.f32.mrb[0].mxu0
    %v2297 = vadd.f32 0.0, %v2296
    %v2298 = vpop.f32.mrb[0].mxu0
    %2299 = vmatprep.mubr.f32.mxu0 0.0
    %2300 = vmatmul.mubr.f32.gmra.mrb[0].mxu0 %v435
    %v2301 = vpop.f32.mrb[0].mxu0
    %v2302 = vadd.f32 0.0, %v2301
    %v2303 = vpop.f32.mrb[0].mxu0
    %2304 = vmatprep.mubr.f32.mxu0 0.0
    %2305 = vmatmul.mubr.f32.gmra.mrb[0].mxu0 %v438
    %v2306 = vpop.f32.mrb[0].mxu0
    %v2307 = vadd.f32 0.0, %v2306
    %v2308 = vpop.f32.mrb[0].mxu0
    %2309 = vmatprep.mubr.f32.mxu0 0.0
    %2310 = vmatmul.mubr.f32.gmra.mrb[0].mxu0 %v441
    %v2311 = vpop.f32.mrb[0].mxu0
    %v2312 = vadd.f32 0.0, %v2311
    %v2313 = vpop.f32.mrb[0].mxu0
    %2314 = vdwg.mxu0
    %2315 = vmatprep.subr.mxu0 0.0
    %2316 = vmatpush1.msra.mxu0 %v2157
    %2317 = vmatprep.subr.mxu0 0.0
    %2318 = vmatpush1.msra.mxu0 %v2227
    %2319 = vmatprep.subr.mxu0 0.0
    %2320 = vmatpush1.msra.mxu0 0.0
    %2321 = vmatprep.subr.mxu0 0.0
    %2322 = vmatpush1.msra.mxu0 0.0
    %2323 = vmatprep.subr.mxu0 0.0
    %2324 = vmatpush1.msra.mxu0 0.0
    %2325 = vmatprep.subr.mxu0 0.0
    %2326 = vmatpush1.msra.mxu0 0.0
    %2327 = vmatprep.subr.mxu0 0.0
    %2328 = vmatpush1.msra.mxu0 0.0
    %2329 = vmatprep.subr.mxu0 0.0
    %2330 = vmatpush1.msra.mxu0 0.0
    %2331 = vmatprep.subr.mxu0 0.0
    %2332 = vmatpush1.msra.mxu0 0.0
    %2333 = vmatprep.subr.mxu0 0.0
    %2334 = vmatpush1.msra.mxu0 0.0
    %2335 = vmatprep.subr.mxu0 0.0
    %2336 = vmatpush1.msra.mxu0 0.0
    %2337 = vmatprep.subr.mxu0 0.0
    %2338 = vmatpush1.msra.mxu0 0.0
    %2339 = vmatprep.subr.mxu0 0.0
    %2340 = vmatpush1.msra.mxu0 0.0
    %2341 = vmatprep.subr.mxu0 0.0
    %2342 = vmatpush1.msra.mxu0 0.0
    %2343 = vmatprep.subr.mxu0 0.0
    %2344 = vmatpush1.msra.mxu0 0.0
    %2345 = vmatprep.subr.mxu0 0.0
    %2346 = vmatpush1.msra.mxu0 0.0
    %2347 = vmatprep.subr.mxu0 0.0
    %2348 = vmatpush1.msra.mxu0 0.0
    %2349 = vmatprep.subr.mxu0 0.0
    %2350 = vmatpush1.msra.mxu0 0.0
    %2351 = vmatprep.subr.mxu0 0.0
    %2352 = vmatpush1.msra.mxu0 0.0
    %2353 = vmatprep.subr.mxu0 0.0
    %2354 = vmatpush1.msra.mxu0 0.0
    %2355 = vmatprep.subr.mxu0 0.0
    %2356 = vmatpush1.msra.mxu0 0.0
    %2357 = vmatprep.subr.mxu0 0.0
    %2358 = vmatpush1.msra.mxu0 0.0
    %2359 = vmatprep.subr.mxu0 0.0
    %2360 = vmatpush1.msra.mxu0 0.0
    %2361 = vmatprep.subr.mxu0 0.0
    %2362 = vmatpush1.msra.mxu0 0.0
    %2363 = vmatprep.subr.mxu0 0.0
    %2364 = vmatpush1.msra.mxu0 0.0
    %2365 = vmatprep.subr.mxu0 0.0
    %2366 = vmatpush1.msra.mxu0 0.0
    %2367 = vmatprep.subr.mxu0 0.0
    %2368 = vmatpush1.msra.mxu0 0.0
    %2369 = vmatprep.subr.mxu0 0.0
    %2370 = vmatpush1.msra.mxu0 0.0
    %2371 = vmatprep.subr.mxu0 0.0
    %2372 = vmatpush1.msra.mxu0 0.0
    %2373 = vmatprep.subr.mxu0 0.0
    %2374 = vmatpush1.msra.mxu0 0.0
    %2375 = vmatprep.subr.mxu0 0.0
    %2376 = vmatpush1.msra.mxu0 0.0
    %2377 = vmatprep.subr.mxu0 0.0
    %2378 = vmatpush1.msra.mxu0 0.0
    %2379 = vmatprep.mubr.f32.mxu0 0.0
    %2380 = vmatmul.mubr.f32.gmra.mrb[0].mxu0 %v530
    %v2381 = vpop.f32.mrb[0].mxu0
    %v2382 = vadd.f32 %v2297, %v2381
    %v2383 = vpop.f32.mrb[0].mxu0
    %2384 = vmatprep.mubr.f32.mxu0 0.0
    %2385 = vmatmul.mubr.f32.gmra.mrb[0].mxu0 %v533
    %v2386 = vpop.f32.mrb[0].mxu0
    %v2387 = vadd.f32 %v2302, %v2386
    %v2388 = vpop.f32.mrb[0].mxu0
    %2389 = vmatprep.mubr.f32.mxu0 0.0
    %2390 = vmatmul.mubr.f32.gmra.mrb[0].mxu0 %v536
    %v2391 = vpop.f32.mrb[0].mxu0
    %v2392 = vadd.f32 %v2307, %v2391
    %v2393 = vpop.f32.mrb[0].mxu0
    %2394 = vmatprep.mubr.f32.mxu0 0.0
    %2395 = vmatmul.mubr.f32.gmra.mrb[0].mxu0 %v539
    %v2396 = vpop.f32.mrb[0].mxu0
    %v2397 = vadd.f32 %v2312, %v2396
    %v2398 = vpop.f32.mrb[0].mxu0
    %2399 = vdwg.mxu0
    %v2400 = vlaneseq
    %v2401 = vshrl.u32 %v2400, 7
    %v2402 = vsub.s32 0, %v2401
    %v2403 = vrot.slane %v2082, %v2402
    %v2404 = vadd.f32 %v2382, %v2403
    %v2405 = vadd.f32 %v2387, %v2403
    %v2406 = vadd.f32 %v2392, %v2403
    %v2407 = vadd.f32 %v2397, %v2403
    %v2408 = vlaneseq
    %v2409 = vshrl.u32 %v2408, 7
    %v2410 = vsub.s32 0, %v2409
    %v2411 = vrot.slane %v2084, %v2410
    %v2413 = vsel %vm46, %v2404, 0
    %v2416 = vsel %vm46, %v2405, 0
    %v2419 = vsel %vm46, %v2406, 0
    %v2422 = vsel %vm46, %v2407, 0
    %2424 = vmatprep.subr.mxu0 0.0
    %2425 = vmatpush1.msra.mxu0 %v2046
    %2426 = vmatprep.subr.mxu0 0.0
    %2427 = vmatpush1.msra.mxu0 %v2047
    %2428 = vmatprep.subr.mxu0 0.0
    %2429 = vmatpush1.msra.mxu0 %v2048
    %2430 = vmatprep.subr.mxu0 0.0
    %2431 = vmatpush1.msra.mxu0 %v2049
    %2432 = vmatprep.subr.mxu0 0.0
    %2433 = vmatpush1.msra.mxu0 0.0
    %2434 = vmatprep.subr.mxu0 0.0
    %2435 = vmatpush1.msra.mxu0 0.0
    %2436 = vmatprep.subr.mxu0 0.0
    %2437 = vmatpush1.msra.mxu0 0.0
    %2438 = vmatprep.subr.mxu0 0.0
    %2439 = vmatpush1.msra.mxu0 0.0
    %2440 = vmatprep.subr.mxu0 0.0
    %2441 = vmatpush1.msra.mxu0 0.0
    %2442 = vmatprep.subr.mxu0 0.0
    %2443 = vmatpush1.msra.mxu0 0.0
    %2444 = vmatprep.subr.mxu0 0.0
    %2445 = vmatpush1.msra.mxu0 0.0
    %2446 = vmatprep.subr.mxu0 0.0
    %2447 = vmatpush1.msra.mxu0 0.0
    %2448 = vmatprep.subr.mxu0 0.0
    %2449 = vmatpush1.msra.mxu0 0.0
    %2450 = vmatprep.subr.mxu0 0.0
    %2451 = vmatpush1.msra.mxu0 0.0
    %2452 = vmatprep.subr.mxu0 0.0
    %2453 = vmatpush1.msra.mxu0 0.0
    %2454 = vmatprep.subr.mxu0 0.0
    %2455 = vmatpush1.msra.mxu0 0.0
    %2456 = vmatprep.subr.mxu0 0.0
    %2457 = vmatpush1.msra.mxu0 0.0
    %2458 = vmatprep.subr.mxu0 0.0
    %2459 = vmatpush1.msra.mxu0 0.0
    %2460 = vmatprep.subr.mxu0 0.0
    %2461 = vmatpush1.msra.mxu0 0.0
    %2462 = vmatprep.subr.mxu0 0.0
    %2463 = vmatpush1.msra.mxu0 0.0
    %2464 = vmatprep.subr.mxu0 0.0
    %2465 = vmatpush1.msra.mxu0 0.0
    %2466 = vmatprep.subr.mxu0 0.0
    %2467 = vmatpush1.msra.mxu0 0.0
    %2468 = vmatprep.subr.mxu0 0.0
    %2469 = vmatpush1.msra.mxu0 0.0
    %2470 = vmatprep.subr.mxu0 0.0
    %2471 = vmatpush1.msra.mxu0 0.0
    %2472 = vmatprep.subr.mxu0 0.0
    %2473 = vmatpush1.msra.mxu0 0.0
    %2474 = vmatprep.subr.mxu0 0.0
    %2475 = vmatpush1.msra.mxu0 0.0
    %2476 = vmatprep.subr.mxu0 0.0
    %2477 = vmatpush1.msra.mxu0 0.0
    %2478 = vmatprep.subr.mxu0 0.0
    %2479 = vmatpush1.msra.mxu0 0.0
    %2480 = vmatprep.subr.mxu0 0.0
    %2481 = vmatpush1.msra.mxu0 0.0
    %2482 = vmatprep.subr.mxu0 0.0
    %2483 = vmatpush1.msra.mxu0 0.0
    %2484 = vmatprep.subr.mxu0 0.0
    %2485 = vmatpush1.msra.mxu0 0.0
    %2486 = vmatprep.subr.mxu0 0.0
    %2487 = vmatpush1.msra.mxu0 0.0
    %2488 = vmatprep.mubr.f32.mxu0 0.0
    %2489 = vmatmul.mubr.f32.gmra.mrb[0].mxu0 %v2413
    %v2490 = vpop.f32.mrb[0].mxu0
    %v2491 = vadd.f32 %v2411, %v2490
    %v2492 = vpop.f32.mrb[0].mxu0
    %2493 = vmatprep.mubr.f32.mxu0 0.0
    %2494 = vmatmul.mubr.f32.gmra.mrb[0].mxu0 %v2416
    %v2495 = vpop.f32.mrb[0].mxu0
    %v2496 = vadd.f32 %v2411, %v2495
    %v2497 = vpop.f32.mrb[0].mxu0
    %2498 = vmatprep.mubr.f32.mxu0 0.0
    %2499 = vmatmul.mubr.f32.gmra.mrb[0].mxu0 %v2419
    %v2500 = vpop.f32.mrb[0].mxu0
    %v2501 = vadd.f32 %v2411, %v2500
    %v2502 = vpop.f32.mrb[0].mxu0
    %2503 = vmatprep.mubr.f32.mxu0 0.0
    %2504 = vmatmul.mubr.f32.gmra.mrb[0].mxu0 %v2422
    %v2505 = vpop.f32.mrb[0].mxu0
    %v2506 = vadd.f32 %v2411, %v2505
    %v2507 = vpop.f32.mrb[0].mxu0
    %2508 = vdwg.mxu0
    %v2509 = vlaneseq
    %v2510 = vshrl.u32 %v2509, 7
    %v2511 = vsub.s32 0, %v2510
    %v2512 = vrot.slane %v2085, %v2511
    %2513 = vmatprep.subr.mxu0 0.0
    %2514 = vmatpush1.msra.mxu0 %v2050
    %2515 = vmatprep.subr.mxu0 0.0
    %2516 = vmatpush1.msra.mxu0 %v2051
    %2517 = vmatprep.subr.mxu0 0.0
    %2518 = vmatpush1.msra.mxu0 %v2052
    %2519 = vmatprep.subr.mxu0 0.0
    %2520 = vmatpush1.msra.mxu0 %v2053
    %2521 = vmatprep.subr.mxu0 0.0
    %2522 = vmatpush1.msra.mxu0 0.0
    %2523 = vmatprep.subr.mxu0 0.0
    %2524 = vmatpush1.msra.mxu0 0.0
    %2525 = vmatprep.subr.mxu0 0.0
    %2526 = vmatpush1.msra.mxu0 0.0
    %2527 = vmatprep.subr.mxu0 0.0
    %2528 = vmatpush1.msra.mxu0 0.0
    %2529 = vmatprep.subr.mxu0 0.0
    %2530 = vmatpush1.msra.mxu0 0.0
    %2531 = vmatprep.subr.mxu0 0.0
    %2532 = vmatpush1.msra.mxu0 0.0
    %2533 = vmatprep.subr.mxu0 0.0
    %2534 = vmatpush1.msra.mxu0 0.0
    %2535 = vmatprep.subr.mxu0 0.0
    %2536 = vmatpush1.msra.mxu0 0.0
    %2537 = vmatprep.subr.mxu0 0.0
    %2538 = vmatpush1.msra.mxu0 0.0
    %2539 = vmatprep.subr.mxu0 0.0
    %2540 = vmatpush1.msra.mxu0 0.0
    %2541 = vmatprep.subr.mxu0 0.0
    %2542 = vmatpush1.msra.mxu0 0.0
    %2543 = vmatprep.subr.mxu0 0.0
    %2544 = vmatpush1.msra.mxu0 0.0
    %2545 = vmatprep.subr.mxu0 0.0
    %2546 = vmatpush1.msra.mxu0 0.0
    %2547 = vmatprep.subr.mxu0 0.0
    %2548 = vmatpush1.msra.mxu0 0.0
    %2549 = vmatprep.subr.mxu0 0.0
    %2550 = vmatpush1.msra.mxu0 0.0
    %2551 = vmatprep.subr.mxu0 0.0
    %2552 = vmatpush1.msra.mxu0 0.0
    %2553 = vmatprep.subr.mxu0 0.0
    %2554 = vmatpush1.msra.mxu0 0.0
    %2555 = vmatprep.subr.mxu0 0.0
    %2556 = vmatpush1.msra.mxu0 0.0
    %2557 = vmatprep.subr.mxu0 0.0
    %2558 = vmatpush1.msra.mxu0 0.0
    %2559 = vmatprep.subr.mxu0 0.0
    %2560 = vmatpush1.msra.mxu0 0.0
    %2561 = vmatprep.subr.mxu0 0.0
    %2562 = vmatpush1.msra.mxu0 0.0
    %2563 = vmatprep.subr.mxu0 0.0
    %2564 = vmatpush1.msra.mxu0 0.0
    %2565 = vmatprep.subr.mxu0 0.0
    %2566 = vmatpush1.msra.mxu0 0.0
    %2567 = vmatprep.subr.mxu0 0.0
    %2568 = vmatpush1.msra.mxu0 0.0
    %2569 = vmatprep.subr.mxu0 0.0
    %2570 = vmatpush1.msra.mxu0 0.0
    %2571 = vmatprep.subr.mxu0 0.0
    %2572 = vmatpush1.msra.mxu0 0.0
    %2573 = vmatprep.subr.mxu0 0.0
    %2574 = vmatpush1.msra.mxu0 0.0
    %2575 = vmatprep.subr.mxu0 0.0
    %2576 = vmatpush1.msra.mxu0 0.0
    %2577 = vmatprep.mubr.f32.mxu0 0.0
    %2578 = vmatmul.mubr.f32.gmra.mrb[0].mxu0 %v2413
    %v2579 = vpop.f32.mrb[0].mxu0
    %v2580 = vadd.f32 %v2512, %v2579
    %v2581 = vpop.f32.mrb[0].mxu0
    %2582 = vmatprep.mubr.f32.mxu0 0.0
    %2583 = vmatmul.mubr.f32.gmra.mrb[0].mxu0 %v2416
    %v2584 = vpop.f32.mrb[0].mxu0
    %v2585 = vadd.f32 %v2512, %v2584
    %v2586 = vpop.f32.mrb[0].mxu0
    %2587 = vmatprep.mubr.f32.mxu0 0.0
    %2588 = vmatmul.mubr.f32.gmra.mrb[0].mxu0 %v2419
    %v2589 = vpop.f32.mrb[0].mxu0
    %v2590 = vadd.f32 %v2512, %v2589
    %v2591 = vpop.f32.mrb[0].mxu0
    %2592 = vmatprep.mubr.f32.mxu0 0.0
    %2593 = vmatmul.mubr.f32.gmra.mrb[0].mxu0 %v2422
    %v2594 = vpop.f32.mrb[0].mxu0
    %v2595 = vadd.f32 %v2512, %v2594
    %v2596 = vpop.f32.mrb[0].mxu0
    %2597 = vdwg.mxu0
    %2598 = vmatprep.subr.mxu0 0.0
    %2599 = vmatpush1.msra.mxu0 %v2054
    %2600 = vmatprep.subr.mxu0 0.0
    %2601 = vmatpush1.msra.mxu0 %v2055
    %2602 = vmatprep.subr.mxu0 0.0
    %2603 = vmatpush1.msra.mxu0 %v2056
    %2604 = vmatprep.subr.mxu0 0.0
    %2605 = vmatpush1.msra.mxu0 %v2057
    %2606 = vmatprep.subr.mxu0 0.0
    %2607 = vmatpush1.msra.mxu0 0.0
    %2608 = vmatprep.subr.mxu0 0.0
    %2609 = vmatpush1.msra.mxu0 0.0
    %2610 = vmatprep.subr.mxu0 0.0
    %2611 = vmatpush1.msra.mxu0 0.0
    %2612 = vmatprep.subr.mxu0 0.0
    %2613 = vmatpush1.msra.mxu0 0.0
    %2614 = vmatprep.subr.mxu0 0.0
    %2615 = vmatpush1.msra.mxu0 0.0
    %2616 = vmatprep.subr.mxu0 0.0
    %2617 = vmatpush1.msra.mxu0 0.0
    %2618 = vmatprep.subr.mxu0 0.0
    %2619 = vmatpush1.msra.mxu0 0.0
    %2620 = vmatprep.subr.mxu0 0.0
    %2621 = vmatpush1.msra.mxu0 0.0
    %2622 = vmatprep.subr.mxu0 0.0
    %2623 = vmatpush1.msra.mxu0 0.0
    %2624 = vmatprep.subr.mxu0 0.0
    %2625 = vmatpush1.msra.mxu0 0.0
    %2626 = vmatprep.subr.mxu0 0.0
    %2627 = vmatpush1.msra.mxu0 0.0
    %2628 = vmatprep.subr.mxu0 0.0
    %2629 = vmatpush1.msra.mxu0 0.0
    %2630 = vmatprep.subr.mxu0 0.0
    %2631 = vmatpush1.msra.mxu0 0.0
    %2632 = vmatprep.subr.mxu0 0.0
    %2633 = vmatpush1.msra.mxu0 0.0
    %2634 = vmatprep.subr.mxu0 0.0
    %2635 = vmatpush1.msra.mxu0 0.0
    %2636 = vmatprep.subr.mxu0 0.0
    %2637 = vmatpush1.msra.mxu0 0.0
    %2638 = vmatprep.subr.mxu0 0.0
    %2639 = vmatpush1.msra.mxu0 0.0
    %2640 = vmatprep.subr.mxu0 0.0
    %2641 = vmatpush1.msra.mxu0 0.0
    %2642 = vmatprep.subr.mxu0 0.0
    %2643 = vmatpush1.msra.mxu0 0.0
    %2644 = vmatprep.subr.mxu0 0.0
    %2645 = vmatpush1.msra.mxu0 0.0
    %2646 = vmatprep.subr.mxu0 0.0
    %2647 = vmatpush1.msra.mxu0 0.0
    %2648 = vmatprep.subr.mxu0 0.0
    %2649 = vmatpush1.msra.mxu0 0.0
    %2650 = vmatprep.subr.mxu0 0.0
    %2651 = vmatpush1.msra.mxu0 0.0
    %2652 = vmatprep.subr.mxu0 0.0
    %2653 = vmatpush1.msra.mxu0 0.0
    %2654 = vmatprep.subr.mxu0 0.0
    %2655 = vmatpush1.msra.mxu0 0.0
    %2656 = vmatprep.subr.mxu0 0.0
    %2657 = vmatpush1.msra.mxu0 0.0
    %2658 = vmatprep.subr.mxu0 0.0
    %2659 = vmatpush1.msra.mxu0 0.0
    %2660 = vmatprep.subr.mxu0 0.0
    %2661 = vmatpush1.msra.mxu0 0.0
    %2662 = vmatprep.mubr.f32.mxu0 0.0
    %2663 = vmatmul.mubr.f32.gmra.mrb[0].mxu0 %v2413
    %v2664 = vpop.f32.mrb[0].mxu0
    %v2665 = vadd.f32 0.0, %v2664
    %v2666 = vpop.f32.mrb[0].mxu0
    %2667 = vmatprep.mubr.f32.mxu0 0.0
    %2668 = vmatmul.mubr.f32.gmra.mrb[0].mxu0 %v2416
    %v2669 = vpop.f32.mrb[0].mxu0
    %v2670 = vadd.f32 0.0, %v2669
    %v2671 = vpop.f32.mrb[0].mxu0
    %2672 = vmatprep.mubr.f32.mxu0 0.0
    %2673 = vmatmul.mubr.f32.gmra.mrb[0].mxu0 %v2419
    %v2674 = vpop.f32.mrb[0].mxu0
    %v2675 = vadd.f32 0.0, %v2674
    %v2676 = vpop.f32.mrb[0].mxu0
    %2677 = vmatprep.mubr.f32.mxu0 0.0
    %2678 = vmatmul.mubr.f32.gmra.mrb[0].mxu0 %v2422
    %v2679 = vpop.f32.mrb[0].mxu0
    %v2680 = vadd.f32 0.0, %v2679
    %v2681 = vpop.f32.mrb[0].mxu0
    %2682 = vdwg.mxu0
    %2683 = vmatprep.subr.mxu0 0.0
    %2684 = vmatpush1.msra.mxu0 %v2058
    %2685 = vmatprep.subr.mxu0 0.0
    %2686 = vmatpush1.msra.mxu0 %v2059
    %2687 = vmatprep.subr.mxu0 0.0
    %2688 = vmatpush1.msra.mxu0 %v2060
    %2689 = vmatprep.subr.mxu0 0.0
    %2690 = vmatpush1.msra.mxu0 %v2061
    %2691 = vmatprep.subr.mxu0 0.0
    %2692 = vmatpush1.msra.mxu0 0.0
    %2693 = vmatprep.subr.mxu0 0.0
    %2694 = vmatpush1.msra.mxu0 0.0
    %2695 = vmatprep.subr.mxu0 0.0
    %2696 = vmatpush1.msra.mxu0 0.0
    %2697 = vmatprep.subr.mxu0 0.0
    %2698 = vmatpush1.msra.mxu0 0.0
    %2699 = vmatprep.subr.mxu0 0.0
    %2700 = vmatpush1.msra.mxu0 0.0
    %2701 = vmatprep.subr.mxu0 0.0
    %2702 = vmatpush1.msra.mxu0 0.0
    %2703 = vmatprep.subr.mxu0 0.0
    %2704 = vmatpush1.msra.mxu0 0.0
    %2705 = vmatprep.subr.mxu0 0.0
    %2706 = vmatpush1.msra.mxu0 0.0
    %2707 = vmatprep.subr.mxu0 0.0
    %2708 = vmatpush1.msra.mxu0 0.0
    %2709 = vmatprep.subr.mxu0 0.0
    %2710 = vmatpush1.msra.mxu0 0.0
    %2711 = vmatprep.subr.mxu0 0.0
    %2712 = vmatpush1.msra.mxu0 0.0
    %2713 = vmatprep.subr.mxu0 0.0
    %2714 = vmatpush1.msra.mxu0 0.0
    %2715 = vmatprep.subr.mxu0 0.0
    %2716 = vmatpush1.msra.mxu0 0.0
    %2717 = vmatprep.subr.mxu0 0.0
    %2718 = vmatpush1.msra.mxu0 0.0
    %2719 = vmatprep.subr.mxu0 0.0
    %2720 = vmatpush1.msra.mxu0 0.0
    %2721 = vmatprep.subr.mxu0 0.0
    %2722 = vmatpush1.msra.mxu0 0.0
    %2723 = vmatprep.subr.mxu0 0.0
    %2724 = vmatpush1.msra.mxu0 0.0
    %2725 = vmatprep.subr.mxu0 0.0
    %2726 = vmatpush1.msra.mxu0 0.0
    %2727 = vmatprep.subr.mxu0 0.0
    %2728 = vmatpush1.msra.mxu0 0.0
    %2729 = vmatprep.subr.mxu0 0.0
    %2730 = vmatpush1.msra.mxu0 0.0
    %2731 = vmatprep.subr.mxu0 0.0
    %2732 = vmatpush1.msra.mxu0 0.0
    %2733 = vmatprep.subr.mxu0 0.0
    %2734 = vmatpush1.msra.mxu0 0.0
    %2735 = vmatprep.subr.mxu0 0.0
    %2736 = vmatpush1.msra.mxu0 0.0
    %2737 = vmatprep.subr.mxu0 0.0
    %2738 = vmatpush1.msra.mxu0 0.0
    %2739 = vmatprep.subr.mxu0 0.0
    %2740 = vmatpush1.msra.mxu0 0.0
    %2741 = vmatprep.subr.mxu0 0.0
    %2742 = vmatpush1.msra.mxu0 0.0
    %2743 = vmatprep.subr.mxu0 0.0
    %2744 = vmatpush1.msra.mxu0 0.0
    %2745 = vmatprep.subr.mxu0 0.0
    %2746 = vmatpush1.msra.mxu0 0.0
    %2747 = vmatprep.mubr.f32.mxu0 0.0
    %2748 = vmatmul.mubr.f32.gmra.mrb[0].mxu0 %v2413
    %v2749 = vpop.f32.mrb[0].mxu0
    %v2750 = vadd.f32 0.0, %v2749
    %v2751 = vpop.f32.mrb[0].mxu0
    %2752 = vmatprep.mubr.f32.mxu0 0.0
    %2753 = vmatmul.mubr.f32.gmra.mrb[0].mxu0 %v2416
    %v2754 = vpop.f32.mrb[0].mxu0
    %v2755 = vadd.f32 0.0, %v2754
    %v2756 = vpop.f32.mrb[0].mxu0
    %2757 = vmatprep.mubr.f32.mxu0 0.0
    %2758 = vmatmul.mubr.f32.gmra.mrb[0].mxu0 %v2419
    %v2759 = vpop.f32.mrb[0].mxu0
    %v2760 = vadd.f32 0.0, %v2759
    %v2761 = vpop.f32.mrb[0].mxu0
    %2762 = vmatprep.mubr.f32.mxu0 0.0
    %2763 = vmatmul.mubr.f32.gmra.mrb[0].mxu0 %v2422
    %v2764 = vpop.f32.mrb[0].mxu0
    %v2765 = vadd.f32 0.0, %v2764
    %v2766 = vpop.f32.mrb[0].mxu0
    %2767 = vdwg.mxu0
    %v2768 = vlaneseq
    %v2769 = vshrl.u32 %v2768, 7
    %v2770 = vsub.s32 0, %v2769
    %v2771 = vrot.slane %v2083, %v2770
    %2772 = vmatprep.subr.mxu0 0.0
    %2773 = vmatpush1.msra.mxu0 %v2042
    %2774 = vmatprep.subr.mxu0 0.0
    %2775 = vmatpush1.msra.mxu0 %v2043
    %2776 = vmatprep.subr.mxu0 0.0
    %2777 = vmatpush1.msra.mxu0 %v2044
    %2778 = vmatprep.subr.mxu0 0.0
    %2779 = vmatpush1.msra.mxu0 %v2045
    %2780 = vmatprep.subr.mxu0 0.0
    %2781 = vmatpush1.msra.mxu0 0.0
    %2782 = vmatprep.subr.mxu0 0.0
    %2783 = vmatpush1.msra.mxu0 0.0
    %2784 = vmatprep.subr.mxu0 0.0
    %2785 = vmatpush1.msra.mxu0 0.0
    %2786 = vmatprep.subr.mxu0 0.0
    %2787 = vmatpush1.msra.mxu0 0.0
    %2788 = vmatprep.subr.mxu0 0.0
    %2789 = vmatpush1.msra.mxu0 0.0
    %2790 = vmatprep.subr.mxu0 0.0
    %2791 = vmatpush1.msra.mxu0 0.0
    %2792 = vmatprep.subr.mxu0 0.0
    %2793 = vmatpush1.msra.mxu0 0.0
    %2794 = vmatprep.subr.mxu0 0.0
    %2795 = vmatpush1.msra.mxu0 0.0
    %2796 = vmatprep.subr.mxu0 0.0
    %2797 = vmatpush1.msra.mxu0 0.0
    %2798 = vmatprep.subr.mxu0 0.0
    %2799 = vmatpush1.msra.mxu0 0.0
    %2800 = vmatprep.subr.mxu0 0.0
    %2801 = vmatpush1.msra.mxu0 0.0
    %2802 = vmatprep.subr.mxu0 0.0
    %2803 = vmatpush1.msra.mxu0 0.0
    %2804 = vmatprep.subr.mxu0 0.0
    %2805 = vmatpush1.msra.mxu0 0.0
    %2806 = vmatprep.subr.mxu0 0.0
    %2807 = vmatpush1.msra.mxu0 0.0
    %2808 = vmatprep.subr.mxu0 0.0
    %2809 = vmatpush1.msra.mxu0 0.0
    %2810 = vmatprep.subr.mxu0 0.0
    %2811 = vmatpush1.msra.mxu0 0.0
    %2812 = vmatprep.subr.mxu0 0.0
    %2813 = vmatpush1.msra.mxu0 0.0
    %2814 = vmatprep.subr.mxu0 0.0
    %2815 = vmatpush1.msra.mxu0 0.0
    %2816 = vmatprep.subr.mxu0 0.0
    %2817 = vmatpush1.msra.mxu0 0.0
    %2818 = vmatprep.subr.mxu0 0.0
    %2819 = vmatpush1.msra.mxu0 0.0
    %2820 = vmatprep.subr.mxu0 0.0
    %2821 = vmatpush1.msra.mxu0 0.0
    %2822 = vmatprep.subr.mxu0 0.0
    %2823 = vmatpush1.msra.mxu0 0.0
    %2824 = vmatprep.subr.mxu0 0.0
    %2825 = vmatpush1.msra.mxu0 0.0
    %2826 = vmatprep.subr.mxu0 0.0
    %2827 = vmatpush1.msra.mxu0 0.0
    %2828 = vmatprep.subr.mxu0 0.0
    %2829 = vmatpush1.msra.mxu0 0.0
    %2830 = vmatprep.subr.mxu0 0.0
    %2831 = vmatpush1.msra.mxu0 0.0
    %2832 = vmatprep.subr.mxu0 0.0
    %2833 = vmatpush1.msra.mxu0 0.0
    %2834 = vmatprep.subr.mxu0 0.0
    %2835 = vmatpush1.msra.mxu0 0.0
    %2836 = vmatprep.mubr.f32.mxu0 0.0
    %2837 = vmatmul.mubr.f32.gmra.mrb[0].mxu0 %v2088
    %v2838 = vpop.f32.mrb[0].mxu0
    %v2839 = vadd.f32 %v2771, %v2838
    %v2840 = vpop.f32.mrb[0].mxu0
    %2841 = vdwg.mxu0
    %2842 = vmatprep.subr.mxu0 0.0
    %2843 = vmatpush1.msra.mxu0 %v2066
    %2844 = vmatprep.subr.mxu0 0.0
    %2845 = vmatpush1.msra.mxu0 %v2067
    %2846 = vmatprep.subr.mxu0 0.0
    %2847 = vmatpush1.msra.mxu0 %v2068
    %2848 = vmatprep.subr.mxu0 0.0
    %2849 = vmatpush1.msra.mxu0 %v2069
    %2850 = vmatprep.subr.mxu0 0.0
    %2851 = vmatpush1.msra.mxu0 0.0
    %2852 = vmatprep.subr.mxu0 0.0
    %2853 = vmatpush1.msra.mxu0 0.0
    %2854 = vmatprep.subr.mxu0 0.0
    %2855 = vmatpush1.msra.mxu0 0.0
    %2856 = vmatprep.subr.mxu0 0.0
    %2857 = vmatpush1.msra.mxu0 0.0
    %2858 = vmatprep.subr.mxu0 0.0
    %2859 = vmatpush1.msra.mxu0 0.0
    %2860 = vmatprep.subr.mxu0 0.0
    %2861 = vmatpush1.msra.mxu0 0.0
    %2862 = vmatprep.subr.mxu0 0.0
    %2863 = vmatpush1.msra.mxu0 0.0
    %2864 = vmatprep.subr.mxu0 0.0
    %2865 = vmatpush1.msra.mxu0 0.0
    %2866 = vmatprep.subr.mxu0 0.0
    %2867 = vmatpush1.msra.mxu0 0.0
    %2868 = vmatprep.subr.mxu0 0.0
    %2869 = vmatpush1.msra.mxu0 0.0
    %2870 = vmatprep.subr.mxu0 0.0
    %2871 = vmatpush1.msra.mxu0 0.0
    %2872 = vmatprep.subr.mxu0 0.0
    %2873 = vmatpush1.msra.mxu0 0.0
    %2874 = vmatprep.subr.mxu0 0.0
    %2875 = vmatpush1.msra.mxu0 0.0
    %2876 = vmatprep.subr.mxu0 0.0
    %2877 = vmatpush1.msra.mxu0 0.0
    %2878 = vmatprep.subr.mxu0 0.0
    %2879 = vmatpush1.msra.mxu0 0.0
    %2880 = vmatprep.subr.mxu0 0.0
    %2881 = vmatpush1.msra.mxu0 0.0
    %2882 = vmatprep.subr.mxu0 0.0
    %2883 = vmatpush1.msra.mxu0 0.0
    %2884 = vmatprep.subr.mxu0 0.0
    %2885 = vmatpush1.msra.mxu0 0.0
    %2886 = vmatprep.subr.mxu0 0.0
    %2887 = vmatpush1.msra.mxu0 0.0
    %2888 = vmatprep.subr.mxu0 0.0
    %2889 = vmatpush1.msra.mxu0 0.0
    %2890 = vmatprep.subr.mxu0 0.0
    %2891 = vmatpush1.msra.mxu0 0.0
    %2892 = vmatprep.subr.mxu0 0.0
    %2893 = vmatpush1.msra.mxu0 0.0
    %2894 = vmatprep.subr.mxu0 0.0
    %2895 = vmatpush1.msra.mxu0 0.0
    %2896 = vmatprep.subr.mxu0 0.0
    %2897 = vmatpush1.msra.mxu0 0.0
    %2898 = vmatprep.subr.mxu0 0.0
    %2899 = vmatpush1.msra.mxu0 0.0
    %2900 = vmatprep.subr.mxu0 0.0
    %2901 = vmatpush1.msra.mxu0 0.0
    %2902 = vmatprep.subr.mxu0 0.0
    %2903 = vmatpush1.msra.mxu0 0.0
    %2904 = vmatprep.subr.mxu0 0.0
    %2905 = vmatpush1.msra.mxu0 0.0
    %2906 = vmatprep.mubr.f32.mxu0 0.0
    %2907 = vmatmul.mubr.f32.gmra.mrb[0].mxu0 %v2088
    %v2908 = vpop.f32.mrb[0].mxu0
    %v2909 = vadd.f32 0.0, %v2908
    %v2910 = vpop.f32.mrb[0].mxu0
    %2911 = vdwg.mxu0
    %v2912 = vrot.slane %v2028, 5
    %v2913 = vsel %vm46, %v2912, 0
    %2915 = vmatprep.subr.mxu0 0.0
    %2916 = vmatpush1.msra.mxu0 %v2062
    %2917 = vmatprep.subr.mxu0 0.0
    %2918 = vmatpush1.msra.mxu0 %v2063
    %2919 = vmatprep.subr.mxu0 0.0
    %2920 = vmatpush1.msra.mxu0 %v2064
    %2921 = vmatprep.subr.mxu0 0.0
    %2922 = vmatpush1.msra.mxu0 %v2065
    %2923 = vmatprep.subr.mxu0 0.0
    %2924 = vmatpush1.msra.mxu0 0.0
    %2925 = vmatprep.subr.mxu0 0.0
    %2926 = vmatpush1.msra.mxu0 0.0
    %2927 = vmatprep.subr.mxu0 0.0
    %2928 = vmatpush1.msra.mxu0 0.0
    %2929 = vmatprep.subr.mxu0 0.0
    %2930 = vmatpush1.msra.mxu0 0.0
    %2931 = vmatprep.subr.mxu0 0.0
    %2932 = vmatpush1.msra.mxu0 0.0
    %2933 = vmatprep.subr.mxu0 0.0
    %2934 = vmatpush1.msra.mxu0 0.0
    %2935 = vmatprep.subr.mxu0 0.0
    %2936 = vmatpush1.msra.mxu0 0.0
    %2937 = vmatprep.subr.mxu0 0.0
    %2938 = vmatpush1.msra.mxu0 0.0
    %2939 = vmatprep.subr.mxu0 0.0
    %2940 = vmatpush1.msra.mxu0 0.0
    %2941 = vmatprep.subr.mxu0 0.0
    %2942 = vmatpush1.msra.mxu0 0.0
    %2943 = vmatprep.subr.mxu0 0.0
    %2944 = vmatpush1.msra.mxu0 0.0
    %2945 = vmatprep.subr.mxu0 0.0
    %2946 = vmatpush1.msra.mxu0 0.0
    %2947 = vmatprep.subr.mxu0 0.0
    %2948 = vmatpush1.msra.mxu0 0.0
    %2949 = vmatprep.subr.mxu0 0.0
    %2950 = vmatpush1.msra.mxu0 0.0
    %2951 = vmatprep.subr.mxu0 0.0
    %2952 = vmatpush1.msra.mxu0 0.0
    %2953 = vmatprep.subr.mxu0 0.0
    %2954 = vmatpush1.msra.mxu0 0.0
    %2955 = vmatprep.subr.mxu0 0.0
    %2956 = vmatpush1.msra.mxu0 0.0
    %2957 = vmatprep.subr.mxu0 0.0
    %2958 = vmatpush1.msra.mxu0 0.0
    %2959 = vmatprep.subr.mxu0 0.0
    %2960 = vmatpush1.msra.mxu0 0.0
    %2961 = vmatprep.subr.mxu0 0.0
    %2962 = vmatpush1.msra.mxu0 0.0
    %2963 = vmatprep.subr.mxu0 0.0
    %2964 = vmatpush1.msra.mxu0 0.0
    %2965 = vmatprep.subr.mxu0 0.0
    %2966 = vmatpush1.msra.mxu0 0.0
    %2967 = vmatprep.subr.mxu0 0.0
    %2968 = vmatpush1.msra.mxu0 0.0
    %2969 = vmatprep.subr.mxu0 0.0
    %2970 = vmatpush1.msra.mxu0 0.0
    %2971 = vmatprep.subr.mxu0 0.0
    %2972 = vmatpush1.msra.mxu0 0.0
    %2973 = vmatprep.subr.mxu0 0.0
    %2974 = vmatpush1.msra.mxu0 0.0
    %2975 = vmatprep.subr.mxu0 0.0
    %2976 = vmatpush1.msra.mxu0 0.0
    %2977 = vmatprep.subr.mxu0 0.0
    %2978 = vmatpush1.msra.mxu0 0.0
    %2979 = vmatprep.mubr.f32.mxu0 0.0
    %2980 = vmatmul.mubr.f32.gmra.mrb[0].mxu0 %v2913
    %v2981 = vpop.f32.mrb[0].mxu0
    %v2982 = vadd.f32 %v2909, %v2981
    %v2983 = vpop.f32.mrb[0].mxu0
    %2984 = vdwg.mxu0
    %v2986 = vsel %vm46, %v2839, 0
    %v2989 = vsel %vm46, %v2491, 0
    %v2992 = vsel %vm46, %v2496, 0
    %v2995 = vsel %vm46, %v2501, 0
    %v2998 = vsel %vm46, %v2506, 0
    %3000 = vmatprep.subr.mxu0 0.0
    %3001 = vmatpush1.xpose.msra.mxu0 %v2989
    %3002 = vmatprep.subr.mxu0 0.0
    %3003 = vmatpush1.xpose.msra.mxu0 %v2992
    %3004 = vmatprep.subr.mxu0 0.0
    %3005 = vmatpush1.xpose.msra.mxu0 %v2995
    %3006 = vmatprep.subr.mxu0 0.0
    %3007 = vmatpush1.xpose.msra.mxu0 %v2998
    %3008 = vmatprep.subr.mxu0 0.0
    %3009 = vmatpush1.xpose.msra.mxu0 0.0
    %3010 = vmatprep.subr.mxu0 0.0
    %3011 = vmatpush1.xpose.msra.mxu0 0.0
    %3012 = vmatprep.subr.mxu0 0.0
    %3013 = vmatpush1.xpose.msra.mxu0 0.0
    %3014 = vmatprep.subr.mxu0 0.0
    %3015 = vmatpush1.xpose.msra.mxu0 0.0
    %3016 = vmatprep.subr.mxu0 0.0
    %3017 = vmatpush1.xpose.msra.mxu0 0.0
    %3018 = vmatprep.subr.mxu0 0.0
    %3019 = vmatpush1.xpose.msra.mxu0 0.0
    %3020 = vmatprep.subr.mxu0 0.0
    %3021 = vmatpush1.xpose.msra.mxu0 0.0
    %3022 = vmatprep.subr.mxu0 0.0
    %3023 = vmatpush1.xpose.msra.mxu0 0.0
    %3024 = vmatprep.subr.mxu0 0.0
    %3025 = vmatpush1.xpose.msra.mxu0 0.0
    %3026 = vmatprep.subr.mxu0 0.0
    %3027 = vmatpush1.xpose.msra.mxu0 0.0
    %3028 = vmatprep.subr.mxu0 0.0
    %3029 = vmatpush1.xpose.msra.mxu0 0.0
    %3030 = vmatprep.subr.mxu0 0.0
    %3031 = vmatpush1.xpose.msra.mxu0 0.0
    %3032 = vmatprep.subr.mxu0 0.0
    %3033 = vmatpush1.xpose.msra.mxu0 0.0
    %3034 = vmatprep.subr.mxu0 0.0
    %3035 = vmatpush1.xpose.msra.mxu0 0.0
    %3036 = vmatprep.subr.mxu0 0.0
    %3037 = vmatpush1.xpose.msra.mxu0 0.0
    %3038 = vmatprep.subr.mxu0 0.0
    %3039 = vmatpush1.xpose.msra.mxu0 0.0
    %3040 = vmatprep.subr.mxu0 0.0
    %3041 = vmatpush1.xpose.msra.mxu0 0.0
    %3042 = vmatprep.subr.mxu0 0.0
    %3043 = vmatpush1.xpose.msra.mxu0 0.0
    %3044 = vmatprep.subr.mxu0 0.0
    %3045 = vmatpush1.xpose.msra.mxu0 0.0
    %3046 = vmatprep.subr.mxu0 0.0
    %3047 = vmatpush1.xpose.msra.mxu0 0.0
    %3048 = vmatprep.subr.mxu0 0.0
    %3049 = vmatpush1.xpose.msra.mxu0 0.0
    %3050 = vmatprep.subr.mxu0 0.0
    %3051 = vmatpush1.xpose.msra.mxu0 0.0
    %3052 = vmatprep.subr.mxu0 0.0
    %3053 = vmatpush1.xpose.msra.mxu0 0.0
    %3054 = vmatprep.subr.mxu0 0.0
    %3055 = vmatpush1.xpose.msra.mxu0 0.0
    %3056 = vmatprep.subr.mxu0 0.0
    %3057 = vmatpush1.xpose.msra.mxu0 0.0
    %3058 = vmatprep.subr.mxu0 0.0
    %3059 = vmatpush1.xpose.msra.mxu0 0.0
    %3060 = vmatprep.subr.mxu0 0.0
    %3061 = vmatpush1.xpose.msra.mxu0 0.0
    %3062 = vmatprep.subr.mxu0 0.0
    %3063 = vmatpush1.xpose.msra.mxu0 0.0
    %3064 = vmatprep.mubr.f32.mxu0 0.0
    %3065 = vmatmul.mubr.f32.gmra.mrb[0].mxu0 %v2986
    %v3066 = vpop.f32.mrb[0].mxu0
    %v3067 = vadd.f32 %v32, %v3066
    %v3068 = vpop.f32.mrb[0].mxu0
    %3069 = vdwg.mxu0
    %v3070 = vsel %vm46, %v3067, -inf
    %3071 = vmax.xlane.f32.xlu0 %v3070
    %v3072 = vpop.xlane.xlu0 %3071
    %v3073 = vsub.f32 %v3067, %v3072
    %v3074 = vmul.f32 %v3073, 1.442695
    %v3075 = vpow.pop %v3074
    %v3076 = vsel %vm46, %v3075, 0.0
    %3077 = vadd.xlane.f32.xlu0 %v3076
    %v3078 = vpop.xlane.xlu0 %3077
    %v3079 = vrcp.pop %v3078
    %v3080 = vmul.f32 %v3075, %v3079
    %v3082 = vsel %vm46, %v3080, 0
    %3084 = vmatprep.subr.mxu0 0.0
    %3085 = vmatpush1.msra.mxu0 %v2580
    %3086 = vmatprep.subr.mxu0 0.0
    %3087 = vmatpush1.msra.mxu0 %v2585
    %3088 = vmatprep.subr.mxu0 0.0
    %3089 = vmatpush1.msra.mxu0 %v2590
    %3090 = vmatprep.subr.mxu0 0.0
    %3091 = vmatpush1.msra.mxu0 %v2595
    %3092 = vmatprep.subr.mxu0 0.0
    %3093 = vmatpush1.msra.mxu0 0.0
    %3094 = vmatprep.subr.mxu0 0.0
    %3095 = vmatpush1.msra.mxu0 0.0
    %3096 = vmatprep.subr.mxu0 0.0
    %3097 = vmatpush1.msra.mxu0 0.0
    %3098 = vmatprep.subr.mxu0 0.0
    %3099 = vmatpush1.msra.mxu0 0.0
    %3100 = vmatprep.subr.mxu0 0.0
    %3101 = vmatpush1.msra.mxu0 0.0
    %3102 = vmatprep.subr.mxu0 0.0
    %3103 = vmatpush1.msra.mxu0 0.0
    %3104 = vmatprep.subr.mxu0 0.0
    %3105 = vmatpush1.msra.mxu0 0.0
    %3106 = vmatprep.subr.mxu0 0.0
    %3107 = vmatpush1.msra.mxu0 0.0
    %3108 = vmatprep.subr.mxu0 0.0
    %3109 = vmatpush1.msra.mxu0 0.0
    %3110 = vmatprep.subr.mxu0 0.0
    %3111 = vmatpush1.msra.mxu0 0.0
    %3112 = vmatprep.subr.mxu0 0.0
    %3113 = vmatpush1.msra.mxu0 0.0
    %3114 = vmatprep.subr.mxu0 0.0
    %3115 = vmatpush1.msra.mxu0 0.0
    %3116 = vmatprep.subr.mxu0 0.0
    %3117 = vmatpush1.msra.mxu0 0.0
    %3118 = vmatprep.subr.mxu0 0.0
    %3119 = vmatpush1.msra.mxu0 0.0
    %3120 = vmatprep.subr.mxu0 0.0
    %3121 = vmatpush1.msra.mxu0 0.0
    %3122 = vmatprep.subr.mxu0 0.0
    %3123 = vmatpush1.msra.mxu0 0.0
    %3124 = vmatprep.subr.mxu0 0.0
    %3125 = vmatpush1.msra.mxu0 0.0
    %3126 = vmatprep.subr.mxu0 0.0
    %3127 = vmatpush1.msra.mxu0 0.0
    %3128 = vmatprep.subr.mxu0 0.0
    %3129 = vmatpush1.msra.mxu0 0.0
    %3130 = vmatprep.subr.mxu0 0.0
    %3131 = vmatpush1.msra.mxu0 0.0
    %3132 = vmatprep.subr.mxu0 0.0
    %3133 = vmatpush1.msra.mxu0 0.0
    %3134 = vmatprep.subr.mxu0 0.0
    %3135 = vmatpush1.msra.mxu0 0.0
    %3136 = vmatprep.subr.mxu0 0.0
    %3137 = vmatpush1.msra.mxu0 0.0
    %3138 = vmatprep.subr.mxu0 0.0
    %3139 = vmatpush1.msra.mxu0 0.0
    %3140 = vmatprep.subr.mxu0 0.0
    %3141 = vmatpush1.msra.mxu0 0.0
    %3142 = vmatprep.subr.mxu0 0.0
    %3143 = vmatpush1.msra.mxu0 0.0
    %3144 = vmatprep.subr.mxu0 0.0
    %3145 = vmatpush1.msra.mxu0 0.0
    %3146 = vmatprep.subr.mxu0 0.0
    %3147 = vmatpush1.msra.mxu0 0.0
    %3148 = vmatprep.mubr.f32.mxu0 0.0
    %3149 = vmatmul.mubr.f32.gmra.mrb[0].mxu0 %v3082
    %v3150 = vpop.f32.mrb[0].mxu0
    %v3151 = vadd.f32 0.0, %v3150
    %v3152 = vpop.f32.mrb[0].mxu0
    %3153 = vdwg.mxu0
    %v3154 = vlaneseq
    %v3155 = vshrl.u32 %v3154, 7
    %v3156 = vsub.s32 0, %v3155
    %v3157 = vrot.slane %v2086, %v3156
    %v3159 = vsel %vm46, %v3151, 0
    %3161 = vmatprep.subr.mxu0 0.0
    %3162 = vmatpush1.msra.mxu0 %v2070
    %3163 = vmatprep.subr.mxu0 0.0
    %3164 = vmatpush1.msra.mxu0 %v2071
    %3165 = vmatprep.subr.mxu0 0.0
    %3166 = vmatpush1.msra.mxu0 %v2072
    %3167 = vmatprep.subr.mxu0 0.0
    %3168 = vmatpush1.msra.mxu0 %v2073
    %3169 = vmatprep.subr.mxu0 0.0
    %3170 = vmatpush1.msra.mxu0 0.0
    %3171 = vmatprep.subr.mxu0 0.0
    %3172 = vmatpush1.msra.mxu0 0.0
    %3173 = vmatprep.subr.mxu0 0.0
    %3174 = vmatpush1.msra.mxu0 0.0
    %3175 = vmatprep.subr.mxu0 0.0
    %3176 = vmatpush1.msra.mxu0 0.0
    %3177 = vmatprep.subr.mxu0 0.0
    %3178 = vmatpush1.msra.mxu0 0.0
    %3179 = vmatprep.subr.mxu0 0.0
    %3180 = vmatpush1.msra.mxu0 0.0
    %3181 = vmatprep.subr.mxu0 0.0
    %3182 = vmatpush1.msra.mxu0 0.0
    %3183 = vmatprep.subr.mxu0 0.0
    %3184 = vmatpush1.msra.mxu0 0.0
    %3185 = vmatprep.subr.mxu0 0.0
    %3186 = vmatpush1.msra.mxu0 0.0
    %3187 = vmatprep.subr.mxu0 0.0
    %3188 = vmatpush1.msra.mxu0 0.0
    %3189 = vmatprep.subr.mxu0 0.0
    %3190 = vmatpush1.msra.mxu0 0.0
    %3191 = vmatprep.subr.mxu0 0.0
    %3192 = vmatpush1.msra.mxu0 0.0
    %3193 = vmatprep.subr.mxu0 0.0
    %3194 = vmatpush1.msra.mxu0 0.0
    %3195 = vmatprep.subr.mxu0 0.0
    %3196 = vmatpush1.msra.mxu0 0.0
    %3197 = vmatprep.subr.mxu0 0.0
    %3198 = vmatpush1.msra.mxu0 0.0
    %3199 = vmatprep.subr.mxu0 0.0
    %3200 = vmatpush1.msra.mxu0 0.0
    %3201 = vmatprep.subr.mxu0 0.0
    %3202 = vmatpush1.msra.mxu0 0.0
    %3203 = vmatprep.subr.mxu0 0.0
    %3204 = vmatpush1.msra.mxu0 0.0
    %3205 = vmatprep.subr.mxu0 0.0
    %3206 = vmatpush1.msra.mxu0 0.0
    %3207 = vmatprep.subr.mxu0 0.0
    %3208 = vmatpush1.msra.mxu0 0.0
    %3209 = vmatprep.subr.mxu0 0.0
    %3210 = vmatpush1.msra.mxu0 0.0
    %3211 = vmatprep.subr.mxu0 0.0
    %3212 = vmatpush1.msra.mxu0 0.0
    %3213 = vmatprep.subr.mxu0 0.0
    %3214 = vmatpush1.msra.mxu0 0.0
    %3215 = vmatprep.subr.mxu0 0.0
    %3216 = vmatpush1.msra.mxu0 0.0
    %3217 = vmatprep.subr.mxu0 0.0
    %3218 = vmatpush1.msra.mxu0 0.0
    %3219 = vmatprep.subr.mxu0 0.0
    %3220 = vmatpush1.msra.mxu0 0.0
    %3221 = vmatprep.subr.mxu0 0.0
    %3222 = vmatpush1.msra.mxu0 0.0
    %3223 = vmatprep.subr.mxu0 0.0
    %3224 = vmatpush1.msra.mxu0 0.0
    %3225 = vmatprep.mubr.f32.mxu0 0.0
    %3226 = vmatmul.mubr.f32.gmra.mrb[0].mxu0 %v3159
    %v3227 = vpop.f32.mrb[0].mxu0
    %v3228 = vadd.f32 %v3157, %v3227
    %v3229 = vpop.f32.mrb[0].mxu0
    %3230 = vdwg.mxu0
    %v3232 = vsel %vm46, %v2982, 0
    %v3235 = vsel %vm46, %v2665, 0
    %v3238 = vsel %vm46, %v2670, 0
    %v3241 = vsel %vm46, %v2675, 0
    %v3244 = vsel %vm46, %v2680, 0
    %3246 = vmatprep.subr.mxu0 0.0
    %3247 = vmatpush1.xpose.msra.mxu0 %v3235
    %3248 = vmatprep.subr.mxu0 0.0
    %3249 = vmatpush1.xpose.msra.mxu0 %v3238
    %3250 = vmatprep.subr.mxu0 0.0
    %3251 = vmatpush1.xpose.msra.mxu0 %v3241
    %3252 = vmatprep.subr.mxu0 0.0
    %3253 = vmatpush1.xpose.msra.mxu0 %v3244
    %3254 = vmatprep.subr.mxu0 0.0
    %3255 = vmatpush1.xpose.msra.mxu0 0.0
    %3256 = vmatprep.subr.mxu0 0.0
    %3257 = vmatpush1.xpose.msra.mxu0 0.0
    %3258 = vmatprep.subr.mxu0 0.0
    %3259 = vmatpush1.xpose.msra.mxu0 0.0
    %3260 = vmatprep.subr.mxu0 0.0
    %3261 = vmatpush1.xpose.msra.mxu0 0.0
    %3262 = vmatprep.subr.mxu0 0.0
    %3263 = vmatpush1.xpose.msra.mxu0 0.0
    %3264 = vmatprep.subr.mxu0 0.0
    %3265 = vmatpush1.xpose.msra.mxu0 0.0
    %3266 = vmatprep.subr.mxu0 0.0
    %3267 = vmatpush1.xpose.msra.mxu0 0.0
    %3268 = vmatprep.subr.mxu0 0.0
    %3269 = vmatpush1.xpose.msra.mxu0 0.0
    %3270 = vmatprep.subr.mxu0 0.0
    %3271 = vmatpush1.xpose.msra.mxu0 0.0
    %3272 = vmatprep.subr.mxu0 0.0
    %3273 = vmatpush1.xpose.msra.mxu0 0.0
    %3274 = vmatprep.subr.mxu0 0.0
    %3275 = vmatpush1.xpose.msra.mxu0 0.0
    %3276 = vmatprep.subr.mxu0 0.0
    %3277 = vmatpush1.xpose.msra.mxu0 0.0
    %3278 = vmatprep.subr.mxu0 0.0
    %3279 = vmatpush1.xpose.msra.mxu0 0.0
    %3280 = vmatprep.subr.mxu0 0.0
    %3281 = vmatpush1.xpose.msra.mxu0 0.0
    %3282 = vmatprep.subr.mxu0 0.0
    %3283 = vmatpush1.xpose.msra.mxu0 0.0
    %3284 = vmatprep.subr.mxu0 0.0
    %3285 = vmatpush1.xpose.msra.mxu0 0.0
    %3286 = vmatprep.subr.mxu0 0.0
    %3287 = vmatpush1.xpose.msra.mxu0 0.0
    %3288 = vmatprep.subr.mxu0 0.0
    %3289 = vmatpush1.xpose.msra.mxu0 0.0
    %3290 = vmatprep.subr.mxu0 0.0
    %3291 = vmatpush1.xpose.msra.mxu0 0.0
    %3292 = vmatprep.subr.mxu0 0.0
    %3293 = vmatpush1.xpose.msra.mxu0 0.0
    %3294 = vmatprep.subr.mxu0 0.0
    %3295 = vmatpush1.xpose.msra.mxu0 0.0
    %3296 = vmatprep.subr.mxu0 0.0
    %3297 = vmatpush1.xpose.msra.mxu0 0.0
    %3298 = vmatprep.subr.mxu0 0.0
    %3299 = vmatpush1.xpose.msra.mxu0 0.0
    %3300 = vmatprep.subr.mxu0 0.0
    %3301 = vmatpush1.xpose.msra.mxu0 0.0
    %3302 = vmatprep.subr.mxu0 0.0
    %3303 = vmatpush1.xpose.msra.mxu0 0.0
    %3304 = vmatprep.subr.mxu0 0.0
    %3305 = vmatpush1.xpose.msra.mxu0 0.0
    %3306 = vmatprep.subr.mxu0 0.0
    %3307 = vmatpush1.xpose.msra.mxu0 0.0
    %3308 = vmatprep.subr.mxu0 0.0
    %3309 = vmatpush1.xpose.msra.mxu0 0.0
    %3310 = vmatprep.mubr.f32.mxu0 0.0
    %3311 = vmatmul.mubr.f32.gmra.mrb[0].mxu0 %v3232
    %v3312 = vpop.f32.mrb[0].mxu0
    %v3313 = vadd.f32 %v33, %v3312
    %v3314 = vpop.f32.mrb[0].mxu0
    %3315 = vdwg.mxu0
    %v3316 = vsel %vm1542, %v3313, -inf
    %3317 = vmax.xlane.f32.xlu0 %v3316
    %v3318 = vpop.xlane.xlu0 %3317
    %v3319 = vsub.f32 %v3313, %v3318
    %v3320 = vmul.f32 %v3319, 1.442695
    %v3321 = vpow.pop %v3320
    %v3322 = vsel %vm1542, %v3321, 0.0
    %3323 = vadd.xlane.f32.xlu0 %v3322
    %v3324 = vpop.xlane.xlu0 %3323
    %v3325 = vrcp.pop %v3324
    %v3326 = vmul.f32 %v3321, %v3325
    %v3328 = vsel %vm46, %v3326, 0
    %3330 = vmatprep.subr.mxu0 0.0
    %3331 = vmatpush1.msra.mxu0 %v2750
    %3332 = vmatprep.subr.mxu0 0.0
    %3333 = vmatpush1.msra.mxu0 %v2755
    %3334 = vmatprep.subr.mxu0 0.0
    %3335 = vmatpush1.msra.mxu0 %v2760
    %3336 = vmatprep.subr.mxu0 0.0
    %3337 = vmatpush1.msra.mxu0 %v2765
    %3338 = vmatprep.subr.mxu0 0.0
    %3339 = vmatpush1.msra.mxu0 0.0
    %3340 = vmatprep.subr.mxu0 0.0
    %3341 = vmatpush1.msra.mxu0 0.0
    %3342 = vmatprep.subr.mxu0 0.0
    %3343 = vmatpush1.msra.mxu0 0.0
    %3344 = vmatprep.subr.mxu0 0.0
    %3345 = vmatpush1.msra.mxu0 0.0
    %3346 = vmatprep.subr.mxu0 0.0
    %3347 = vmatpush1.msra.mxu0 0.0
    %3348 = vmatprep.subr.mxu0 0.0
    %3349 = vmatpush1.msra.mxu0 0.0
    %3350 = vmatprep.subr.mxu0 0.0
    %3351 = vmatpush1.msra.mxu0 0.0
    %3352 = vmatprep.subr.mxu0 0.0
    %3353 = vmatpush1.msra.mxu0 0.0
    %3354 = vmatprep.subr.mxu0 0.0
    %3355 = vmatpush1.msra.mxu0 0.0
    %3356 = vmatprep.subr.mxu0 0.0
    %3357 = vmatpush1.msra.mxu0 0.0
    %3358 = vmatprep.subr.mxu0 0.0
    %3359 = vmatpush1.msra.mxu0 0.0
    %3360 = vmatprep.subr.mxu0 0.0
    %3361 = vmatpush1.msra.mxu0 0.0
    %3362 = vmatprep.subr.mxu0 0.0
    %3363 = vmatpush1.msra.mxu0 0.0
    %3364 = vmatprep.subr.mxu0 0.0
    %3365 = vmatpush1.msra.mxu0 0.0
    %3366 = vmatprep.subr.mxu0 0.0
    %3367 = vmatpush1.msra.mxu0 0.0
    %3368 = vmatprep.subr.mxu0 0.0
    %3369 = vmatpush1.msra.mxu0 0.0
    %3370 = vmatprep.subr.mxu0 0.0
    %3371 = vmatpush1.msra.mxu0 0.0
    %3372 = vmatprep.subr.mxu0 0.0
    %3373 = vmatpush1.msra.mxu0 0.0
    %3374 = vmatprep.subr.mxu0 0.0
    %3375 = vmatpush1.msra.mxu0 0.0
    %3376 = vmatprep.subr.mxu0 0.0
    %3377 = vmatpush1.msra.mxu0 0.0
    %3378 = vmatprep.subr.mxu0 0.0
    %3379 = vmatpush1.msra.mxu0 0.0
    %3380 = vmatprep.subr.mxu0 0.0
    %3381 = vmatpush1.msra.mxu0 0.0
    %3382 = vmatprep.subr.mxu0 0.0
    %3383 = vmatpush1.msra.mxu0 0.0
    %3384 = vmatprep.subr.mxu0 0.0
    %3385 = vmatpush1.msra.mxu0 0.0
    %3386 = vmatprep.subr.mxu0 0.0
    %3387 = vmatpush1.msra.mxu0 0.0
    %3388 = vmatprep.subr.mxu0 0.0
    %3389 = vmatpush1.msra.mxu0 0.0
    %3390 = vmatprep.subr.mxu0 0.0
    %3391 = vmatpush1.msra.mxu0 0.0
    %3392 = vmatprep.subr.mxu0 0.0
    %3393 = vmatpush1.msra.mxu0 0.0
    %3394 = vmatprep.mubr.f32.mxu0 0.0
    %3395 = vmatmul.mubr.f32.gmra.mrb[0].mxu0 %v3328
    %v3396 = vpop.f32.mrb[0].mxu0
    %v3397 = vadd.f32 0.0, %v3396
    %v3398 = vpop.f32.mrb[0].mxu0
    %3399 = vdwg.mxu0
    %v3401 = vsel %vm46, %v3397, 0
    %3403 = vmatprep.subr.mxu0 0.0
    %3404 = vmatpush1.msra.mxu0 %v2070
    %3405 = vmatprep.subr.mxu0 0.0
    %3406 = vmatpush1.msra.mxu0 %v2071
    %3407 = vmatprep.subr.mxu0 0.0
    %3408 = vmatpush1.msra.mxu0 %v2072
    %3409 = vmatprep.subr.mxu0 0.0
    %3410 = vmatpush1.msra.mxu0 %v2073
    %3411 = vmatprep.subr.mxu0 0.0
    %3412 = vmatpush1.msra.mxu0 0.0
    %3413 = vmatprep.subr.mxu0 0.0
    %3414 = vmatpush1.msra.mxu0 0.0
    %3415 = vmatprep.subr.mxu0 0.0
    %3416 = vmatpush1.msra.mxu0 0.0
    %3417 = vmatprep.subr.mxu0 0.0
    %3418 = vmatpush1.msra.mxu0 0.0
    %3419 = vmatprep.subr.mxu0 0.0
    %3420 = vmatpush1.msra.mxu0 0.0
    %3421 = vmatprep.subr.mxu0 0.0
    %3422 = vmatpush1.msra.mxu0 0.0
    %3423 = vmatprep.subr.mxu0 0.0
    %3424 = vmatpush1.msra.mxu0 0.0
    %3425 = vmatprep.subr.mxu0 0.0
    %3426 = vmatpush1.msra.mxu0 0.0
    %3427 = vmatprep.subr.mxu0 0.0
    %3428 = vmatpush1.msra.mxu0 0.0
    %3429 = vmatprep.subr.mxu0 0.0
    %3430 = vmatpush1.msra.mxu0 0.0
    %3431 = vmatprep.subr.mxu0 0.0
    %3432 = vmatpush1.msra.mxu0 0.0
    %3433 = vmatprep.subr.mxu0 0.0
    %3434 = vmatpush1.msra.mxu0 0.0
    %3435 = vmatprep.subr.mxu0 0.0
    %3436 = vmatpush1.msra.mxu0 0.0
    %3437 = vmatprep.subr.mxu0 0.0
    %3438 = vmatpush1.msra.mxu0 0.0
    %3439 = vmatprep.subr.mxu0 0.0
    %3440 = vmatpush1.msra.mxu0 0.0
    %3441 = vmatprep.subr.mxu0 0.0
    %3442 = vmatpush1.msra.mxu0 0.0
    %3443 = vmatprep.subr.mxu0 0.0
    %3444 = vmatpush1.msra.mxu0 0.0
    %3445 = vmatprep.subr.mxu0 0.0
    %3446 = vmatpush1.msra.mxu0 0.0
    %3447 = vmatprep.subr.mxu0 0.0
    %3448 = vmatpush1.msra.mxu0 0.0
    %3449 = vmatprep.subr.mxu0 0.0
    %3450 = vmatpush1.msra.mxu0 0.0
    %3451 = vmatprep.subr.mxu0 0.0
    %3452 = vmatpush1.msra.mxu0 0.0
    %3453 = vmatprep.subr.mxu0 0.0
    %3454 = vmatpush1.msra.mxu0 0.0
    %3455 = vmatprep.subr.mxu0 0.0
    %3456 = vmatpush1.msra.mxu0 0.0
    %3457 = vmatprep.subr.mxu0 0.0
    %3458 = vmatpush1.msra.mxu0 0.0
    %3459 = vmatprep.subr.mxu0 0.0
    %3460 = vmatpush1.msra.mxu0 0.0
    %3461 = vmatprep.subr.mxu0 0.0
    %3462 = vmatpush1.msra.mxu0 0.0
    %3463 = vmatprep.subr.mxu0 0.0
    %3464 = vmatpush1.msra.mxu0 0.0
    %3465 = vmatprep.subr.mxu0 0.0
    %3466 = vmatpush1.msra.mxu0 0.0
    %3467 = vmatprep.mubr.f32.mxu0 0.0
    %3468 = vmatmul.mubr.f32.gmra.mrb[0].mxu0 %v3401
    %v3469 = vpop.f32.mrb[0].mxu0
    %v3470 = vadd.f32 %v2086, %v3469
    %v3471 = vpop.f32.mrb[0].mxu0
    %3472 = vdwg.mxu0
    %v3474 = vsel %vm46, %v3470, 0
    %3476 = vmatprep.subr.mxu0 0.0
    %3477 = vmatpush1.msra.mxu0 %v2078
    %3478 = vmatprep.subr.mxu0 0.0
    %3479 = vmatpush1.msra.mxu0 %v2079
    %3480 = vmatprep.subr.mxu0 0.0
    %3481 = vmatpush1.msra.mxu0 %v2080
    %3482 = vmatprep.subr.mxu0 0.0
    %3483 = vmatpush1.msra.mxu0 %v2081
    %3484 = vmatprep.subr.mxu0 0.0
    %3485 = vmatpush1.msra.mxu0 0.0
    %3486 = vmatprep.subr.mxu0 0.0
    %3487 = vmatpush1.msra.mxu0 0.0
    %3488 = vmatprep.subr.mxu0 0.0
    %3489 = vmatpush1.msra.mxu0 0.0
    %3490 = vmatprep.subr.mxu0 0.0
    %3491 = vmatpush1.msra.mxu0 0.0
    %3492 = vmatprep.subr.mxu0 0.0
    %3493 = vmatpush1.msra.mxu0 0.0
    %3494 = vmatprep.subr.mxu0 0.0
    %3495 = vmatpush1.msra.mxu0 0.0
    %3496 = vmatprep.subr.mxu0 0.0
    %3497 = vmatpush1.msra.mxu0 0.0
    %3498 = vmatprep.subr.mxu0 0.0
    %3499 = vmatpush1.msra.mxu0 0.0
    %3500 = vmatprep.subr.mxu0 0.0
    %3501 = vmatpush1.msra.mxu0 0.0
    %3502 = vmatprep.subr.mxu0 0.0
    %3503 = vmatpush1.msra.mxu0 0.0
    %3504 = vmatprep.subr.mxu0 0.0
    %3505 = vmatpush1.msra.mxu0 0.0
    %3506 = vmatprep.subr.mxu0 0.0
    %3507 = vmatpush1.msra.mxu0 0.0
    %3508 = vmatprep.subr.mxu0 0.0
    %3509 = vmatpush1.msra.mxu0 0.0
    %3510 = vmatprep.subr.mxu0 0.0
    %3511 = vmatpush1.msra.mxu0 0.0
    %3512 = vmatprep.subr.mxu0 0.0
    %3513 = vmatpush1.msra.mxu0 0.0
    %3514 = vmatprep.subr.mxu0 0.0
    %3515 = vmatpush1.msra.mxu0 0.0
    %3516 = vmatprep.subr.mxu0 0.0
    %3517 = vmatpush1.msra.mxu0 0.0
    %3518 = vmatprep.subr.mxu0 0.0
    %3519 = vmatpush1.msra.mxu0 0.0
    %3520 = vmatprep.subr.mxu0 0.0
    %3521 = vmatpush1.msra.mxu0 0.0
    %3522 = vmatprep.subr.mxu0 0.0
    %3523 = vmatpush1.msra.mxu0 0.0
    %3524 = vmatprep.subr.mxu0 0.0
    %3525 = vmatpush1.msra.mxu0 0.0
    %3526 = vmatprep.subr.mxu0 0.0
    %3527 = vmatpush1.msra.mxu0 0.0
    %3528 = vmatprep.subr.mxu0 0.0
    %3529 = vmatpush1.msra.mxu0 0.0
    %3530 = vmatprep.subr.mxu0 0.0
    %3531 = vmatpush1.msra.mxu0 0.0
    %3532 = vmatprep.subr.mxu0 0.0
    %3533 = vmatpush1.msra.mxu0 0.0
    %3534 = vmatprep.subr.mxu0 0.0
    %3535 = vmatpush1.msra.mxu0 0.0
    %3536 = vmatprep.subr.mxu0 0.0
    %3537 = vmatpush1.msra.mxu0 0.0
    %3538 = vmatprep.subr.mxu0 0.0
    %3539 = vmatpush1.msra.mxu0 0.0
    %3540 = vmatprep.mubr.f32.mxu0 0.0
    %3541 = vmatmul.mubr.f32.gmra.mrb[0].mxu0 %v3474
    %v3542 = vpop.f32.mrb[0].mxu0
    %v3543 = vadd.f32 0.0, %v3542
    %v3544 = vpop.f32.mrb[0].mxu0
    %3545 = vdwg.mxu0
    %v3547 = vrot.slane %v3228, 5
    %v3548 = vsel %vm46, %v3547, 0
    %3550 = vmatprep.subr.mxu0 0.0
    %3551 = vmatpush1.msra.mxu0 %v2074
    %3552 = vmatprep.subr.mxu0 0.0
    %3553 = vmatpush1.msra.mxu0 %v2075
    %3554 = vmatprep.subr.mxu0 0.0
    %3555 = vmatpush1.msra.mxu0 %v2076
    %3556 = vmatprep.subr.mxu0 0.0
    %3557 = vmatpush1.msra.mxu0 %v2077
    %3558 = vmatprep.subr.mxu0 0.0
    %3559 = vmatpush1.msra.mxu0 0.0
    %3560 = vmatprep.subr.mxu0 0.0
    %3561 = vmatpush1.msra.mxu0 0.0
    %3562 = vmatprep.subr.mxu0 0.0
    %3563 = vmatpush1.msra.mxu0 0.0
    %3564 = vmatprep.subr.mxu0 0.0
    %3565 = vmatpush1.msra.mxu0 0.0
    %3566 = vmatprep.subr.mxu0 0.0
    %3567 = vmatpush1.msra.mxu0 0.0
    %3568 = vmatprep.subr.mxu0 0.0
    %3569 = vmatpush1.msra.mxu0 0.0
    %3570 = vmatprep.subr.mxu0 0.0
    %3571 = vmatpush1.msra.mxu0 0.0
    %3572 = vmatprep.subr.mxu0 0.0
    %3573 = vmatpush1.msra.mxu0 0.0
    %3574 = vmatprep.subr.mxu0 0.0
    %3575 = vmatpush1.msra.mxu0 0.0
    %3576 = vmatprep.subr.mxu0 0.0
    %3577 = vmatpush1.msra.mxu0 0.0
    %3578 = vmatprep.subr.mxu0 0.0
    %3579 = vmatpush1.msra.mxu0 0.0
    %3580 = vmatprep.subr.mxu0 0.0
    %3581 = vmatpush1.msra.mxu0 0.0
    %3582 = vmatprep.subr.mxu0 0.0
    %3583 = vmatpush1.msra.mxu0 0.0
    %3584 = vmatprep.subr.mxu0 0.0
    %3585 = vmatpush1.msra.mxu0 0.0
    %3586 = vmatprep.subr.mxu0 0.0
    %3587 = vmatpush1.msra.mxu0 0.0
    %3588 = vmatprep.subr.mxu0 0.0
    %3589 = vmatpush1.msra.mxu0 0.0
    %3590 = vmatprep.subr.mxu0 0.0
    %3591 = vmatpush1.msra.mxu0 0.0
    %3592 = vmatprep.subr.mxu0 0.0
    %3593 = vmatpush1.msra.mxu0 0.0
    %3594 = vmatprep.subr.mxu0 0.0
    %3595 = vmatpush1.msra.mxu0 0.0
    %3596 = vmatprep.subr.mxu0 0.0
    %3597 = vmatpush1.msra.mxu0 0.0
    %3598 = vmatprep.subr.mxu0 0.0
    %3599 = vmatpush1.msra.mxu0 0.0
    %3600 = vmatprep.subr.mxu0 0.0
    %3601 = vmatpush1.msra.mxu0 0.0
    %3602 = vmatprep.subr.mxu0 0.0
    %3603 = vmatpush1.msra.mxu0 0.0
    %3604 = vmatprep.subr.mxu0 0.0
    %3605 = vmatpush1.msra.mxu0 0.0
    %3606 = vmatprep.subr.mxu0 0.0
    %3607 = vmatpush1.msra.mxu0 0.0
    %3608 = vmatprep.subr.mxu0 0.0
    %3609 = vmatpush1.msra.mxu0 0.0
    %3610 = vmatprep.subr.mxu0 0.0
    %3611 = vmatpush1.msra.mxu0 0.0
    %3612 = vmatprep.subr.mxu0 0.0
    %3613 = vmatpush1.msra.mxu0 0.0
    %3614 = vmatprep.mubr.f32.mxu0 0.0
    %3615 = vmatmul.mubr.f32.gmra.mrb[0].mxu0 %v3548
    %v3616 = vpop.f32.mrb[0].mxu0
    %v3617 = vadd.f32 %v3543, %v3616
    %v3618 = vpop.f32.mrb[0].mxu0
    %3619 = vdwg.mxu0
    %v3620 = vsel %vm46, %v3228, 0
    %3622 = vmatprep.subr.mxu0 0.0
    %3623 = vmatpush1.msra.mxu0 %v2078
    %3624 = vmatprep.subr.mxu0 0.0
    %3625 = vmatpush1.msra.mxu0 %v2079
    %3626 = vmatprep.subr.mxu0 0.0
    %3627 = vmatpush1.msra.mxu0 %v2080
    %3628 = vmatprep.subr.mxu0 0.0
    %3629 = vmatpush1.msra.mxu0 %v2081
    %3630 = vmatprep.subr.mxu0 0.0
    %3631 = vmatpush1.msra.mxu0 0.0
    %3632 = vmatprep.subr.mxu0 0.0
    %3633 = vmatpush1.msra.mxu0 0.0
    %3634 = vmatprep.subr.mxu0 0.0
    %3635 = vmatpush1.msra.mxu0 0.0
    %3636 = vmatprep.subr.mxu0 0.0
    %3637 = vmatpush1.msra.mxu0 0.0
    %3638 = vmatprep.subr.mxu0 0.0
    %3639 = vmatpush1.msra.mxu0 0.0
    %3640 = vmatprep.subr.mxu0 0.0
    %3641 = vmatpush1.msra.mxu0 0.0
    %3642 = vmatprep.subr.mxu0 0.0
    %3643 = vmatpush1.msra.mxu0 0.0
    %3644 = vmatprep.subr.mxu0 0.0
    %3645 = vmatpush1.msra.mxu0 0.0
    %3646 = vmatprep.subr.mxu0 0.0
    %3647 = vmatpush1.msra.mxu0 0.0
    %3648 = vmatprep.subr.mxu0 0.0
    %3649 = vmatpush1.msra.mxu0 0.0
    %3650 = vmatprep.subr.mxu0 0.0
    %3651 = vmatpush1.msra.mxu0 0.0
    %3652 = vmatprep.subr.mxu0 0.0
    %3653 = vmatpush1.msra.mxu0 0.0
    %3654 = vmatprep.subr.mxu0 0.0
    %3655 = vmatpush1.msra.mxu0 0.0
    %3656 = vmatprep.subr.mxu0 0.0
    %3657 = vmatpush1.msra.mxu0 0.0
    %3658 = vmatprep.subr.mxu0 0.0
    %3659 = vmatpush1.msra.mxu0 0.0
    %3660 = vmatprep.subr.mxu0 0.0
    %3661 = vmatpush1.msra.mxu0 0.0
    %3662 = vmatprep.subr.mxu0 0.0
    %3663 = vmatpush1.msra.mxu0 0.0
    %3664 = vmatprep.subr.mxu0 0.0
    %3665 = vmatpush1.msra.mxu0 0.0
    %3666 = vmatprep.subr.mxu0 0.0
    %3667 = vmatpush1.msra.mxu0 0.0
    %3668 = vmatprep.subr.mxu0 0.0
    %3669 = vmatpush1.msra.mxu0 0.0
    %3670 = vmatprep.subr.mxu0 0.0
    %3671 = vmatpush1.msra.mxu0 0.0
    %3672 = vmatprep.subr.mxu0 0.0
    %3673 = vmatpush1.msra.mxu0 0.0
    %3674 = vmatprep.subr.mxu0 0.0
    %3675 = vmatpush1.msra.mxu0 0.0
    %3676 = vmatprep.subr.mxu0 0.0
    %3677 = vmatpush1.msra.mxu0 0.0
    %3678 = vmatprep.subr.mxu0 0.0
    %3679 = vmatpush1.msra.mxu0 0.0
    %3680 = vmatprep.subr.mxu0 0.0
    %3681 = vmatpush1.msra.mxu0 0.0
    %3682 = vmatprep.subr.mxu0 0.0
    %3683 = vmatpush1.msra.mxu0 0.0
    %3684 = vmatprep.subr.mxu0 0.0
    %3685 = vmatpush1.msra.mxu0 0.0
    %3686 = vmatprep.mubr.f32.mxu0 0.0
    %3687 = vmatmul.mubr.f32.gmra.mrb[0].mxu0 %v3620
    %v3688 = vpop.f32.mrb[0].mxu0
    %v3689 = vadd.f32 0.0, %v3688
    %v3690 = vpop.f32.mrb[0].mxu0
    %3691 = vdwg.mxu0
    %3692 = vmatprep.subr.mxu0 0.0
    %3693 = vmatpush1.msra.mxu0 %v2074
    %3694 = vmatprep.subr.mxu0 0.0
    %3695 = vmatpush1.msra.mxu0 %v2075
    %3696 = vmatprep.subr.mxu0 0.0
    %3697 = vmatpush1.msra.mxu0 %v2076
    %3698 = vmatprep.subr.mxu0 0.0
    %3699 = vmatpush1.msra.mxu0 %v2077
    %3700 = vmatprep.subr.mxu0 0.0
    %3701 = vmatpush1.msra.mxu0 0.0
    %3702 = vmatprep.subr.mxu0 0.0
    %3703 = vmatpush1.msra.mxu0 0.0
    %3704 = vmatprep.subr.mxu0 0.0
    %3705 = vmatpush1.msra.mxu0 0.0
    %3706 = vmatprep.subr.mxu0 0.0
    %3707 = vmatpush1.msra.mxu0 0.0
    %3708 = vmatprep.subr.mxu0 0.0
    %3709 = vmatpush1.msra.mxu0 0.0
    %3710 = vmatprep.subr.mxu0 0.0
    %3711 = vmatpush1.msra.mxu0 0.0
    %3712 = vmatprep.subr.mxu0 0.0
    %3713 = vmatpush1.msra.mxu0 0.0
    %3714 = vmatprep.subr.mxu0 0.0
    %3715 = vmatpush1.msra.mxu0 0.0
    %3716 = vmatprep.subr.mxu0 0.0
    %3717 = vmatpush1.msra.mxu0 0.0
    %3718 = vmatprep.subr.mxu0 0.0
    %3719 = vmatpush1.msra.mxu0 0.0
    %3720 = vmatprep.subr.mxu0 0.0
    %3721 = vmatpush1.msra.mxu0 0.0
    %3722 = vmatprep.subr.mxu0 0.0
    %3723 = vmatpush1.msra.mxu0 0.0
    %3724 = vmatprep.subr.mxu0 0.0
    %3725 = vmatpush1.msra.mxu0 0.0
    %3726 = vmatprep.subr.mxu0 0.0
    %3727 = vmatpush1.msra.mxu0 0.0
    %3728 = vmatprep.subr.mxu0 0.0
    %3729 = vmatpush1.msra.mxu0 0.0
    %3730 = vmatprep.subr.mxu0 0.0
    %3731 = vmatpush1.msra.mxu0 0.0
    %3732 = vmatprep.subr.mxu0 0.0
    %3733 = vmatpush1.msra.mxu0 0.0
    %3734 = vmatprep.subr.mxu0 0.0
    %3735 = vmatpush1.msra.mxu0 0.0
    %3736 = vmatprep.subr.mxu0 0.0
    %3737 = vmatpush1.msra.mxu0 0.0
    %3738 = vmatprep.subr.mxu0 0.0
    %3739 = vmatpush1.msra.mxu0 0.0
    %3740 = vmatprep.subr.mxu0 0.0
    %3741 = vmatpush1.msra.mxu0 0.0
    %3742 = vmatprep.subr.mxu0 0.0
    %3743 = vmatpush1.msra.mxu0 0.0
    %3744 = vmatprep.subr.mxu0 0.0
    %3745 = vmatpush1.msra.mxu0 0.0
    %3746 = vmatprep.subr.mxu0 0.0
    %3747 = vmatpush1.msra.mxu0 0.0
    %3748 = vmatprep.subr.mxu0 0.0
    %3749 = vmatpush1.msra.mxu0 0.0
    %3750 = vmatprep.subr.mxu0 0.0
    %3751 = vmatpush1.msra.mxu0 0.0
    %3752 = vmatprep.subr.mxu0 0.0
    %3753 = vmatpush1.msra.mxu0 0.0
    %3754 = vmatprep.subr.mxu0 0.0
    %3755 = vmatpush1.msra.mxu0 0.0
    %3756 = vmatprep.mubr.f32.mxu0 0.0
    %3757 = vmatmul.mubr.f32.gmra.mrb[0].mxu0 %v3474
    %v3758 = vpop.f32.mrb[0].mxu0
    %v3759 = vadd.f32 %v3689, %v3758
    %v3760 = vpop.f32.mrb[0].mxu0
    %3761 = vdwg.mxu0
    %v3762 = vmul.f32 %v3228, %v1990
    %v3763 = vlaneseq
    %v3764 = vshrl.u32 %v3763, 7
    %v3765 = vsub.s32 0, %v3764
    %v3766 = vrot.slane %v3617, %v3765
    %v3767 = vmul.f32 %v227, %v3766
    %v3768 = vadd.f32 %v3762, %v3767
    %v3769 = vlaneseq
    %v3770 = vshrl.u32 %v3769, 7
    %v3771 = vsub.s32 0, %v3770
    %v3772 = vrot.slane %v3759, %v3771
    %v3773 = vmul.f32 %v230, %v3772
    %v3774 = vadd.f32 %v3768, %v3773
    %v3775 = vadd.f32 %v3774, %v2028
    %v3776 = vsel %vm46, %v3775, 0.0
    %3777 = vadd.xlane.f32.xlu0 %v3776
    %v3778 = vpop.xlane.xlu0 %3777
    %v3779 = vmul.f32 %v3778, %v2008
    %v3780 = vsub.f32 %v3775, %v3779
    %v3781 = vmul.f32 %v3780, %v3780
    %v3782 = vsel %vm46, %v3781, 0.0
    %3783 = vadd.xlane.f32.xlu0 %v3782
    %v3784 = vpop.xlane.xlu0 %3783
    %v3785 = vmul.f32 %v3784, %v2008
    %v3786 = vadd.f32 %v3785, 1e-12
    %v3787 = vrsqrt.pop %v3786
    %v3788 = vmul.f32 %v3780, %v3787
    %v3789 = vmul.f32 %v3788, %v2022
    %v3790 = vadd.f32 %v3789, %v2027
    %3791 = vst.msk [vmem:[#allocation2] sm:$0xff] %vm46, %v3790
    // Predicated region
    $region26: #{transformer_module_forward.1} parent=1 // pred_check
      _
    $region27: #{transformer_module_forward.1} parent=1 // pred_check_branch
      %3793 = sbr.rel (0) target = $region29
    $region28: #{transformer_module_forward.1} parent=1 // pred_region
      %s3795 = ssub.s32 128, 128
      %3796 = vsyncadd [#allocation3], %s3795
      %s3798 = sshll.u32 [#allocation2], 4
      %s3799 = int_to_ptr.vmem [resolvable:$true] %s3798
      %3801 = dma.vmem_to_hbm [thread:$0]  %s3799, 128, %s6, [#allocation3]
    $region29: #{transformer_module_forward.1} parent=1 // pred_fallthru
      _
    // Predicated region
    $region30: #{transformer_module_forward.1} parent=1 // pred_check
      _
    $region31: #{transformer_module_forward.1} parent=1 // pred_check_branch
      %3803 = sbr.rel (0) target = $region33
    $region32: #{transformer_module_forward.1} parent=1 // pred_region
      %3804 = dma.done [#allocation3], 128
    $region33: #{transformer_module_forward.1} parent=1 // pred_fallthru
      _
    %3805 = vsyncpa [#allocation3], 1

</llo_original>
